<compile_context>
chip_gen: v7x
topology: tpu7x:2x2x1
jax: 0.10.0
libtpu: 0.0.40
codegen_flags: <defaults>
</compile_context>

<pallas_src>
import math

import jax
import jax.numpy as jnp
from jax import lax
from jax.experimental import pallas as pl
from jax.experimental.pallas import tpu as pltpu


def _round_up(n, m):
    return ((n + m - 1) // m) * m


def _conv3d_group_nj_kernel(
    patch_ref,   # (tm, tk)  bf16  im2col patches for batch b (leading dim squeezed)
    w_mu_ref,    # (tk, tn)  bf16  weight_mu, pre-transposed to (K, Co)
    w_var_ref,   # (tk, tn)  bf16  exp(weight_logvar), pre-transposed
    b_mu_ref,    # (1, tn)   f32   bias_mu
    b_var_ref,   # (1, tn)   f32   exp(bias_logvar)
    z_ref,       # (1, tn)   f32   z = z_mu + eps_z*exp(0.5*z_logvar) for batch b
    eps_o_ref,   # (tm, tn)  bf16  per-output-element noise
    o_ref,       # (tm, tn)  f32   output
    mu_acc,      # (tm, tn)  f32 scratch
    var_acc,     # (tm, tn)  f32 scratch
):
    k = pl.program_id(3)

    @pl.when(k == 0)
    def _init():
        # Fold the bias adds into the accumulator init (prologue, hidden under DMA).
        mu_acc[...] = jnp.broadcast_to(b_mu_ref[...], mu_acc.shape)
        var_acc[...] = jnp.broadcast_to(b_var_ref[...], var_acc.shape)

    p = patch_ref[...]                                            # bf16 (tm, tk)
    mu_acc[...] += jnp.dot(p, w_mu_ref[...],
                           preferred_element_type=jnp.float32)
    var_acc[...] += jnp.dot(p * p, w_var_ref[...],
                            preferred_element_type=jnp.float32)
    # TODO(synk): when Np//tn > 1, p and p*p are recomputed / re-streamed per n
    # block; cache them in VMEM scratch (or keep weights resident) for wide layers.

    @pl.when(k == pl.num_programs(3) - 1)
    def _finalize():
        z = z_ref[...]                                            # (1, tn) f32
        mu2 = mu_acc[...] * z
        var2 = var_acc[...] * (z * z)
        # std = exp(0.5 * log(var2)) == sqrt(var2)
        o_ref[...] = (mu2 + eps_o_ref[...].astype(jnp.float32) * jnp.sqrt(var2)
                      ).astype(o_ref.dtype)


def conv3d_group_nj_forward(x, eps_z, eps_out, params,
                            stride=(1, 1, 1), padding=(0, 0, 0),
                            dilation=(1, 1, 1), groups=1,
                            *, tm=512, tn=256, tk=512):
    """Training-mode forward of Conv3dGroupNJ as one tiled Pallas TPU kernel."""
    # TODO(synk): groups > 1 (grouped convolution) not implemented in the kernel.
    assert groups == 1, "only groups=1 supported"
    # TODO(synk): deterministic/eval path (F.conv3d with post_weight_mu) is a
    # trivial single-conv variant and is not duplicated here.

    B, Cin, D, H, W = x.shape
    w_mu = params["weight_mu"]                      # (Co, Cin, kD, kH, kW)
    Co, _, kD, kH, kW = w_mu.shape
    sd, sh, sw = stride
    pd, ph, pw = padding
    dd, dh, dw = dilation

    Do = (D + 2 * pd - dd * (kD - 1) - 1) // sd + 1
    Ho = (H + 2 * ph - dh * (kH - 1) - 1) // sh + 1
    Wo = (W + 2 * pw - dw * (kW - 1) - 1) // sw + 1
    S = Do * Ho * Wo
    K = kD * kH * kW * Cin          # tap-major, Cin-minor flattening

    # ---- im2col in bf16, NDHWC layout, tap-major K (no post-stack relayout) ----
    x_c = x.astype(jnp.bfloat16).transpose(0, 2, 3, 4, 1)          # (B,D,H,W,Cin)
    xp = jnp.pad(x_c, ((0, 0), (pd, pd), (ph, ph), (pw, pw), (0, 0)))
    slices = []
    for i in range(kD):
        for j in range(kH):
            for l in range(kW):
                slices.append(
                    xp[:,
                       i * dd: i * dd + sd * (Do - 1) + 1: sd,
                       j * dh: j * dh + sh * (Ho - 1) + 1: sh,
                       l * dw: l * dw + sw * (Wo - 1) + 1: sw, :])
    patches = jnp.stack(slices, axis=4).reshape(B, S, K)           # (B, S, K) bf16
    # TODO(synk): for very large activations, move the tap loop into the kernel
    # (grid axis over kD*kH*kW with element offsets into padded NDHWC x) so the
    # K-expanded patches tensor never round-trips HBM.

    # ---- tile sizes (lane-dense Co, sublane-aligned S; bf16-friendly) ----------
    tm = _round_up(min(tm, _round_up(S, 16)), 16)
    tn = _round_up(min(tn, _round_up(Co, 128)), 128)
    tk = _round_up(min(tk, _round_up(K, 128)), 128)
    Sp = _round_up(S, tm)
    Np = _round_up(Co, tn)
    Kp = _round_up(K, tk)

    # ---- pad / pre-process operands (exp of logvars + z hoisted to wrapper) ----
    patches_p = jnp.pad(patches, ((0, 0), (0, Sp - S), (0, Kp - K)))
    w_mu_t = jnp.pad(
        w_mu.astype(jnp.bfloat16).transpose(2, 3, 4, 1, 0).reshape(K, Co),
        ((0, Kp - K), (0, Np - Co)))
    w_var_t = jnp.pad(
        jnp.exp(params["weight_logvar"]).astype(jnp.bfloat16)
        .transpose(2, 3, 4, 1, 0).reshape(K, Co),
        ((0, Kp - K), (0, Np - Co)))
    b_mu = jnp.pad(params["bias_mu"], (0, Np - Co)).reshape(1, Np).astype(jnp.float32)
    b_var = jnp.pad(jnp.exp(params["bias_logvar"]),
                    (0, Np - Co)).reshape(1, Np).astype(jnp.float32)
    # z = reparametrize(z_mu, z_logvar): computed once per (batch, channel) here.
    z = params["z_mu"][None, :] + eps_z * jnp.exp(0.5 * params["z_logvar"])[None, :]
    z_p = jnp.pad(z, ((0, 0), (0, Np - Co))).reshape(B, 1, Np).astype(jnp.float32)
    # TODO(synk): eps_out could be generated in-kernel (pltpu.prng_seed +
    # pltpu.stateful_normal) to drop this output-sized HBM stream; kept as a bf16
    # input so the forward stays verifiable against an external RNG.
    eps_o_p = jnp.pad(
        eps_out.astype(jnp.bfloat16).transpose(0, 2, 3, 4, 1).reshape(B, S, Co),
        ((0, 0), (0, Sp - S), (0, Np - Co)))

    grid = (B, Sp // tm, Np // tn, Kp // tk)

    flops = 4 * B * Sp * Kp * Np + 8 * B * Sp * Np
    transc = B * Sp * Np
    bytes_acc = (2 * B * Sp * Kp                       # patches (bf16)
                 + 2 * 2 * Kp * Np * (B * Sp // tm)    # both weight streams (bf16)
                 + 2 * B * Sp * Np                     # eps_out (bf16)
                 + 4 * B * Sp * Np                     # output (f32)
                 + 12 * Np)

    out_padded = pl.pallas_call(
        _conv3d_group_nj_kernel,
        out_shape=jax.ShapeDtypeStruct((B, Sp, Np), jnp.float32),
        grid_spec=pltpu.PrefetchScalarGridSpec(
            num_scalar_prefetch=0,
            grid=grid,
            in_specs=[
                pl.BlockSpec((None, tm, tk), lambda b, m, n, k: (b, m, k)),   # patches
                pl.BlockSpec((tk, tn),       lambda b, m, n, k: (k, n)),      # w_mu^T
                pl.BlockSpec((tk, tn),       lambda b, m, n, k: (k, n)),      # exp(w_lv)^T
                pl.BlockSpec((1, tn),        lambda b, m, n, k: (0, n)),      # bias_mu
                pl.BlockSpec((1, tn),        lambda b, m, n, k: (0, n)),      # exp(bias_lv)
                pl.BlockSpec((None, 1, tn),  lambda b, m, n, k: (b, 0, n)),   # z
                pl.BlockSpec((None, tm, tn), lambda b, m, n, k: (b, m, n)),   # eps_out
            ],
            out_specs=pl.BlockSpec((None, tm, tn), lambda b, m, n, k: (b, m, n)),
            scratch_shapes=[pltpu.VMEM((tm, tn), jnp.float32),
                            pltpu.VMEM((tm, tn), jnp.float32)],
        ),
        compiler_params=pltpu.CompilerParams(
            dimension_semantics=("parallel", "parallel", "parallel", "arbitrary"),
            vmem_limit_bytes=32 * 1024 * 1024,
        ),
        cost_estimate=pl.CostEstimate(
            flops=int(flops), transcendentals=int(transc),
            bytes_accessed=int(bytes_acc)),
    )(patches_p, w_mu_t, w_var_t, b_mu, b_var, z_p, eps_o_p)

    out = out_padded[:, :S, :Co].reshape(B, Do, Ho, Wo, Co)
    return out.transpose(0, 4, 1, 2, 3)                 # (B, Co, Do, Ho, Wo)


def init_params(key, in_channels, out_channels, kernel_size):
    """Deterministic re-creation of _ConvNdGroupNJ.reset_parameters()."""
    kD, kH, kW = kernel_size
    ks = jax.random.split(key, 5)
    n = in_channels * kD * kH * kW
    stdv = 1.0 / math.sqrt(n)
    wshape = (out_channels, in_channels, kD, kH, kW)
    return {
        "weight_mu": jax.random.uniform(ks[0], wshape, jnp.float32, -stdv, stdv),
        "weight_logvar": -9.0 + 0.01 * jax.random.normal(ks[1], wshape, jnp.float32),
        "bias_mu": jnp.zeros((out_channels,), jnp.float32),
        "bias_logvar": -9.0 + 0.01 * jax.random.normal(ks[2], (out_channels,), jnp.float32),
        "z_mu": 1.0 + 0.01 * jax.random.normal(ks[3], (out_channels,), jnp.float32),
        "z_logvar": -9.0 + 0.01 * jax.random.normal(ks[4], (out_channels,), jnp.float32),
    }


def reference_forward(x, eps_z, eps_out, params, stride, padding, dilation):
    """Pure-JAX f32 reference mirroring the (intended) PyTorch training forward."""
    w_mu = params["weight_mu"]
    dn = lax.conv_dimension_numbers(x.shape, w_mu.shape, ("NCDHW", "OIDHW", "NCDHW"))
    pad = [(p, p) for p in padding]
    prec = lax.Precision.HIGHEST
    mu_act = lax.conv_general_dilated(x, w_mu, stride, pad, rhs_dilation=dilation,
                                      dimension_numbers=dn, precision=prec)
    mu_act = mu_act + params["bias_mu"][None, :, None, None, None]
    var_act = lax.conv_general_dilated(x * x, jnp.exp(params["weight_logvar"]),
                                       stride, pad, rhs_dilation=dilation,
                                       dimension_numbers=dn, precision=prec)
    var_act = var_act + jnp.exp(params["bias_logvar"])[None, :, None, None, None]
    z = params["z_mu"][None, :] + eps_z * jnp.exp(0.5 * params["z_logvar"])[None, :]
    z5 = z[:, :, None, None, None]
    return mu_act * z5 + eps_out * jnp.sqrt(var_act * (z5 * z5))


if __name__ == "__main__":
    B, Cin, Cout = 2, 4, 8
    D = H = W = 8
    ksize = (3, 3, 3)
    stride = (1, 1, 1)
    padding = (1, 1, 1)
    dilation = (1, 1, 1)

    key = jax.random.PRNGKey(0)
    k_par, k_x, k_ez, k_eo = jax.random.split(key, 4)

    params = init_params(k_par, Cin, Cout, ksize)
    x = jax.random.normal(k_x, (B, Cin, D, H, W), jnp.float32)

    Do = (D + 2 * padding[0] - dilation[0] * (ksize[0] - 1) - 1) // stride[0] + 1
    Ho = (H + 2 * padding[1] - dilation[1] * (ksize[1] - 1) - 1) // stride[1] + 1
    Wo = (W + 2 * padding[2] - dilation[2] * (ksize[2] - 1) - 1) // stride[2] + 1

    eps_z = jax.random.normal(k_ez, (B, Cout), jnp.float32)
    eps_out = jax.random.normal(k_eo, (B, Cout, Do, Ho, Wo), jnp.float32)

    fwd = jax.jit(lambda x_, ez_, eo_, p_: conv3d_group_nj_forward(
        x_, ez_, eo_, p_, stride, padding, dilation))
    out = jax.block_until_ready(fwd(x, eps_z, eps_out, params))

    ref = reference_forward(x, eps_z, eps_out, params, stride, padding, dilation)
    assert out.shape == (B, Cout, Do, Ho, Wo) and out.dtype == jnp.float32
    # bf16 MXU operands (f32 accumulation) vs f32 HIGHEST reference: loosened tol.
    assert jnp.allclose(out, ref, atol=5e-2, rtol=5e-2), (
        "mismatch vs JAX reference; max abs diff = "
        f"{float(jnp.max(jnp.abs(out - ref)))}")

    print("KERNEL_OK")
</pallas_src>

<mosaic_0001>
module attributes {stable_mosaic.version = 11 : i64} {
  func.func @_conv3d_group_nj_kernel(%arg0: i32, %arg1: i32, %arg2: i32, %arg3: i32, %arg4: memref<1x512x128xbf16, #tpu.memory_space<vmem>>, %arg5: memref<128x128xbf16, #tpu.memory_space<vmem>>, %arg6: memref<128x128xbf16, #tpu.memory_space<vmem>>, %arg7: memref<1x128xf32, #tpu.memory_space<vmem>>, %arg8: memref<1x128xf32, #tpu.memory_space<vmem>>, %arg9: memref<1x1x128xf32, #tpu.memory_space<vmem>>, %arg10: memref<1x512x128xbf16, #tpu.memory_space<vmem>>, %arg11: memref<1x512x128xf32, #tpu.memory_space<vmem>>, %arg12: memref<512x128xf32, #tpu.memory_space<vmem>>, %arg13: memref<512x128xf32, #tpu.memory_space<vmem>>) attributes {dimension_semantics = [#tpu.dimension_semantics<parallel>, #tpu.dimension_semantics<parallel>, #tpu.dimension_semantics<parallel>, #tpu.dimension_semantics<arbitrary>], iteration_bounds = array<i64: 2, 1, 1, 1>, scalar_prefetch = 0 : i64, scratch_operands = 2 : i64, tpu.core_type = #tpu.core_type<tc>, window_params = [{transform_indices = @transform_0, window_bounds = array<i64: 1, 512, 128>}, {transform_indices = @transform_1, window_bounds = array<i64: 128, 128>}, {transform_indices = @transform_2, window_bounds = array<i64: 128, 128>}, {transform_indices = @transform_3, window_bounds = array<i64: 1, 128>}, {transform_indices = @transform_4, window_bounds = array<i64: 1, 128>}, {transform_indices = @transform_5, window_bounds = array<i64: 1, 1, 128>}, {transform_indices = @transform_6, window_bounds = array<i64: 1, 512, 128>}, {transform_indices = @transform_7, window_bounds = array<i64: 1, 512, 128>}]} {
    %c0_i32 = arith.constant 0 : i32
    %0 = arith.cmpi eq, %arg3, %c0_i32 : i32
    %1 = arith.extui %0 : i1 to i32
    %c0_i32_0 = arith.constant 0 : i32
    %2 = arith.cmpi ne, %1, %c0_i32_0 : i32
    scf.if %2 {
      %c0_18 = arith.constant 0 : index
      %c0_19 = arith.constant 0 : index
      %19 = vector.load %arg7[%c0_18, %c0_19] : memref<1x128xf32, #tpu.memory_space<vmem>>, vector<1x128xf32>
      %20 = vector.shape_cast %19 : vector<1x128xf32> to vector<1x128xf32>
      %21 = vector.broadcast %20 : vector<1x128xf32> to vector<512x128xf32>
      %c0_20 = arith.constant 0 : index
      %c0_21 = arith.constant 0 : index
      %22 = vector.load %arg12[%c0_20, %c0_21] : memref<512x128xf32, #tpu.memory_space<vmem>>, vector<512x128xf32>
      tpu.vector_store %arg12[%c0_20, %c0_21], %21 {strides = array<i32>} : memref<512x128xf32, #tpu.memory_space<vmem>>, vector<512x128xf32>,
      %c0_22 = arith.constant 0 : index
      %c0_23 = arith.constant 0 : index
      %23 = vector.load %arg8[%c0_22, %c0_23] : memref<1x128xf32, #tpu.memory_space<vmem>>, vector<1x128xf32>
      %24 = vector.shape_cast %23 : vector<1x128xf32> to vector<1x128xf32>
      %25 = vector.broadcast %24 : vector<1x128xf32> to vector<512x128xf32>
      %c0_24 = arith.constant 0 : index
      %c0_25 = arith.constant 0 : index
      %26 = vector.load %arg13[%c0_24, %c0_25] : memref<512x128xf32, #tpu.memory_space<vmem>>, vector<512x128xf32>
      tpu.vector_store %arg13[%c0_24, %c0_25], %25 {strides = array<i32>} : memref<512x128xf32, #tpu.memory_space<vmem>>, vector<512x128xf32>,
    } else {
    }
    %c0 = arith.constant 0 : index
    %c0_1 = arith.constant 0 : index
    %c0_2 = arith.constant 0 : index
    %3 = vector.load %arg4[%c0, %c0_1, %c0_2] : memref<1x512x128xbf16, #tpu.memory_space<vmem>>, vector<1x512x128xbf16>
    %4 = vector.shape_cast %3 : vector<1x512x128xbf16> to vector<512x128xbf16>
    %c0_3 = arith.constant 0 : index
    %c0_4 = arith.constant 0 : index
    %5 = vector.load %arg12[%c0_3, %c0_4] : memref<512x128xf32, #tpu.memory_space<vmem>>, vector<512x128xf32>
    %c0_5 = arith.constant 0 : index
    %c0_6 = arith.constant 0 : index
    %6 = vector.load %arg5[%c0_5, %c0_6] : memref<128x128xbf16, #tpu.memory_space<vmem>>, vector<128x128xbf16>
    %cst = arith.constant dense<0.000000e+00> : vector<512x128xf32>
    %7 = tpu.matmul %4, %6, %cst {dimension_numbers = #tpu.dot_dimension_numbers<[1], [0], [0], [1], [0, 0, 1, 1], [], []>} : vector<512x128xbf16>, vector<128x128xbf16>, vector<512x128xf32> -> vector<512x128xf32>
    %8 = arith.addf %5, %7 : vector<512x128xf32>
    %c0_7 = arith.constant 0 : index
    %c0_8 = arith.constant 0 : index
    %9 = vector.load %arg12[%c0_7, %c0_8] : memref<512x128xf32, #tpu.memory_space<vmem>>, vector<512x128xf32>
    tpu.vector_store %arg12[%c0_7, %c0_8], %8 {strides = array<i32>} : memref<512x128xf32, #tpu.memory_space<vmem>>, vector<512x128xf32>,
    %c0_9 = arith.constant 0 : index
    %c0_10 = arith.constant 0 : index
    %10 = vector.load %arg13[%c0_9, %c0_10] : memref<512x128xf32, #tpu.memory_space<vmem>>, vector<512x128xf32>
    %11 = arith.mulf %4, %4 : vector<512x128xbf16>
    %c0_11 = arith.constant 0 : index
    %c0_12 = arith.constant 0 : index
    %12 = vector.load %arg6[%c0_11, %c0_12] : memref<128x128xbf16, #tpu.memory_space<vmem>>, vector<128x128xbf16>
    %cst_13 = arith.constant dense<0.000000e+00> : vector<512x128xf32>
    %13 = tpu.matmul %11, %12, %cst_13 {dimension_numbers = #tpu.dot_dimension_numbers<[1], [0], [0], [1], [0, 0, 1, 1], [], []>} : vector<512x128xbf16>, vector<128x128xbf16>, vector<512x128xf32> -> vector<512x128xf32>
    %14 = arith.addf %10, %13 : vector<512x128xf32>
    %c0_14 = arith.constant 0 : index
    %c0_15 = arith.constant 0 : index
    %15 = vector.load %arg13[%c0_14, %c0_15] : memref<512x128xf32, #tpu.memory_space<vmem>>, vector<512x128xf32>
    tpu.vector_store %arg13[%c0_14, %c0_15], %14 {strides = array<i32>} : memref<512x128xf32, #tpu.memory_space<vmem>>, vector<512x128xf32>,
    %c0_i32_16 = arith.constant 0 : i32
    %16 = arith.cmpi eq, %arg3, %c0_i32_16 : i32
    %17 = arith.extui %16 : i1 to i32
    %c0_i32_17 = arith.constant 0 : i32
    %18 = arith.cmpi ne, %17, %c0_i32_17 : i32
    scf.if %18 {
      %c0_18 = arith.constant 0 : index
      %c0_19 = arith.constant 0 : index
      %c0_20 = arith.constant 0 : index
      %19 = vector.load %arg9[%c0_18, %c0_19, %c0_20] : memref<1x1x128xf32, #tpu.memory_space<vmem>>, vector<1x1x128xf32>
      %20 = vector.shape_cast %19 : vector<1x1x128xf32> to vector<1x128xf32>
      %c0_21 = arith.constant 0 : index
      %c0_22 = arith.constant 0 : index
      %21 = vector.load %arg12[%c0_21, %c0_22] : memref<512x128xf32, #tpu.memory_space<vmem>>, vector<512x128xf32>
      %22 = vector.broadcast %20 : vector<1x128xf32> to vector<512x128xf32>
      %23 = arith.mulf %21, %22 : vector<512x128xf32>
      %c0_23 = arith.constant 0 : index
      %c0_24 = arith.constant 0 : index
      %24 = vector.load %arg13[%c0_23, %c0_24] : memref<512x128xf32, #tpu.memory_space<vmem>>, vector<512x128xf32>
      %25 = arith.mulf %20, %20 : vector<1x128xf32>
      %26 = vector.broadcast %25 : vector<1x128xf32> to vector<512x128xf32>
      %27 = arith.mulf %24, %26 : vector<512x128xf32>
      %c0_25 = arith.constant 0 : index
      %c0_26 = arith.constant 0 : index
      %c0_27 = arith.constant 0 : index
      %28 = vector.load %arg10[%c0_25, %c0_26, %c0_27] : memref<1x512x128xbf16, #tpu.memory_space<vmem>>, vector<1x512x128xbf16>
      %29 = vector.shape_cast %28 : vector<1x512x128xbf16> to vector<512x128xbf16>
      %30 = arith.extf %29 : vector<512x128xbf16> to vector<512x128xf32>
      %31 = math.sqrt %27 : vector<512x128xf32>
      %32 = arith.mulf %30, %31 : vector<512x128xf32>
      %33 = arith.addf %23, %32 : vector<512x128xf32>
      %c0_28 = arith.constant 0 : index
      %c0_29 = arith.constant 0 : index
      %c0_30 = arith.constant 0 : index
      %34 = vector.load %arg11[%c0_28, %c0_29, %c0_30] : memref<1x512x128xf32, #tpu.memory_space<vmem>>, vector<1x512x128xf32>
      %35 = vector.shape_cast %34 : vector<1x512x128xf32> to vector<512x128xf32>
      %36 = vector.shape_cast %33 : vector<512x128xf32> to vector<1x512x128xf32>
      tpu.vector_store %arg11[%c0_28, %c0_29, %c0_30], %36 {strides = array<i32>} : memref<1x512x128xf32, #tpu.memory_space<vmem>>, vector<1x512x128xf32>,
    } else {
    }
    return
  }
  func.func @transform_0(%arg0: i32, %arg1: i32, %arg2: i32, %arg3: i32) -> (i32, i32, i32) {
    %c0_i32 = arith.constant 0 : i32
    return %arg0, %arg1, %arg3 : i32, i32, i32
  }
  func.func @transform_1(%arg0: i32, %arg1: i32, %arg2: i32, %arg3: i32) -> (i32, i32) {
    %c0_i32 = arith.constant 0 : i32
    return %arg3, %arg2 : i32, i32
  }
  func.func @transform_2(%arg0: i32, %arg1: i32, %arg2: i32, %arg3: i32) -> (i32, i32) {
    %c0_i32 = arith.constant 0 : i32
    return %arg3, %arg2 : i32, i32
  }
  func.func @transform_3(%arg0: i32, %arg1: i32, %arg2: i32, %arg3: i32) -> (i32, i32) {
    %c0_i32 = arith.constant 0 : i32
    %c0_i32_0 = arith.constant 0 : i32
    return %c0_i32, %arg2 : i32, i32
  }
  func.func @transform_4(%arg0: i32, %arg1: i32, %arg2: i32, %arg3: i32) -> (i32, i32) {
    %c0_i32 = arith.constant 0 : i32
    %c0_i32_0 = arith.constant 0 : i32
    return %c0_i32, %arg2 : i32, i32
  }
  func.func @transform_5(%arg0: i32, %arg1: i32, %arg2: i32, %arg3: i32) -> (i32, i32, i32) {
    %c0_i32 = arith.constant 0 : i32
    %c0_i32_0 = arith.constant 0 : i32
    return %arg0, %c0_i32, %arg2 : i32, i32, i32
  }
  func.func @transform_6(%arg0: i32, %arg1: i32, %arg2: i32, %arg3: i32) -> (i32, i32, i32) {
    %c0_i32 = arith.constant 0 : i32
    return %arg0, %arg1, %arg2 : i32, i32, i32
  }
  func.func @transform_7(%arg0: i32, %arg1: i32, %arg2: i32, %arg3: i32) -> (i32, i32, i32) {
    %c0_i32 = arith.constant 0 : i32
    return %arg0, %arg1, %arg2 : i32, i32, i32
  }
}

</mosaic_0001>

<llo_original>
// kernel: _lambda_.1
$region0: #{_lambda_.1}
  #allocation0 [shape = 'u32[]', space=smem, size = 0x4, offset = 0x4, fixed_abs, tag = 'smem constant byte address 0x4 - core index']
  #allocation1 [shape = 'u32[144,128]{1,0:T(1,128)}', space=vmem, size = 0x12000, scoped, tag = 'internal scratch']
  #allocation2 [shape = 'f32[512,128]{1,0:T(8,128)}', space=vmem, size = 0x40000, scoped, tag = 'scratch operand']
  #allocation3 [shape = 'f32[512,128]{1,0:T(8,128)}', space=vmem, size = 0x40000, scoped, tag = 'scratch operand']
  %s0 = inlined_call_operand.vmem [shape: bf16[2,512,128], index: 0, kind: input, shape index: {}]
  %s1 = inlined_call_operand.vmem [shape: bf16[128,128], index: 1, kind: input, shape index: {}]
  %s2 = inlined_call_operand.vmem [shape: bf16[128,128], index: 2, kind: input, shape index: {}]
  %s3 = inlined_call_operand.vmem [shape: f32[1,128], index: 3, kind: input, shape index: {}]
  %s4 = inlined_call_operand.vmem [shape: f32[1,128], index: 4, kind: input, shape index: {}]
  %s5 = inlined_call_operand.vmem [shape: f32[2,1,128], index: 5, kind: input, shape index: {}]
  %s6 = inlined_call_operand.vmem [shape: bf16[2,512,128], index: 6, kind: input, shape index: {}]
  %s7 = inlined_call_operand.vmem [shape: f32[2,512,128], index: 7, kind: output, shape index: {}]
  %s8 = sld [smem:[#allocation0]]
  $region69: #{_lambda_.1} parent=0
    _
  %s10 = ssub.s32 1, %s8
  %s11 = scalar_select 0, %s10, %s8
  loop: start=0, step=1, limit=4
  $region2: #{_lambda_.1} parent=0 // loop_pre_header
    _
  $region3: #{_lambda_.1} parent=0 // loop_header
    %s13 = sphi 0, %s17
    %p14 = scmp.ge.s32.totalorder %s13, 4
    %s20 = sphi 0, %s46
    %s21 = sphi 0, %s42
    %s22 = sphi 0, %s38
    %s23 = sphi 0, %s34
    %s24 = sphi 0, %s20
    %s25 = sphi 0, %s21
    %s26 = sphi 0, %s22
    %s27 = sphi 0, %s23
    %s28 = sphi 0, %s24
    %s29 = sphi 0, %s25
    %s30 = sphi 0, %s26
    %s31 = sphi 0, %s27
    %s53 = sphi 0, %s55
    %s56 = sphi 0, %s53
    %s57 = sphi 0, %s56
    %s73 = sphi 0, %s57
    %s81 = sphi 0, %s83
    %s84 = sphi 0, %s81
    %s85 = sphi 0, %s84
    %s101 = sphi 0, %s85
    %s109 = sphi 0, %s111
    %s112 = sphi 0, %s109
    %s113 = sphi 0, %s112
    %s129 = sphi 0, %s113
    %s135 = sphi 0, %s137
    %s138 = sphi 0, %s135
    %s139 = sphi 0, %s138
    %s155 = sphi 0, %s139
    %s161 = sphi 0, %s163
    %s164 = sphi 0, %s161
    %s165 = sphi 0, %s164
    %s181 = sphi 0, %s165
    %s189 = sphi 0, %s191
    %s192 = sphi 0, %s189
    %s193 = sphi 0, %s192
    %s209 = sphi 0, %s193
    %s219 = sphi 0, %s221
    %s222 = sphi 0, %s219
    %s223 = sphi 0, %s222
    %s239 = sphi 0, %s223
    %s249 = sphi 0, %s251
    %s252 = sphi 0, %s249
    %s253 = sphi 0, %s252
    %s269 = sphi 0, %s253
  $region4: #{_lambda_.1} parent=0 // loop_header_branch
    %16 = sbr.rel (%p14) target = $region8
  $region5: #{_lambda_.1} parent=0 // loop_body
    %s18 = ssub.s32 %s13, 1
    %s19 = ssub.s32 %s13, 2
    %s32 = sadd.s32 1, %s23
    %p33 = scmp.ge.s32.totalorder %s32, 1
    %s34 = scalar_select %p33, 0, %s32
    %s35 = sadd.s32 1, %s22
    %s36 = scalar_select %p33, %s35, %s22
    %p37 = scmp.ge.s32.totalorder %s36, 1
    %s38 = scalar_select %p37, 0, %s36
    %s39 = sadd.s32 1, %s21
    %s40 = scalar_select %p37, %s39, %s21
    %p41 = scmp.ge.s32.totalorder %s40, 1
    %s42 = scalar_select %p41, 0, %s40
    %s43 = sadd.s32 1, %s20
    %s44 = scalar_select %p41, %s43, %s20
    %p45 = scmp.ge.s32.totalorder %s44, 2
    %s46 = scalar_select %p45, 0, %s44
    %s47 = ssub.s32 %s20, %s46
    %s48 = ssub.s32 %s21, %s42
    %s49 = sor.u32 %s47, %s48
    %s50 = ssub.s32 %s23, %s34
    %s51 = sor.u32 %s49, %s50
    %p52 = scmp.eq.s32.totalorder %s51, 0
    %s54 = sadd.s32 %s53, 1
    %s55 = scalar_select %p52, %s53, %s54
    %p58 = pneg %p52
    %p59 = scmp.eq.s32.totalorder %s13, 1
    %p60 = por %p58, %p59
    %p61 = scmp.ne.s32.totalorder %s53, %s56
    %p62 = scmp.eq.s32.totalorder %s13, 0
    %p63 = por %p61, %p62
    %p64 = scmp.ne.s32.totalorder %s53, %s56
    %p65 = scmp.eq.s32.totalorder %s18, 1
    %p66 = por %p64, %p65
    %p67 = scmp.ne.s32.totalorder %s56, %s57
    %p68 = scmp.eq.s32.totalorder %s18, 0
    %p69 = por %p67, %p68
    %p70 = scmp.ne.s32.totalorder %s56, %s57
    %p71 = scmp.eq.s32.totalorder %s19, 1
    %p72 = por %p70, %p71
    %p74 = scmp.ne.s32.totalorder %s57, %s73
    %p75 = scmp.eq.s32.totalorder %s19, 0
    %p76 = por %p74, %p75
    %s77 = ssub.s32 %s23, %s34
    %s78 = ssub.s32 %s22, %s38
    %s79 = sor.u32 %s77, %s78
    %p80 = scmp.eq.s32.totalorder %s79, 0
    %s82 = sadd.s32 %s81, 1
    %s83 = scalar_select %p80, %s81, %s82
    %p86 = pneg %p80
    %p87 = scmp.eq.s32.totalorder %s13, 1
    %p88 = por %p86, %p87
    %p89 = scmp.ne.s32.totalorder %s81, %s84
    %p90 = scmp.eq.s32.totalorder %s13, 0
    %p91 = por %p89, %p90
    %p92 = scmp.ne.s32.totalorder %s81, %s84
    %p93 = scmp.eq.s32.totalorder %s18, 1
    %p94 = por %p92, %p93
    %p95 = scmp.ne.s32.totalorder %s84, %s85
    %p96 = scmp.eq.s32.totalorder %s18, 0
    %p97 = por %p95, %p96
    %p98 = scmp.ne.s32.totalorder %s84, %s85
    %p99 = scmp.eq.s32.totalorder %s19, 1
    %p100 = por %p98, %p99
    %p102 = scmp.ne.s32.totalorder %s85, %s101
    %p103 = scmp.eq.s32.totalorder %s19, 0
    %p104 = por %p102, %p103
    %s105 = ssub.s32 %s23, %s34
    %s106 = ssub.s32 %s22, %s38
    %s107 = sor.u32 %s105, %s106
    %p108 = scmp.eq.s32.totalorder %s107, 0
    %s110 = sadd.s32 %s109, 1
    %s111 = scalar_select %p108, %s109, %s110
    %p114 = pneg %p108
    %p115 = scmp.eq.s32.totalorder %s13, 1
    %p116 = por %p114, %p115
    %p117 = scmp.ne.s32.totalorder %s109, %s112
    %p118 = scmp.eq.s32.totalorder %s13, 0
    %p119 = por %p117, %p118
    %p120 = scmp.ne.s32.totalorder %s109, %s112
    %p121 = scmp.eq.s32.totalorder %s18, 1
    %p122 = por %p120, %p121
    %p123 = scmp.ne.s32.totalorder %s112, %s113
    %p124 = scmp.eq.s32.totalorder %s18, 0
    %p125 = por %p123, %p124
    %p126 = scmp.ne.s32.totalorder %s112, %s113
    %p127 = scmp.eq.s32.totalorder %s19, 1
    %p128 = por %p126, %p127
    %p130 = scmp.ne.s32.totalorder %s113, %s129
    %p131 = scmp.eq.s32.totalorder %s19, 0
    %p132 = por %p130, %p131
    %s133 = ssub.s32 %s22, %s38
    %p134 = scmp.eq.s32.totalorder %s133, 0
    %s136 = sadd.s32 %s135, 1
    %s137 = scalar_select %p134, %s135, %s136
    %p140 = pneg %p134
    %p141 = scmp.eq.s32.totalorder %s13, 1
    %p142 = por %p140, %p141
    %p143 = scmp.ne.s32.totalorder %s135, %s138
    %p144 = scmp.eq.s32.totalorder %s13, 0
    %p145 = por %p143, %p144
    %p146 = scmp.ne.s32.totalorder %s135, %s138
    %p147 = scmp.eq.s32.totalorder %s18, 1
    %p148 = por %p146, %p147
    %p149 = scmp.ne.s32.totalorder %s138, %s139
    %p150 = scmp.eq.s32.totalorder %s18, 0
    %p151 = por %p149, %p150
    %p152 = scmp.ne.s32.totalorder %s138, %s139
    %p153 = scmp.eq.s32.totalorder %s19, 1
    %p154 = por %p152, %p153
    %p156 = scmp.ne.s32.totalorder %s139, %s155
    %p157 = scmp.eq.s32.totalorder %s19, 0
    %p158 = por %p156, %p157
    %s159 = ssub.s32 %s22, %s38
    %p160 = scmp.eq.s32.totalorder %s159, 0
    %s162 = sadd.s32 %s161, 1
    %s163 = scalar_select %p160, %s161, %s162
    %p166 = pneg %p160
    %p167 = scmp.eq.s32.totalorder %s13, 1
    %p168 = por %p166, %p167
    %p169 = scmp.ne.s32.totalorder %s161, %s164
    %p170 = scmp.eq.s32.totalorder %s13, 0
    %p171 = por %p169, %p170
    %p172 = scmp.ne.s32.totalorder %s161, %s164
    %p173 = scmp.eq.s32.totalorder %s18, 1
    %p174 = por %p172, %p173
    %p175 = scmp.ne.s32.totalorder %s164, %s165
    %p176 = scmp.eq.s32.totalorder %s18, 0
    %p177 = por %p175, %p176
    %p178 = scmp.ne.s32.totalorder %s164, %s165
    %p179 = scmp.eq.s32.totalorder %s19, 1
    %p180 = por %p178, %p179
    %p182 = scmp.ne.s32.totalorder %s165, %s181
    %p183 = scmp.eq.s32.totalorder %s19, 0
    %p184 = por %p182, %p183
    %s185 = ssub.s32 %s20, %s46
    %s186 = ssub.s32 %s22, %s38
    %s187 = sor.u32 %s185, %s186
    %p188 = scmp.eq.s32.totalorder %s187, 0
    %s190 = sadd.s32 %s189, 1
    %s191 = scalar_select %p188, %s189, %s190
    %p194 = pneg %p188
    %p195 = scmp.eq.s32.totalorder %s13, 1
    %p196 = por %p194, %p195
    %p197 = scmp.ne.s32.totalorder %s189, %s192
    %p198 = scmp.eq.s32.totalorder %s13, 0
    %p199 = por %p197, %p198
    %p200 = scmp.ne.s32.totalorder %s189, %s192
    %p201 = scmp.eq.s32.totalorder %s18, 1
    %p202 = por %p200, %p201
    %p203 = scmp.ne.s32.totalorder %s192, %s193
    %p204 = scmp.eq.s32.totalorder %s18, 0
    %p205 = por %p203, %p204
    %p206 = scmp.ne.s32.totalorder %s192, %s193
    %p207 = scmp.eq.s32.totalorder %s19, 1
    %p208 = por %p206, %p207
    %p210 = scmp.ne.s32.totalorder %s193, %s209
    %p211 = scmp.eq.s32.totalorder %s19, 0
    %p212 = por %p210, %p211
    %s213 = ssub.s32 %s20, %s46
    %s214 = ssub.s32 %s21, %s42
    %s215 = sor.u32 %s213, %s214
    %s216 = ssub.s32 %s22, %s38
    %s217 = sor.u32 %s215, %s216
    %p218 = scmp.eq.s32.totalorder %s217, 0
    %s220 = sadd.s32 %s219, 1
    %s221 = scalar_select %p218, %s219, %s220
    %p224 = pneg %p218
    %p225 = scmp.eq.s32.totalorder %s13, 1
    %p226 = por %p224, %p225
    %p227 = scmp.ne.s32.totalorder %s219, %s222
    %p228 = scmp.eq.s32.totalorder %s13, 0
    %p229 = por %p227, %p228
    %p230 = scmp.ne.s32.totalorder %s219, %s222
    %p231 = scmp.eq.s32.totalorder %s18, 1
    %p232 = por %p230, %p231
    %p233 = scmp.ne.s32.totalorder %s222, %s223
    %p234 = scmp.eq.s32.totalorder %s18, 0
    %p235 = por %p233, %p234
    %p236 = scmp.ne.s32.totalorder %s222, %s223
    %p237 = scmp.eq.s32.totalorder %s19, 1
    %p238 = por %p236, %p237
    %p240 = scmp.ne.s32.totalorder %s223, %s239
    %p241 = scmp.eq.s32.totalorder %s19, 0
    %p242 = por %p240, %p241
    %s243 = ssub.s32 %s20, %s46
    %s244 = ssub.s32 %s21, %s42
    %s245 = sor.u32 %s243, %s244
    %s246 = ssub.s32 %s22, %s38
    %s247 = sor.u32 %s245, %s246
    %p248 = scmp.eq.s32.totalorder %s247, 0
    %s250 = sadd.s32 %s249, 1
    %s251 = scalar_select %p248, %s249, %s250
    %p254 = pneg %p248
    %p255 = scmp.eq.s32.totalorder %s13, 1
    %p256 = por %p254, %p255
    %p257 = scmp.ne.s32.totalorder %s249, %s252
    %p258 = scmp.eq.s32.totalorder %s13, 0
    %p259 = por %p257, %p258
    %p260 = scmp.ne.s32.totalorder %s249, %s252
    %p261 = scmp.eq.s32.totalorder %s18, 1
    %p262 = por %p260, %p261
    %p263 = scmp.ne.s32.totalorder %s252, %s253
    %p264 = scmp.eq.s32.totalorder %s18, 0
    %p265 = por %p263, %p264
    %p266 = scmp.ne.s32.totalorder %s252, %s253
    %p267 = scmp.eq.s32.totalorder %s19, 1
    %p268 = por %p266, %p267
    %p270 = scmp.ne.s32.totalorder %s253, %s269
    %p271 = scmp.eq.s32.totalorder %s19, 0
    %p272 = por %p270, %p271
    %p273 = scmp.le.s32.totalorder 1, %s13
    %p274 = scmp.lt.s32.totalorder %s13, 3
    %p275 = pnand %p273, %p274
    %p276 = pneg %p275
    // Predicated region
    $region9: #{_lambda_.1} parent=5 // pred_check
      _
    $region10: #{_lambda_.1} parent=5 // pred_check_branch
      %278 = sbr.rel (%p275) target = $region12
    $region11: #{_lambda_.1} parent=5 // pred_region
      %s279 = ssub.s32 %s13, 1
      // Predicated region
      $region13: #{_lambda_.1} parent=11 // pred_check
        %p280 = pneg %p97
      $region14: #{_lambda_.1} parent=11 // pred_check_branch
        %282 = sbr.rel (%p280) target = $region16
      $region15: #{_lambda_.1} parent=11 // pred_region
        %s283 = smul.u32 16, %s27
        %p284 = scmp.lt.s32.totalorder %s283, 15
        %s285 = scalar_select %p284, %s283, 15
        %p286 = scmp.lt.s32.totalorder %s26, 0
        %s287 = scalar_select %p286, %s26, 0
        %s288 = sadd.s32 %s287, %s285
        %s289 = smul.addr %s288, 4
        %s290 = scalar_lea.vmem %s1, %s289
        %s291 = smul.u32 16, %s27
      $region16: #{_lambda_.1} parent=11 // pred_fallthru
        _
      // Predicated region
      $region17: #{_lambda_.1} parent=11 // pred_check
        %p292 = pneg %p125
      $region18: #{_lambda_.1} parent=11 // pred_check_branch
        %294 = sbr.rel (%p292) target = $region20
      $region19: #{_lambda_.1} parent=11 // pred_region
        %s295 = smul.u32 16, %s27
        %p296 = scmp.lt.s32.totalorder %s295, 15
        %s297 = scalar_select %p296, %s295, 15
        %p298 = scmp.lt.s32.totalorder %s26, 0
        %s299 = scalar_select %p298, %s26, 0
        %s300 = sadd.s32 %s299, %s297
        %s301 = smul.addr %s300, 4
        %s302 = scalar_lea.vmem %s2, %s301
        %s303 = smul.u32 16, %s27
      $region20: #{_lambda_.1} parent=11 // pred_fallthru
        _
      // Predicated region
      $region21: #{_lambda_.1} parent=11 // pred_check
        %p304 = pneg %p151
      $region22: #{_lambda_.1} parent=11 // pred_check_branch
        %306 = sbr.rel (%p304) target = $region24
      $region23: #{_lambda_.1} parent=11 // pred_region
        %p307 = scmp.lt.s32.totalorder %s26, 0
        %s308 = scalar_select %p307, %s26, 0
        %s309 = scalar_lea.vmem %s3, %s308
      $region24: #{_lambda_.1} parent=11 // pred_fallthru
        _
      // Predicated region
      $region25: #{_lambda_.1} parent=11 // pred_check
        %p310 = pneg %p177
      $region26: #{_lambda_.1} parent=11 // pred_check_branch
        %312 = sbr.rel (%p310) target = $region28
      $region27: #{_lambda_.1} parent=11 // pred_region
        %p313 = scmp.lt.s32.totalorder %s26, 0
        %s314 = scalar_select %p313, %s26, 0
        %s315 = scalar_lea.vmem %s4, %s314
      $region28: #{_lambda_.1} parent=11 // pred_fallthru
        _
    $region12: #{_lambda_.1} parent=5 // pred_fallthru
      _
    %p316 = scmp.lt.s32.totalorder %s13, 2
    // Predicated region
    $region29: #{_lambda_.1} parent=5 // pred_check
      %p317 = pneg %p316
    $region30: #{_lambda_.1} parent=5 // pred_check_branch
      %319 = sbr.rel (%p317) target = $region32
    $region31: #{_lambda_.1} parent=5 // pred_region
      // Predicated region
      $region33: #{_lambda_.1} parent=31 // pred_check
        %p320 = pneg %p63
      $region34: #{_lambda_.1} parent=31 // pred_check_branch
        %322 = sbr.rel (%p320) target = $region36
      $region35: #{_lambda_.1} parent=31 // pred_region
        %s323 = smul.u32 64, %s21
        %p324 = scmp.lt.s32.totalorder %s20, 1
        %s325 = scalar_select %p324, %s20, 1
        %p326 = scmp.lt.s32.totalorder %s323, 63
        %s327 = scalar_select %p326, %s323, 63
        %p328 = scmp.lt.s32.totalorder %s23, 0
        %s329 = scalar_select %p328, %s23, 0
        %s330 = sadd.s32 %s329, %s327
        %s331 = smul.addr %s325, 64
        %s332 = sadd.s32 %s330, %s331
        %s333 = smul.addr %s332, 4
        %s334 = scalar_lea.vmem %s0, %s333
        %s335 = smul.u32 64, %s21
      $region36: #{_lambda_.1} parent=31 // pred_fallthru
        _
      // Predicated region
      $region37: #{_lambda_.1} parent=31 // pred_check
        %p336 = pneg %p199
      $region38: #{_lambda_.1} parent=31 // pred_check_branch
        %338 = sbr.rel (%p336) target = $region40
      $region39: #{_lambda_.1} parent=31 // pred_region
        %p339 = scmp.lt.s32.totalorder %s20, 1
        %s340 = scalar_select %p339, %s20, 1
        %p341 = scmp.lt.s32.totalorder %s22, 0
        %s342 = scalar_select %p341, %s22, 0
        %s343 = sadd.s32 %s342, %s340
        %s344 = scalar_lea.vmem %s5, %s343
      $region40: #{_lambda_.1} parent=31 // pred_fallthru
        _
      // Predicated region
      $region41: #{_lambda_.1} parent=31 // pred_check
        %p345 = pneg %p229
      $region42: #{_lambda_.1} parent=31 // pred_check_branch
        %347 = sbr.rel (%p345) target = $region44
      $region43: #{_lambda_.1} parent=31 // pred_region
        %s348 = smul.u32 64, %s21
        %p349 = scmp.lt.s32.totalorder %s20, 1
        %s350 = scalar_select %p349, %s20, 1
        %p351 = scmp.lt.s32.totalorder %s348, 63
        %s352 = scalar_select %p351, %s348, 63
        %p353 = scmp.lt.s32.totalorder %s22, 0
        %s354 = scalar_select %p353, %s22, 0
        %s355 = sadd.s32 %s354, %s352
        %s356 = smul.addr %s350, 64
        %s357 = sadd.s32 %s355, %s356
        %s358 = smul.addr %s357, 4
        %s359 = scalar_lea.vmem %s6, %s358
        %s360 = smul.u32 64, %s21
      $region44: #{_lambda_.1} parent=31 // pred_fallthru
        _
    $region32: #{_lambda_.1} parent=5 // pred_fallthru
      _
    %p361 = scmp.le.s32.totalorder 1, %s13
    %p362 = scmp.lt.s32.totalorder %s13, 3
    %p363 = pnand %p361, %p362
    %p364 = pneg %p363
    // Predicated region
    $region45: #{_lambda_.1} parent=5 // pred_check
      _
    $region46: #{_lambda_.1} parent=5 // pred_check_branch
      %366 = sbr.rel (%p363) target = $region48
    $region47: #{_lambda_.1} parent=5 // pred_region
      %s367 = ssub.s32 %s13, 1
      %s368 = smul.u32 64, %s25
      %p369 = scmp.lt.s32.totalorder %s24, 1
      %s370 = scalar_select %p369, %s24, 1
      %p371 = scmp.lt.s32.totalorder %s368, 63
      %s372 = scalar_select %p371, %s368, 63
      %p373 = scmp.lt.s32.totalorder %s27, 0
      %s374 = scalar_select %p373, %s27, 0
      %s375 = sadd.s32 %s374, %s372
      %s376 = smul.addr %s370, 64
      %s377 = sadd.s32 %s375, %s376
      %s378 = smul.addr %s377, 4
      %s379 = scalar_lea.vmem %s0, %s378
      %p380 = pneg %p69
      %p381 = pneg %p66
      %s382 = smul.u32 16, %s27
      %p383 = scmp.lt.s32.totalorder %s382, 15
      %s384 = scalar_select %p383, %s382, 15
      %p385 = scmp.lt.s32.totalorder %s26, 0
      %s386 = scalar_select %p385, %s26, 0
      %s387 = sadd.s32 %s386, %s384
      %s388 = smul.addr %s387, 4
      %s389 = scalar_lea.vmem %s1, %s388
      %p390 = pneg %p97
      %p391 = pneg %p94
      %s392 = smul.u32 16, %s27
      %p393 = scmp.lt.s32.totalorder %s392, 15
      %s394 = scalar_select %p393, %s392, 15
      %p395 = scmp.lt.s32.totalorder %s26, 0
      %s396 = scalar_select %p395, %s26, 0
      %s397 = sadd.s32 %s396, %s394
      %s398 = smul.addr %s397, 4
      %s399 = scalar_lea.vmem %s2, %s398
      %p400 = pneg %p125
      %p401 = pneg %p122
      %p402 = scmp.lt.s32.totalorder %s26, 0
      %s403 = scalar_select %p402, %s26, 0
      %s404 = scalar_lea.vmem %s3, %s403
      %p405 = pneg %p151
      %p406 = pneg %p148
      %p407 = scmp.lt.s32.totalorder %s26, 0
      %s408 = scalar_select %p407, %s26, 0
      %s409 = scalar_lea.vmem %s4, %s408
      %p410 = pneg %p177
      %p411 = pneg %p174
      %p412 = scmp.lt.s32.totalorder %s24, 1
      %s413 = scalar_select %p412, %s24, 1
      %p414 = scmp.lt.s32.totalorder %s26, 0
      %s415 = scalar_select %p414, %s26, 0
      %s416 = sadd.s32 %s415, %s413
      %s417 = scalar_lea.vmem %s5, %s416
      %p418 = pneg %p205
      %p419 = pneg %p202
      %s420 = smul.u32 64, %s25
      %p421 = scmp.lt.s32.totalorder %s24, 1
      %s422 = scalar_select %p421, %s24, 1
      %p423 = scmp.lt.s32.totalorder %s420, 63
      %s424 = scalar_select %p423, %s420, 63
      %p425 = scmp.lt.s32.totalorder %s26, 0
      %s426 = scalar_select %p425, %s26, 0
      %s427 = sadd.s32 %s426, %s424
      %s428 = smul.addr %s422, 64
      %s429 = sadd.s32 %s427, %s428
      %s430 = smul.addr %s429, 4
      %s431 = scalar_lea.vmem %s6, %s430
      %p432 = pneg %p235
      %p433 = pneg %p232
      %p434 = pneg %p265
      %p435 = pneg %p262
      %s436 = smul.u32 64, %s25
      %p437 = scmp.lt.s32.totalorder %s24, 1
      %s438 = scalar_select %p437, %s24, 1
      %p439 = scmp.lt.s32.totalorder %s436, 63
      %s440 = scalar_select %p439, %s436, 63
      %p441 = scmp.lt.s32.totalorder %s26, 0
      %s442 = scalar_select %p441, %s26, 0
      %s443 = sadd.s32 %s442, %s440
      %s444 = smul.addr %s438, 64
      %s445 = sadd.s32 %s443, %s444
      %s446 = smul.addr %s445, 8
      %s447 = scalar_lea.vmem %s7, %s446
      %s448 = smul.u32 64, %s25
      %p449 = scmp.lt.s32.totalorder %s24, 1
      %s450 = scalar_select %p449, %s24, 1
      %p451 = scmp.lt.s32.totalorder %s448, 63
      %s452 = scalar_select %p451, %s448, 63
      %p453 = scmp.lt.s32.totalorder %s27, 0
      %s454 = scalar_select %p453, %s27, 0
      %s455 = sadd.s32 %s454, %s452
      %s456 = smul.addr %s450, 64
      %s457 = sadd.s32 %s455, %s456
      %s458 = smul.addr %s457, 4
      %s459 = scalar_lea.vmem %s0, %s458
      %s460 = smul.u32 64, %s25
      %s461 = smul.u32 16, %s27
      %p462 = scmp.lt.s32.totalorder %s461, 15
      %s463 = scalar_select %p462, %s461, 15
      %p464 = scmp.lt.s32.totalorder %s26, 0
      %s465 = scalar_select %p464, %s26, 0
      %s466 = sadd.s32 %s465, %s463
      %s467 = smul.addr %s466, 4
      %s468 = scalar_lea.vmem %s1, %s467
      %s469 = smul.u32 16, %s27
      %s470 = smul.u32 16, %s27
      %p471 = scmp.lt.s32.totalorder %s470, 15
      %s472 = scalar_select %p471, %s470, 15
      %p473 = scmp.lt.s32.totalorder %s26, 0
      %s474 = scalar_select %p473, %s26, 0
      %s475 = sadd.s32 %s474, %s472
      %s476 = smul.addr %s475, 4
      %s477 = scalar_lea.vmem %s2, %s476
      %s478 = smul.u32 16, %s27
      %p479 = scmp.lt.s32.totalorder %s26, 0
      %s480 = scalar_select %p479, %s26, 0
      %s481 = scalar_lea.vmem %s3, %s480
      %p482 = scmp.lt.s32.totalorder %s26, 0
      %s483 = scalar_select %p482, %s26, 0
      %s484 = scalar_lea.vmem %s4, %s483
      %p485 = scmp.lt.s32.totalorder %s24, 1
      %s486 = scalar_select %p485, %s24, 1
      %p487 = scmp.lt.s32.totalorder %s26, 0
      %s488 = scalar_select %p487, %s26, 0
      %s489 = sadd.s32 %s488, %s486
      %s490 = scalar_lea.vmem %s5, %s489
      %s491 = smul.u32 64, %s25
      %p492 = scmp.lt.s32.totalorder %s24, 1
      %s493 = scalar_select %p492, %s24, 1
      %p494 = scmp.lt.s32.totalorder %s491, 63
      %s495 = scalar_select %p494, %s491, 63
      %p496 = scmp.lt.s32.totalorder %s26, 0
      %s497 = scalar_select %p496, %s26, 0
      %s498 = sadd.s32 %s497, %s495
      %s499 = smul.addr %s493, 64
      %s500 = sadd.s32 %s498, %s499
      %s501 = smul.addr %s500, 4
      %s502 = scalar_lea.vmem %s6, %s501
      %s503 = smul.u32 64, %s25
      %s504 = smul.u32 64, %s25
      %p505 = scmp.lt.s32.totalorder %s24, 1
      %s506 = scalar_select %p505, %s24, 1
      %p507 = scmp.lt.s32.totalorder %s504, 63
      %s508 = scalar_select %p507, %s504, 63
      %p509 = scmp.lt.s32.totalorder %s26, 0
      %s510 = scalar_select %p509, %s26, 0
      %s511 = sadd.s32 %s510, %s508
      %s512 = smul.addr %s506, 64
      %s513 = sadd.s32 %s511, %s512
      %s514 = smul.addr %s513, 8
      %s515 = scalar_lea.vmem %s7, %s514
      %s516 = smul.u32 64, %s25
      %p518 = scmp.eq.s32.totalorder %s27, 0
      // Predicated region
      $region49: #{_lambda_.1} parent=47 // pred_check
        %p519 = pneg %p518
      $region50: #{_lambda_.1} parent=47 // pred_check_branch
        %521 = sbr.rel (%p519) target = $region52
      $region51: #{_lambda_.1} parent=47 // pred_region
        %v522 = vld [vmem:[%s481] sm:$0x1]
        %v524 = vlaneseq
        %v525 = vshrl.u32 %v524, 7
        %v526 = vsub.s32 0, %v525
        %v527 = vrot.slane %v522, %v526
        %529 = vst [vmem:[#allocation2] sm:$0xff] %v527
        %530 = vst [vmem:[#allocation2 + $0x8] sm:$0xff] %v527
        %531 = vst [vmem:[#allocation2 + $0x10] sm:$0xff] %v527
        %532 = vst [vmem:[#allocation2 + $0x18] sm:$0xff] %v527
        %533 = vst [vmem:[#allocation2 + $0x20] sm:$0xff] %v527
        %534 = vst [vmem:[#allocation2 + $0x28] sm:$0xff] %v527
        %535 = vst [vmem:[#allocation2 + $0x30] sm:$0xff] %v527
        %536 = vst [vmem:[#allocation2 + $0x38] sm:$0xff] %v527
        %537 = vst [vmem:[#allocation2 + $0x40] sm:$0xff] %v527
        %538 = vst [vmem:[#allocation2 + $0x48] sm:$0xff] %v527
        %539 = vst [vmem:[#allocation2 + $0x50] sm:$0xff] %v527
        %540 = vst [vmem:[#allocation2 + $0x58] sm:$0xff] %v527
        %541 = vst [vmem:[#allocation2 + $0x60] sm:$0xff] %v527
        %542 = vst [vmem:[#allocation2 + $0x68] sm:$0xff] %v527
        %543 = vst [vmem:[#allocation2 + $0x70] sm:$0xff] %v527
        %544 = vst [vmem:[#allocation2 + $0x78] sm:$0xff] %v527
        %545 = vst [vmem:[#allocation2 + $0x80] sm:$0xff] %v527
        %546 = vst [vmem:[#allocation2 + $0x88] sm:$0xff] %v527
        %547 = vst [vmem:[#allocation2 + $0x90] sm:$0xff] %v527
        %548 = vst [vmem:[#allocation2 + $0x98] sm:$0xff] %v527
        %549 = vst [vmem:[#allocation2 + $0xa0] sm:$0xff] %v527
        %550 = vst [vmem:[#allocation2 + $0xa8] sm:$0xff] %v527
        %551 = vst [vmem:[#allocation2 + $0xb0] sm:$0xff] %v527
        %552 = vst [vmem:[#allocation2 + $0xb8] sm:$0xff] %v527
        %553 = vst [vmem:[#allocation2 + $0xc0] sm:$0xff] %v527
        %554 = vst [vmem:[#allocation2 + $0xc8] sm:$0xff] %v527
        %555 = vst [vmem:[#allocation2 + $0xd0] sm:$0xff] %v527
        %556 = vst [vmem:[#allocation2 + $0xd8] sm:$0xff] %v527
        %557 = vst [vmem:[#allocation2 + $0xe0] sm:$0xff] %v527
        %558 = vst [vmem:[#allocation2 + $0xe8] sm:$0xff] %v527
        %559 = vst [vmem:[#allocation2 + $0xf0] sm:$0xff] %v527
        %560 = vst [vmem:[#allocation2 + $0xf8] sm:$0xff] %v527
        %561 = vst [vmem:[#allocation2 + $0x100] sm:$0xff] %v527
        %562 = vst [vmem:[#allocation2 + $0x108] sm:$0xff] %v527
        %563 = vst [vmem:[#allocation2 + $0x110] sm:$0xff] %v527
        %564 = vst [vmem:[#allocation2 + $0x118] sm:$0xff] %v527
        %565 = vst [vmem:[#allocation2 + $0x120] sm:$0xff] %v527
        %566 = vst [vmem:[#allocation2 + $0x128] sm:$0xff] %v527
        %567 = vst [vmem:[#allocation2 + $0x130] sm:$0xff] %v527
        %568 = vst [vmem:[#allocation2 + $0x138] sm:$0xff] %v527
        %569 = vst [vmem:[#allocation2 + $0x140] sm:$0xff] %v527
        %570 = vst [vmem:[#allocation2 + $0x148] sm:$0xff] %v527
        %571 = vst [vmem:[#allocation2 + $0x150] sm:$0xff] %v527
        %572 = vst [vmem:[#allocation2 + $0x158] sm:$0xff] %v527
        %573 = vst [vmem:[#allocation2 + $0x160] sm:$0xff] %v527
        %574 = vst [vmem:[#allocation2 + $0x168] sm:$0xff] %v527
        %575 = vst [vmem:[#allocation2 + $0x170] sm:$0xff] %v527
        %576 = vst [vmem:[#allocation2 + $0x178] sm:$0xff] %v527
        %577 = vst [vmem:[#allocation2 + $0x180] sm:$0xff] %v527
        %578 = vst [vmem:[#allocation2 + $0x188] sm:$0xff] %v527
        %579 = vst [vmem:[#allocation2 + $0x190] sm:$0xff] %v527
        %580 = vst [vmem:[#allocation2 + $0x198] sm:$0xff] %v527
        %581 = vst [vmem:[#allocation2 + $0x1a0] sm:$0xff] %v527
        %582 = vst [vmem:[#allocation2 + $0x1a8] sm:$0xff] %v527
        %583 = vst [vmem:[#allocation2 + $0x1b0] sm:$0xff] %v527
        %584 = vst [vmem:[#allocation2 + $0x1b8] sm:$0xff] %v527
        %585 = vst [vmem:[#allocation2 + $0x1c0] sm:$0xff] %v527
        %586 = vst [vmem:[#allocation2 + $0x1c8] sm:$0xff] %v527
        %587 = vst [vmem:[#allocation2 + $0x1d0] sm:$0xff] %v527
        %588 = vst [vmem:[#allocation2 + $0x1d8] sm:$0xff] %v527
        %589 = vst [vmem:[#allocation2 + $0x1e0] sm:$0xff] %v527
        %590 = vst [vmem:[#allocation2 + $0x1e8] sm:$0xff] %v527
        %591 = vst [vmem:[#allocation2 + $0x1f0] sm:$0xff] %v527
        %592 = vst [vmem:[#allocation2 + $0x1f8] sm:$0xff] %v527
        %v593 = vld [vmem:[%s484] sm:$0x1]
        %v595 = vlaneseq
        %v596 = vshrl.u32 %v595, 7
        %v597 = vsub.s32 0, %v596
        %v598 = vrot.slane %v593, %v597
        %600 = vst [vmem:[#allocation3] sm:$0xff] %v598
        %601 = vst [vmem:[#allocation3 + $0x8] sm:$0xff] %v598
        %602 = vst [vmem:[#allocation3 + $0x10] sm:$0xff] %v598
        %603 = vst [vmem:[#allocation3 + $0x18] sm:$0xff] %v598
        %604 = vst [vmem:[#allocation3 + $0x20] sm:$0xff] %v598
        %605 = vst [vmem:[#allocation3 + $0x28] sm:$0xff] %v598
        %606 = vst [vmem:[#allocation3 + $0x30] sm:$0xff] %v598
        %607 = vst [vmem:[#allocation3 + $0x38] sm:$0xff] %v598
        %608 = vst [vmem:[#allocation3 + $0x40] sm:$0xff] %v598
        %609 = vst [vmem:[#allocation3 + $0x48] sm:$0xff] %v598
        %610 = vst [vmem:[#allocation3 + $0x50] sm:$0xff] %v598
        %611 = vst [vmem:[#allocation3 + $0x58] sm:$0xff] %v598
        %612 = vst [vmem:[#allocation3 + $0x60] sm:$0xff] %v598
        %613 = vst [vmem:[#allocation3 + $0x68] sm:$0xff] %v598
        %614 = vst [vmem:[#allocation3 + $0x70] sm:$0xff] %v598
        %615 = vst [vmem:[#allocation3 + $0x78] sm:$0xff] %v598
        %616 = vst [vmem:[#allocation3 + $0x80] sm:$0xff] %v598
        %617 = vst [vmem:[#allocation3 + $0x88] sm:$0xff] %v598
        %618 = vst [vmem:[#allocation3 + $0x90] sm:$0xff] %v598
        %619 = vst [vmem:[#allocation3 + $0x98] sm:$0xff] %v598
        %620 = vst [vmem:[#allocation3 + $0xa0] sm:$0xff] %v598
        %621 = vst [vmem:[#allocation3 + $0xa8] sm:$0xff] %v598
        %622 = vst [vmem:[#allocation3 + $0xb0] sm:$0xff] %v598
        %623 = vst [vmem:[#allocation3 + $0xb8] sm:$0xff] %v598
        %624 = vst [vmem:[#allocation3 + $0xc0] sm:$0xff] %v598
        %625 = vst [vmem:[#allocation3 + $0xc8] sm:$0xff] %v598
        %626 = vst [vmem:[#allocation3 + $0xd0] sm:$0xff] %v598
        %627 = vst [vmem:[#allocation3 + $0xd8] sm:$0xff] %v598
        %628 = vst [vmem:[#allocation3 + $0xe0] sm:$0xff] %v598
        %629 = vst [vmem:[#allocation3 + $0xe8] sm:$0xff] %v598
        %630 = vst [vmem:[#allocation3 + $0xf0] sm:$0xff] %v598
        %631 = vst [vmem:[#allocation3 + $0xf8] sm:$0xff] %v598
        %632 = vst [vmem:[#allocation3 + $0x100] sm:$0xff] %v598
        %633 = vst [vmem:[#allocation3 + $0x108] sm:$0xff] %v598
        %634 = vst [vmem:[#allocation3 + $0x110] sm:$0xff] %v598
        %635 = vst [vmem:[#allocation3 + $0x118] sm:$0xff] %v598
        %636 = vst [vmem:[#allocation3 + $0x120] sm:$0xff] %v598
        %637 = vst [vmem:[#allocation3 + $0x128] sm:$0xff] %v598
        %638 = vst [vmem:[#allocation3 + $0x130] sm:$0xff] %v598
        %639 = vst [vmem:[#allocation3 + $0x138] sm:$0xff] %v598
        %640 = vst [vmem:[#allocation3 + $0x140] sm:$0xff] %v598
        %641 = vst [vmem:[#allocation3 + $0x148] sm:$0xff] %v598
        %642 = vst [vmem:[#allocation3 + $0x150] sm:$0xff] %v598
        %643 = vst [vmem:[#allocation3 + $0x158] sm:$0xff] %v598
        %644 = vst [vmem:[#allocation3 + $0x160] sm:$0xff] %v598
        %645 = vst [vmem:[#allocation3 + $0x168] sm:$0xff] %v598
        %646 = vst [vmem:[#allocation3 + $0x170] sm:$0xff] %v598
        %647 = vst [vmem:[#allocation3 + $0x178] sm:$0xff] %v598
        %648 = vst [vmem:[#allocation3 + $0x180] sm:$0xff] %v598
        %649 = vst [vmem:[#allocation3 + $0x188] sm:$0xff] %v598
        %650 = vst [vmem:[#allocation3 + $0x190] sm:$0xff] %v598
        %651 = vst [vmem:[#allocation3 + $0x198] sm:$0xff] %v598
        %652 = vst [vmem:[#allocation3 + $0x1a0] sm:$0xff] %v598
        %653 = vst [vmem:[#allocation3 + $0x1a8] sm:$0xff] %v598
        %654 = vst [vmem:[#allocation3 + $0x1b0] sm:$0xff] %v598
        %655 = vst [vmem:[#allocation3 + $0x1b8] sm:$0xff] %v598
        %656 = vst [vmem:[#allocation3 + $0x1c0] sm:$0xff] %v598
        %657 = vst [vmem:[#allocation3 + $0x1c8] sm:$0xff] %v598
        %658 = vst [vmem:[#allocation3 + $0x1d0] sm:$0xff] %v598
        %659 = vst [vmem:[#allocation3 + $0x1d8] sm:$0xff] %v598
        %660 = vst [vmem:[#allocation3 + $0x1e0] sm:$0xff] %v598
        %661 = vst [vmem:[#allocation3 + $0x1e8] sm:$0xff] %v598
        %662 = vst [vmem:[#allocation3 + $0x1f0] sm:$0xff] %v598
        %663 = vst [vmem:[#allocation3 + $0x1f8] sm:$0xff] %v598
      $region52: #{_lambda_.1} parent=47 // pred_fallthru
        _
      %v664 = vld [vmem:[%s459] sm:$0xf]
      %v665 = vld [vmem:[%s459 + $0x4] sm:$0xf]
      %v666 = vld [vmem:[%s459 + $0x8] sm:$0xf]
      %v667 = vld [vmem:[%s459 + $0xc] sm:$0xf]
      %v668 = vld [vmem:[%s459 + $0x10] sm:$0xf]
      %v669 = vld [vmem:[%s459 + $0x14] sm:$0xf]
      %v670 = vld [vmem:[%s459 + $0x18] sm:$0xf]
      %v671 = vld [vmem:[%s459 + $0x1c] sm:$0xf]
      %v672 = vld [vmem:[%s459 + $0x20] sm:$0xf]
      %v673 = vld [vmem:[%s459 + $0x24] sm:$0xf]
      %v674 = vld [vmem:[%s459 + $0x28] sm:$0xf]
      %v675 = vld [vmem:[%s459 + $0x2c] sm:$0xf]
      %v676 = vld [vmem:[%s459 + $0x30] sm:$0xf]
      %v677 = vld [vmem:[%s459 + $0x34] sm:$0xf]
      %v678 = vld [vmem:[%s459 + $0x38] sm:$0xf]
      %v679 = vld [vmem:[%s459 + $0x3c] sm:$0xf]
      %v680 = vld [vmem:[%s459 + $0x40] sm:$0xf]
      %v681 = vld [vmem:[%s459 + $0x44] sm:$0xf]
      %v682 = vld [vmem:[%s459 + $0x48] sm:$0xf]
      %v683 = vld [vmem:[%s459 + $0x4c] sm:$0xf]
      %v684 = vld [vmem:[%s459 + $0x50] sm:$0xf]
      %v685 = vld [vmem:[%s459 + $0x54] sm:$0xf]
      %v686 = vld [vmem:[%s459 + $0x58] sm:$0xf]
      %v687 = vld [vmem:[%s459 + $0x5c] sm:$0xf]
      %v688 = vld [vmem:[%s459 + $0x60] sm:$0xf]
      %v689 = vld [vmem:[%s459 + $0x64] sm:$0xf]
      %v690 = vld [vmem:[%s459 + $0x68] sm:$0xf]
      %v691 = vld [vmem:[%s459 + $0x6c] sm:$0xf]
      %v692 = vld [vmem:[%s459 + $0x70] sm:$0xf]
      %v693 = vld [vmem:[%s459 + $0x74] sm:$0xf]
      %v694 = vld [vmem:[%s459 + $0x78] sm:$0xf]
      %v695 = vld [vmem:[%s459 + $0x7c] sm:$0xf]
      %v696 = vld [vmem:[%s459 + $0x80] sm:$0xf]
      %v697 = vld [vmem:[%s459 + $0x84] sm:$0xf]
      %v698 = vld [vmem:[%s459 + $0x88] sm:$0xf]
      %v699 = vld [vmem:[%s459 + $0x8c] sm:$0xf]
      %v700 = vld [vmem:[%s459 + $0x90] sm:$0xf]
      %v701 = vld [vmem:[%s459 + $0x94] sm:$0xf]
      %v702 = vld [vmem:[%s459 + $0x98] sm:$0xf]
      %v703 = vld [vmem:[%s459 + $0x9c] sm:$0xf]
      %v704 = vld [vmem:[%s459 + $0xa0] sm:$0xf]
      %v705 = vld [vmem:[%s459 + $0xa4] sm:$0xf]
      %v706 = vld [vmem:[%s459 + $0xa8] sm:$0xf]
      %v707 = vld [vmem:[%s459 + $0xac] sm:$0xf]
      %v708 = vld [vmem:[%s459 + $0xb0] sm:$0xf]
      %v709 = vld [vmem:[%s459 + $0xb4] sm:$0xf]
      %v710 = vld [vmem:[%s459 + $0xb8] sm:$0xf]
      %v711 = vld [vmem:[%s459 + $0xbc] sm:$0xf]
      %v712 = vld [vmem:[%s459 + $0xc0] sm:$0xf]
      %v713 = vld [vmem:[%s459 + $0xc4] sm:$0xf]
      %v714 = vld [vmem:[%s459 + $0xc8] sm:$0xf]
      %v715 = vld [vmem:[%s459 + $0xcc] sm:$0xf]
      %v716 = vld [vmem:[%s459 + $0xd0] sm:$0xf]
      %v717 = vld [vmem:[%s459 + $0xd4] sm:$0xf]
      %v718 = vld [vmem:[%s459 + $0xd8] sm:$0xf]
      %v719 = vld [vmem:[%s459 + $0xdc] sm:$0xf]
      %v720 = vld [vmem:[%s459 + $0xe0] sm:$0xf]
      %v721 = vld [vmem:[%s459 + $0xe4] sm:$0xf]
      %v722 = vld [vmem:[%s459 + $0xe8] sm:$0xf]
      %v723 = vld [vmem:[%s459 + $0xec] sm:$0xf]
      %v724 = vld [vmem:[%s459 + $0xf0] sm:$0xf]
      %v725 = vld [vmem:[%s459 + $0xf4] sm:$0xf]
      %v726 = vld [vmem:[%s459 + $0xf8] sm:$0xf]
      %v727 = vld [vmem:[%s459 + $0xfc] sm:$0xf]
      %v728 = vld [vmem:[#allocation2] sm:$0xff]
      %v729 = vld [vmem:[#allocation2 + $0x8] sm:$0xff]
      %v730 = vld [vmem:[#allocation2 + $0x10] sm:$0xff]
      %v731 = vld [vmem:[#allocation2 + $0x18] sm:$0xff]
      %v732 = vld [vmem:[#allocation2 + $0x20] sm:$0xff]
      %v733 = vld [vmem:[#allocation2 + $0x28] sm:$0xff]
      %v734 = vld [vmem:[#allocation2 + $0x30] sm:$0xff]
      %v735 = vld [vmem:[#allocation2 + $0x38] sm:$0xff]
      %v736 = vld [vmem:[#allocation2 + $0x40] sm:$0xff]
      %v737 = vld [vmem:[#allocation2 + $0x48] sm:$0xff]
      %v738 = vld [vmem:[#allocation2 + $0x50] sm:$0xff]
      %v739 = vld [vmem:[#allocation2 + $0x58] sm:$0xff]
      %v740 = vld [vmem:[#allocation2 + $0x60] sm:$0xff]
      %v741 = vld [vmem:[#allocation2 + $0x68] sm:$0xff]
      %v742 = vld [vmem:[#allocation2 + $0x70] sm:$0xff]
      %v743 = vld [vmem:[#allocation2 + $0x78] sm:$0xff]
      %v744 = vld [vmem:[#allocation2 + $0x80] sm:$0xff]
      %v745 = vld [vmem:[#allocation2 + $0x88] sm:$0xff]
      %v746 = vld [vmem:[#allocation2 + $0x90] sm:$0xff]
      %v747 = vld [vmem:[#allocation2 + $0x98] sm:$0xff]
      %v748 = vld [vmem:[#allocation2 + $0xa0] sm:$0xff]
      %v749 = vld [vmem:[#allocation2 + $0xa8] sm:$0xff]
      %v750 = vld [vmem:[#allocation2 + $0xb0] sm:$0xff]
      %v751 = vld [vmem:[#allocation2 + $0xb8] sm:$0xff]
      %v752 = vld [vmem:[#allocation2 + $0xc0] sm:$0xff]
      %v753 = vld [vmem:[#allocation2 + $0xc8] sm:$0xff]
      %v754 = vld [vmem:[#allocation2 + $0xd0] sm:$0xff]
      %v755 = vld [vmem:[#allocation2 + $0xd8] sm:$0xff]
      %v756 = vld [vmem:[#allocation2 + $0xe0] sm:$0xff]
      %v757 = vld [vmem:[#allocation2 + $0xe8] sm:$0xff]
      %v758 = vld [vmem:[#allocation2 + $0xf0] sm:$0xff]
      %v759 = vld [vmem:[#allocation2 + $0xf8] sm:$0xff]
      %v760 = vld [vmem:[#allocation2 + $0x100] sm:$0xff]
      %v761 = vld [vmem:[#allocation2 + $0x108] sm:$0xff]
      %v762 = vld [vmem:[#allocation2 + $0x110] sm:$0xff]
      %v763 = vld [vmem:[#allocation2 + $0x118] sm:$0xff]
      %v764 = vld [vmem:[#allocation2 + $0x120] sm:$0xff]
      %v765 = vld [vmem:[#allocation2 + $0x128] sm:$0xff]
      %v766 = vld [vmem:[#allocation2 + $0x130] sm:$0xff]
      %v767 = vld [vmem:[#allocation2 + $0x138] sm:$0xff]
      %v768 = vld [vmem:[#allocation2 + $0x140] sm:$0xff]
      %v769 = vld [vmem:[#allocation2 + $0x148] sm:$0xff]
      %v770 = vld [vmem:[#allocation2 + $0x150] sm:$0xff]
      %v771 = vld [vmem:[#allocation2 + $0x158] sm:$0xff]
      %v772 = vld [vmem:[#allocation2 + $0x160] sm:$0xff]
      %v773 = vld [vmem:[#allocation2 + $0x168] sm:$0xff]
      %v774 = vld [vmem:[#allocation2 + $0x170] sm:$0xff]
      %v775 = vld [vmem:[#allocation2 + $0x178] sm:$0xff]
      %v776 = vld [vmem:[#allocation2 + $0x180] sm:$0xff]
      %v777 = vld [vmem:[#allocation2 + $0x188] sm:$0xff]
      %v778 = vld [vmem:[#allocation2 + $0x190] sm:$0xff]
      %v779 = vld [vmem:[#allocation2 + $0x198] sm:$0xff]
      %v780 = vld [vmem:[#allocation2 + $0x1a0] sm:$0xff]
      %v781 = vld [vmem:[#allocation2 + $0x1a8] sm:$0xff]
      %v782 = vld [vmem:[#allocation2 + $0x1b0] sm:$0xff]
      %v783 = vld [vmem:[#allocation2 + $0x1b8] sm:$0xff]
      %v784 = vld [vmem:[#allocation2 + $0x1c0] sm:$0xff]
      %v785 = vld [vmem:[#allocation2 + $0x1c8] sm:$0xff]
      %v786 = vld [vmem:[#allocation2 + $0x1d0] sm:$0xff]
      %v787 = vld [vmem:[#allocation2 + $0x1d8] sm:$0xff]
      %v788 = vld [vmem:[#allocation2 + $0x1e0] sm:$0xff]
      %v789 = vld [vmem:[#allocation2 + $0x1e8] sm:$0xff]
      %v790 = vld [vmem:[#allocation2 + $0x1f0] sm:$0xff]
      %v791 = vld [vmem:[#allocation2 + $0x1f8] sm:$0xff]
      %v792 = vld [vmem:[%s468] sm:$0xf]
      %v793 = vld [vmem:[%s468 + $0x4] sm:$0xf]
      %v794 = vld [vmem:[%s468 + $0x8] sm:$0xf]
      %v795 = vld [vmem:[%s468 + $0xc] sm:$0xf]
      %v796 = vld [vmem:[%s468 + $0x10] sm:$0xf]
      %v797 = vld [vmem:[%s468 + $0x14] sm:$0xf]
      %v798 = vld [vmem:[%s468 + $0x18] sm:$0xf]
      %v799 = vld [vmem:[%s468 + $0x1c] sm:$0xf]
      %v800 = vld [vmem:[%s468 + $0x20] sm:$0xf]
      %v801 = vld [vmem:[%s468 + $0x24] sm:$0xf]
      %v802 = vld [vmem:[%s468 + $0x28] sm:$0xf]
      %v803 = vld [vmem:[%s468 + $0x2c] sm:$0xf]
      %v804 = vld [vmem:[%s468 + $0x30] sm:$0xf]
      %v805 = vld [vmem:[%s468 + $0x34] sm:$0xf]
      %v806 = vld [vmem:[%s468 + $0x38] sm:$0xf]
      %v807 = vld [vmem:[%s468 + $0x3c] sm:$0xf]
      %v872 = vunpack.c.l.b16 %v664
      %v873 = vunpack.c.l.b16 %v665
      %v874 = vunpack.c.l.b16 %v666
      %v875 = vunpack.c.l.b16 %v667
      %v876 = vunpack.c.l.b16 %v668
      %v877 = vunpack.c.l.b16 %v669
      %v878 = vunpack.c.l.b16 %v670
      %v879 = vunpack.c.l.b16 %v671
      %v880 = vunpack.c.l.b16 %v672
      %v881 = vunpack.c.l.b16 %v673
      %v882 = vunpack.c.l.b16 %v674
      %v883 = vunpack.c.l.b16 %v675
      %v884 = vunpack.c.l.b16 %v676
      %v885 = vunpack.c.l.b16 %v677
      %v886 = vunpack.c.l.b16 %v678
      %v887 = vunpack.c.l.b16 %v679
      %v888 = vunpack.c.l.b16 %v680
      %v889 = vunpack.c.l.b16 %v681
      %v890 = vunpack.c.l.b16 %v682
      %v891 = vunpack.c.l.b16 %v683
      %v892 = vunpack.c.l.b16 %v684
      %v893 = vunpack.c.l.b16 %v685
      %v894 = vunpack.c.l.b16 %v686
      %v895 = vunpack.c.l.b16 %v687
      %v896 = vunpack.c.l.b16 %v688
      %v897 = vunpack.c.l.b16 %v689
      %v898 = vunpack.c.l.b16 %v690
      %v899 = vunpack.c.l.b16 %v691
      %v900 = vunpack.c.l.b16 %v692
      %v901 = vunpack.c.l.b16 %v693
      %v902 = vunpack.c.l.b16 %v694
      %v903 = vunpack.c.l.b16 %v695
      %v904 = vunpack.c.l.b16 %v696
      %v905 = vunpack.c.l.b16 %v697
      %v906 = vunpack.c.l.b16 %v698
      %v907 = vunpack.c.l.b16 %v699
      %v908 = vunpack.c.l.b16 %v700
      %v909 = vunpack.c.l.b16 %v701
      %v910 = vunpack.c.l.b16 %v702
      %v911 = vunpack.c.l.b16 %v703
      %v912 = vunpack.c.l.b16 %v704
      %v913 = vunpack.c.l.b16 %v705
      %v914 = vunpack.c.l.b16 %v706
      %v915 = vunpack.c.l.b16 %v707
      %v916 = vunpack.c.l.b16 %v708
      %v917 = vunpack.c.l.b16 %v709
      %v918 = vunpack.c.l.b16 %v710
      %v919 = vunpack.c.l.b16 %v711
      %v920 = vunpack.c.l.b16 %v712
      %v921 = vunpack.c.l.b16 %v713
      %v922 = vunpack.c.l.b16 %v714
      %v923 = vunpack.c.l.b16 %v715
      %v924 = vunpack.c.l.b16 %v716
      %v925 = vunpack.c.l.b16 %v717
      %v926 = vunpack.c.l.b16 %v718
      %v927 = vunpack.c.l.b16 %v719
      %v928 = vunpack.c.l.b16 %v720
      %v929 = vunpack.c.l.b16 %v721
      %v930 = vunpack.c.l.b16 %v722
      %v931 = vunpack.c.l.b16 %v723
      %v932 = vunpack.c.l.b16 %v724
      %v933 = vunpack.c.l.b16 %v725
      %v934 = vunpack.c.l.b16 %v726
      %v935 = vunpack.c.l.b16 %v727
      %v936 = vpack.c.b16 %v873, %v872
      %v937 = vpack.c.b16 %v875, %v874
      %v938 = vpack.c.b16 %v877, %v876
      %v939 = vpack.c.b16 %v879, %v878
      %v940 = vpack.c.b16 %v881, %v880
      %v941 = vpack.c.b16 %v883, %v882
      %v942 = vpack.c.b16 %v885, %v884
      %v943 = vpack.c.b16 %v887, %v886
      %v944 = vpack.c.b16 %v889, %v888
      %v945 = vpack.c.b16 %v891, %v890
      %v946 = vpack.c.b16 %v893, %v892
      %v947 = vpack.c.b16 %v895, %v894
      %v948 = vpack.c.b16 %v897, %v896
      %v949 = vpack.c.b16 %v899, %v898
      %v950 = vpack.c.b16 %v901, %v900
      %v951 = vpack.c.b16 %v903, %v902
      %v952 = vpack.c.b16 %v905, %v904
      %v953 = vpack.c.b16 %v907, %v906
      %v954 = vpack.c.b16 %v909, %v908
      %v955 = vpack.c.b16 %v911, %v910
      %v956 = vpack.c.b16 %v913, %v912
      %v957 = vpack.c.b16 %v915, %v914
      %v958 = vpack.c.b16 %v917, %v916
      %v959 = vpack.c.b16 %v919, %v918
      %v960 = vpack.c.b16 %v921, %v920
      %v961 = vpack.c.b16 %v923, %v922
      %v962 = vpack.c.b16 %v925, %v924
      %v963 = vpack.c.b16 %v927, %v926
      %v964 = vpack.c.b16 %v929, %v928
      %v965 = vpack.c.b16 %v931, %v930
      %v966 = vpack.c.b16 %v933, %v932
      %v967 = vpack.c.b16 %v935, %v934
      %v1016 = vunpack.c.l.b16 %v792
      %v1017 = vunpack.c.l.b16 %v793
      %v1018 = vunpack.c.l.b16 %v794
      %v1019 = vunpack.c.l.b16 %v795
      %v1020 = vunpack.c.l.b16 %v796
      %v1021 = vunpack.c.l.b16 %v797
      %v1022 = vunpack.c.l.b16 %v798
      %v1023 = vunpack.c.l.b16 %v799
      %v1024 = vunpack.c.l.b16 %v800
      %v1025 = vunpack.c.l.b16 %v801
      %v1026 = vunpack.c.l.b16 %v802
      %v1027 = vunpack.c.l.b16 %v803
      %v1028 = vunpack.c.l.b16 %v804
      %v1029 = vunpack.c.l.b16 %v805
      %v1030 = vunpack.c.l.b16 %v806
      %v1031 = vunpack.c.l.b16 %v807
      %v1032 = vpack.c.b16 %v1017, %v1016
      %v1033 = vpack.c.b16 %v1019, %v1018
      %v1034 = vpack.c.b16 %v1021, %v1020
      %v1035 = vpack.c.b16 %v1023, %v1022
      %v1036 = vpack.c.b16 %v1025, %v1024
      %v1037 = vpack.c.b16 %v1027, %v1026
      %v1038 = vpack.c.b16 %v1029, %v1028
      %v1039 = vpack.c.b16 %v1031, %v1030
      %1048 = vmatprep.subr.bf16.mxu0 0
      %1049 = vmatpush1.bf16.msra.mxu0 %v1032
      %1050 = vmatprep.subr.bf16.mxu0 0
      %1051 = vmatpush1.bf16.msra.mxu0 %v1033
      %1052 = vmatprep.subr.bf16.mxu0 0
      %1053 = vmatpush1.bf16.msra.mxu0 %v1034
      %1054 = vmatprep.subr.bf16.mxu0 0
      %1055 = vmatpush1.bf16.msra.mxu0 %v1035
      %1056 = vmatprep.subr.bf16.mxu0 0
      %1057 = vmatpush1.bf16.msra.mxu0 %v1036
      %1058 = vmatprep.subr.bf16.mxu0 0
      %1059 = vmatpush1.bf16.msra.mxu0 %v1037
      %1060 = vmatprep.subr.bf16.mxu0 0
      %1061 = vmatpush1.bf16.msra.mxu0 %v1038
      %1062 = vmatprep.subr.bf16.mxu0 0
      %1063 = vmatpush1.bf16.msra.mxu0 %v1039
      %1064 = vmatprep.subr.bf16.mxu0 0
      %1065 = vmatpush1.bf16.msra.mxu0 0
      %1066 = vmatprep.subr.bf16.mxu0 0
      %1067 = vmatpush1.bf16.msra.mxu0 0
      %1068 = vmatprep.subr.bf16.mxu0 0
      %1069 = vmatpush1.bf16.msra.mxu0 0
      %1070 = vmatprep.subr.bf16.mxu0 0
      %1071 = vmatpush1.bf16.msra.mxu0 0
      %1072 = vmatprep.subr.bf16.mxu0 0
      %1073 = vmatpush1.bf16.msra.mxu0 0
      %1074 = vmatprep.subr.bf16.mxu0 0
      %1075 = vmatpush1.bf16.msra.mxu0 0
      %1076 = vmatprep.subr.bf16.mxu0 0
      %1077 = vmatpush1.bf16.msra.mxu0 0
      %1078 = vmatprep.subr.bf16.mxu0 0
      %1079 = vmatpush1.bf16.msra.mxu0 0
      %1080 = vmatprep.mubr.bf16.mxu0 0
      %1081 = vmatmul.mubr.bf16.gmra.mrb[0].mxu0 %v936
      %v1082 = vpop.f32.mrb[0].mxu0
      %v1083 = vadd.f32 0.0, %v1082
      %v1084 = vpop.f32.mrb[0].mxu0
      %v1085 = vpop.f32.mrb[0].mxu0
      %v1086 = vadd.f32 0.0, %v1085
      %v1087 = vpop.f32.mrb[0].mxu0
      %1088 = vmatprep.mubr.bf16.mxu0 0
      %1089 = vmatmul.mubr.bf16.gmra.mrb[0].mxu0 %v937
      %v1090 = vpop.f32.mrb[0].mxu0
      %v1091 = vadd.f32 0.0, %v1090
      %v1092 = vpop.f32.mrb[0].mxu0
      %v1093 = vpop.f32.mrb[0].mxu0
      %v1094 = vadd.f32 0.0, %v1093
      %v1095 = vpop.f32.mrb[0].mxu0
      %1096 = vmatprep.mubr.bf16.mxu0 0
      %1097 = vmatmul.mubr.bf16.gmra.mrb[0].mxu0 %v938
      %v1098 = vpop.f32.mrb[0].mxu0
      %v1099 = vadd.f32 0.0, %v1098
      %v1100 = vpop.f32.mrb[0].mxu0
      %v1101 = vpop.f32.mrb[0].mxu0
      %v1102 = vadd.f32 0.0, %v1101
      %v1103 = vpop.f32.mrb[0].mxu0
      %1104 = vmatprep.mubr.bf16.mxu0 0
      %1105 = vmatmul.mubr.bf16.gmra.mrb[0].mxu0 %v939
      %v1106 = vpop.f32.mrb[0].mxu0
      %v1107 = vadd.f32 0.0, %v1106
      %v1108 = vpop.f32.mrb[0].mxu0
      %v1109 = vpop.f32.mrb[0].mxu0
      %v1110 = vadd.f32 0.0, %v1109
      %v1111 = vpop.f32.mrb[0].mxu0
      %1112 = vmatprep.mubr.bf16.mxu0 0
      %1113 = vmatmul.mubr.bf16.gmra.mrb[0].mxu0 %v940
      %v1114 = vpop.f32.mrb[0].mxu0
      %v1115 = vadd.f32 0.0, %v1114
      %v1116 = vpop.f32.mrb[0].mxu0
      %v1117 = vpop.f32.mrb[0].mxu0
      %v1118 = vadd.f32 0.0, %v1117
      %v1119 = vpop.f32.mrb[0].mxu0
      %1120 = vmatprep.mubr.bf16.mxu0 0
      %1121 = vmatmul.mubr.bf16.gmra.mrb[0].mxu0 %v941
      %v1122 = vpop.f32.mrb[0].mxu0
      %v1123 = vadd.f32 0.0, %v1122
      %v1124 = vpop.f32.mrb[0].mxu0
      %v1125 = vpop.f32.mrb[0].mxu0
      %v1126 = vadd.f32 0.0, %v1125
      %v1127 = vpop.f32.mrb[0].mxu0
      %1128 = vmatprep.mubr.bf16.mxu0 0
      %1129 = vmatmul.mubr.bf16.gmra.mrb[0].mxu0 %v942
      %v1130 = vpop.f32.mrb[0].mxu0
      %v1131 = vadd.f32 0.0, %v1130
      %v1132 = vpop.f32.mrb[0].mxu0
      %v1133 = vpop.f32.mrb[0].mxu0
      %v1134 = vadd.f32 0.0, %v1133
      %v1135 = vpop.f32.mrb[0].mxu0
      %1136 = vmatprep.mubr.bf16.mxu0 0
      %1137 = vmatmul.mubr.bf16.gmra.mrb[0].mxu0 %v943
      %v1138 = vpop.f32.mrb[0].mxu0
      %v1139 = vadd.f32 0.0, %v1138
      %v1140 = vpop.f32.mrb[0].mxu0
      %v1141 = vpop.f32.mrb[0].mxu0
      %v1142 = vadd.f32 0.0, %v1141
      %v1143 = vpop.f32.mrb[0].mxu0
      %1144 = vmatprep.mubr.bf16.mxu0 0
      %1145 = vmatmul.mubr.bf16.gmra.mrb[0].mxu0 %v944
      %v1146 = vpop.f32.mrb[0].mxu0
      %v1147 = vadd.f32 0.0, %v1146
      %v1148 = vpop.f32.mrb[0].mxu0
      %v1149 = vpop.f32.mrb[0].mxu0
      %v1150 = vadd.f32 0.0, %v1149
      %v1151 = vpop.f32.mrb[0].mxu0
      %1152 = vmatprep.mubr.bf16.mxu0 0
      %1153 = vmatmul.mubr.bf16.gmra.mrb[0].mxu0 %v945
      %v1154 = vpop.f32.mrb[0].mxu0
      %v1155 = vadd.f32 0.0, %v1154
      %v1156 = vpop.f32.mrb[0].mxu0
      %v1157 = vpop.f32.mrb[0].mxu0
      %v1158 = vadd.f32 0.0, %v1157
      %v1159 = vpop.f32.mrb[0].mxu0
      %1160 = vmatprep.mubr.bf16.mxu0 0
      %1161 = vmatmul.mubr.bf16.gmra.mrb[0].mxu0 %v946
      %v1162 = vpop.f32.mrb[0].mxu0
      %v1163 = vadd.f32 0.0, %v1162
      %v1164 = vpop.f32.mrb[0].mxu0
      %v1165 = vpop.f32.mrb[0].mxu0
      %v1166 = vadd.f32 0.0, %v1165
      %v1167 = vpop.f32.mrb[0].mxu0
      %1168 = vmatprep.mubr.bf16.mxu0 0
      %1169 = vmatmul.mubr.bf16.gmra.mrb[0].mxu0 %v947
      %v1170 = vpop.f32.mrb[0].mxu0
      %v1171 = vadd.f32 0.0, %v1170
      %v1172 = vpop.f32.mrb[0].mxu0
      %v1173 = vpop.f32.mrb[0].mxu0
      %v1174 = vadd.f32 0.0, %v1173
      %v1175 = vpop.f32.mrb[0].mxu0
      %1176 = vmatprep.mubr.bf16.mxu0 0
      %1177 = vmatmul.mubr.bf16.gmra.mrb[0].mxu0 %v948
      %v1178 = vpop.f32.mrb[0].mxu0
      %v1179 = vadd.f32 0.0, %v1178
      %v1180 = vpop.f32.mrb[0].mxu0
      %v1181 = vpop.f32.mrb[0].mxu0
      %v1182 = vadd.f32 0.0, %v1181
      %v1183 = vpop.f32.mrb[0].mxu0
      %1184 = vmatprep.mubr.bf16.mxu0 0
      %1185 = vmatmul.mubr.bf16.gmra.mrb[0].mxu0 %v949
      %v1186 = vpop.f32.mrb[0].mxu0
      %v1187 = vadd.f32 0.0, %v1186
      %v1188 = vpop.f32.mrb[0].mxu0
      %v1189 = vpop.f32.mrb[0].mxu0
      %v1190 = vadd.f32 0.0, %v1189
      %v1191 = vpop.f32.mrb[0].mxu0
      %1192 = vmatprep.mubr.bf16.mxu0 0
      %1193 = vmatmul.mubr.bf16.gmra.mrb[0].mxu0 %v950
      %v1194 = vpop.f32.mrb[0].mxu0
      %v1195 = vadd.f32 0.0, %v1194
      %v1196 = vpop.f32.mrb[0].mxu0
      %v1197 = vpop.f32.mrb[0].mxu0
      %v1198 = vadd.f32 0.0, %v1197
      %v1199 = vpop.f32.mrb[0].mxu0
      %1200 = vmatprep.mubr.bf16.mxu0 0
      %1201 = vmatmul.mubr.bf16.gmra.mrb[0].mxu0 %v951
      %v1202 = vpop.f32.mrb[0].mxu0
      %v1203 = vadd.f32 0.0, %v1202
      %v1204 = vpop.f32.mrb[0].mxu0
      %v1205 = vpop.f32.mrb[0].mxu0
      %v1206 = vadd.f32 0.0, %v1205
      %v1207 = vpop.f32.mrb[0].mxu0
      %1208 = vmatprep.mubr.bf16.mxu0 0
      %1209 = vmatmul.mubr.bf16.gmra.mrb[0].mxu0 %v952
      %v1210 = vpop.f32.mrb[0].mxu0
      %v1211 = vadd.f32 0.0, %v1210
      %v1212 = vpop.f32.mrb[0].mxu0
      %v1213 = vpop.f32.mrb[0].mxu0
      %v1214 = vadd.f32 0.0, %v1213
      %v1215 = vpop.f32.mrb[0].mxu0
      %1216 = vmatprep.mubr.bf16.mxu0 0
      %1217 = vmatmul.mubr.bf16.gmra.mrb[0].mxu0 %v953
      %v1218 = vpop.f32.mrb[0].mxu0
      %v1219 = vadd.f32 0.0, %v1218
      %v1220 = vpop.f32.mrb[0].mxu0
      %v1221 = vpop.f32.mrb[0].mxu0
      %v1222 = vadd.f32 0.0, %v1221
      %v1223 = vpop.f32.mrb[0].mxu0
      %1224 = vmatprep.mubr.bf16.mxu0 0
      %1225 = vmatmul.mubr.bf16.gmra.mrb[0].mxu0 %v954
      %v1226 = vpop.f32.mrb[0].mxu0
      %v1227 = vadd.f32 0.0, %v1226
      %v1228 = vpop.f32.mrb[0].mxu0
      %v1229 = vpop.f32.mrb[0].mxu0
      %v1230 = vadd.f32 0.0, %v1229
      %v1231 = vpop.f32.mrb[0].mxu0
      %1232 = vmatprep.mubr.bf16.mxu0 0
      %1233 = vmatmul.mubr.bf16.gmra.mrb[0].mxu0 %v955
      %v1234 = vpop.f32.mrb[0].mxu0
      %v1235 = vadd.f32 0.0, %v1234
      %v1236 = vpop.f32.mrb[0].mxu0
      %v1237 = vpop.f32.mrb[0].mxu0
      %v1238 = vadd.f32 0.0, %v1237
      %v1239 = vpop.f32.mrb[0].mxu0
      %1240 = vmatprep.mubr.bf16.mxu0 0
      %1241 = vmatmul.mubr.bf16.gmra.mrb[0].mxu0 %v956
      %v1242 = vpop.f32.mrb[0].mxu0
      %v1243 = vadd.f32 0.0, %v1242
      %v1244 = vpop.f32.mrb[0].mxu0
      %v1245 = vpop.f32.mrb[0].mxu0
      %v1246 = vadd.f32 0.0, %v1245
      %v1247 = vpop.f32.mrb[0].mxu0
      %1248 = vmatprep.mubr.bf16.mxu0 0
      %1249 = vmatmul.mubr.bf16.gmra.mrb[0].mxu0 %v957
      %v1250 = vpop.f32.mrb[0].mxu0
      %v1251 = vadd.f32 0.0, %v1250
      %v1252 = vpop.f32.mrb[0].mxu0
      %v1253 = vpop.f32.mrb[0].mxu0
      %v1254 = vadd.f32 0.0, %v1253
      %v1255 = vpop.f32.mrb[0].mxu0
      %1256 = vmatprep.mubr.bf16.mxu0 0
      %1257 = vmatmul.mubr.bf16.gmra.mrb[0].mxu0 %v958
      %v1258 = vpop.f32.mrb[0].mxu0
      %v1259 = vadd.f32 0.0, %v1258
      %v1260 = vpop.f32.mrb[0].mxu0
      %v1261 = vpop.f32.mrb[0].mxu0
      %v1262 = vadd.f32 0.0, %v1261
      %v1263 = vpop.f32.mrb[0].mxu0
      %1264 = vmatprep.mubr.bf16.mxu0 0
      %1265 = vmatmul.mubr.bf16.gmra.mrb[0].mxu0 %v959
      %v1266 = vpop.f32.mrb[0].mxu0
      %v1267 = vadd.f32 0.0, %v1266
      %v1268 = vpop.f32.mrb[0].mxu0
      %v1269 = vpop.f32.mrb[0].mxu0
      %v1270 = vadd.f32 0.0, %v1269
      %v1271 = vpop.f32.mrb[0].mxu0
      %1272 = vmatprep.mubr.bf16.mxu0 0
      %1273 = vmatmul.mubr.bf16.gmra.mrb[0].mxu0 %v960
      %v1274 = vpop.f32.mrb[0].mxu0
      %v1275 = vadd.f32 0.0, %v1274
      %v1276 = vpop.f32.mrb[0].mxu0
      %v1277 = vpop.f32.mrb[0].mxu0
      %v1278 = vadd.f32 0.0, %v1277
      %v1279 = vpop.f32.mrb[0].mxu0
      %1280 = vmatprep.mubr.bf16.mxu0 0
      %1281 = vmatmul.mubr.bf16.gmra.mrb[0].mxu0 %v961
      %v1282 = vpop.f32.mrb[0].mxu0
      %v1283 = vadd.f32 0.0, %v1282
      %v1284 = vpop.f32.mrb[0].mxu0
      %v1285 = vpop.f32.mrb[0].mxu0
      %v1286 = vadd.f32 0.0, %v1285
      %v1287 = vpop.f32.mrb[0].mxu0
      %1288 = vmatprep.mubr.bf16.mxu0 0
      %1289 = vmatmul.mubr.bf16.gmra.mrb[0].mxu0 %v962
      %v1290 = vpop.f32.mrb[0].mxu0
      %v1291 = vadd.f32 0.0, %v1290
      %v1292 = vpop.f32.mrb[0].mxu0
      %v1293 = vpop.f32.mrb[0].mxu0
      %v1294 = vadd.f32 0.0, %v1293
      %v1295 = vpop.f32.mrb[0].mxu0
      %1296 = vmatprep.mubr.bf16.mxu0 0
      %1297 = vmatmul.mubr.bf16.gmra.mrb[0].mxu0 %v963
      %v1298 = vpop.f32.mrb[0].mxu0
      %v1299 = vadd.f32 0.0, %v1298
      %v1300 = vpop.f32.mrb[0].mxu0
      %v1301 = vpop.f32.mrb[0].mxu0
      %v1302 = vadd.f32 0.0, %v1301
      %v1303 = vpop.f32.mrb[0].mxu0
      %1304 = vmatprep.mubr.bf16.mxu0 0
      %1305 = vmatmul.mubr.bf16.gmra.mrb[0].mxu0 %v964
      %v1306 = vpop.f32.mrb[0].mxu0
      %v1307 = vadd.f32 0.0, %v1306
      %v1308 = vpop.f32.mrb[0].mxu0
      %v1309 = vpop.f32.mrb[0].mxu0
      %v1310 = vadd.f32 0.0, %v1309
      %v1311 = vpop.f32.mrb[0].mxu0
      %1312 = vmatprep.mubr.bf16.mxu0 0
      %1313 = vmatmul.mubr.bf16.gmra.mrb[0].mxu0 %v965
      %v1314 = vpop.f32.mrb[0].mxu0
      %v1315 = vadd.f32 0.0, %v1314
      %v1316 = vpop.f32.mrb[0].mxu0
      %v1317 = vpop.f32.mrb[0].mxu0
      %v1318 = vadd.f32 0.0, %v1317
      %v1319 = vpop.f32.mrb[0].mxu0
      %1320 = vmatprep.mubr.bf16.mxu0 0
      %1321 = vmatmul.mubr.bf16.gmra.mrb[0].mxu0 %v966
      %v1322 = vpop.f32.mrb[0].mxu0
      %v1323 = vadd.f32 0.0, %v1322
      %v1324 = vpop.f32.mrb[0].mxu0
      %v1325 = vpop.f32.mrb[0].mxu0
      %v1326 = vadd.f32 0.0, %v1325
      %v1327 = vpop.f32.mrb[0].mxu0
      %1328 = vmatprep.mubr.bf16.mxu0 0
      %1329 = vmatmul.mubr.bf16.gmra.mrb[0].mxu0 %v967
      %v1330 = vpop.f32.mrb[0].mxu0
      %v1331 = vadd.f32 0.0, %v1330
      %v1332 = vpop.f32.mrb[0].mxu0
      %v1333 = vpop.f32.mrb[0].mxu0
      %v1334 = vadd.f32 0.0, %v1333
      %v1335 = vpop.f32.mrb[0].mxu0
      %1336 = vdwg.mxu0
      %v1337 = vadd.f32 %v728, %v1083
      %v1338 = vadd.f32 %v729, %v1086
      %v1339 = vadd.f32 %v730, %v1091
      %v1340 = vadd.f32 %v731, %v1094
      %v1341 = vadd.f32 %v732, %v1099
      %v1342 = vadd.f32 %v733, %v1102
      %v1343 = vadd.f32 %v734, %v1107
      %v1344 = vadd.f32 %v735, %v1110
      %v1345 = vadd.f32 %v736, %v1115
      %v1346 = vadd.f32 %v737, %v1118
      %v1347 = vadd.f32 %v738, %v1123
      %v1348 = vadd.f32 %v739, %v1126
      %v1349 = vadd.f32 %v740, %v1131
      %v1350 = vadd.f32 %v741, %v1134
      %v1351 = vadd.f32 %v742, %v1139
      %v1352 = vadd.f32 %v743, %v1142
      %v1353 = vadd.f32 %v744, %v1147
      %v1354 = vadd.f32 %v745, %v1150
      %v1355 = vadd.f32 %v746, %v1155
      %v1356 = vadd.f32 %v747, %v1158
      %v1357 = vadd.f32 %v748, %v1163
      %v1358 = vadd.f32 %v749, %v1166
      %v1359 = vadd.f32 %v750, %v1171
      %v1360 = vadd.f32 %v751, %v1174
      %v1361 = vadd.f32 %v752, %v1179
      %v1362 = vadd.f32 %v753, %v1182
      %v1363 = vadd.f32 %v754, %v1187
      %v1364 = vadd.f32 %v755, %v1190
      %v1365 = vadd.f32 %v756, %v1195
      %v1366 = vadd.f32 %v757, %v1198
      %v1367 = vadd.f32 %v758, %v1203
      %v1368 = vadd.f32 %v759, %v1206
      %v1369 = vadd.f32 %v760, %v1211
      %v1370 = vadd.f32 %v761, %v1214
      %v1371 = vadd.f32 %v762, %v1219
      %v1372 = vadd.f32 %v763, %v1222
      %v1373 = vadd.f32 %v764, %v1227
      %v1374 = vadd.f32 %v765, %v1230
      %v1375 = vadd.f32 %v766, %v1235
      %v1376 = vadd.f32 %v767, %v1238
      %v1377 = vadd.f32 %v768, %v1243
      %v1378 = vadd.f32 %v769, %v1246
      %v1379 = vadd.f32 %v770, %v1251
      %v1380 = vadd.f32 %v771, %v1254
      %v1381 = vadd.f32 %v772, %v1259
      %v1382 = vadd.f32 %v773, %v1262
      %v1383 = vadd.f32 %v774, %v1267
      %v1384 = vadd.f32 %v775, %v1270
      %v1385 = vadd.f32 %v776, %v1275
      %v1386 = vadd.f32 %v777, %v1278
      %v1387 = vadd.f32 %v778, %v1283
      %v1388 = vadd.f32 %v779, %v1286
      %v1389 = vadd.f32 %v780, %v1291
      %v1390 = vadd.f32 %v781, %v1294
      %v1391 = vadd.f32 %v782, %v1299
      %v1392 = vadd.f32 %v783, %v1302
      %v1393 = vadd.f32 %v784, %v1307
      %v1394 = vadd.f32 %v785, %v1310
      %v1395 = vadd.f32 %v786, %v1315
      %v1396 = vadd.f32 %v787, %v1318
      %v1397 = vadd.f32 %v788, %v1323
      %v1398 = vadd.f32 %v789, %v1326
      %v1399 = vadd.f32 %v790, %v1331
      %v1400 = vadd.f32 %v791, %v1334
      %1401 = vst [vmem:[#allocation2] sm:$0xff] %v1337
      %1402 = vst [vmem:[#allocation2 + $0x8] sm:$0xff] %v1338
      %1403 = vst [vmem:[#allocation2 + $0x10] sm:$0xff] %v1339
      %1404 = vst [vmem:[#allocation2 + $0x18] sm:$0xff] %v1340
      %1405 = vst [vmem:[#allocation2 + $0x20] sm:$0xff] %v1341
      %1406 = vst [vmem:[#allocation2 + $0x28] sm:$0xff] %v1342
      %1407 = vst [vmem:[#allocation2 + $0x30] sm:$0xff] %v1343
      %1408 = vst [vmem:[#allocation2 + $0x38] sm:$0xff] %v1344
      %1409 = vst [vmem:[#allocation2 + $0x40] sm:$0xff] %v1345
      %1410 = vst [vmem:[#allocation2 + $0x48] sm:$0xff] %v1346
      %1411 = vst [vmem:[#allocation2 + $0x50] sm:$0xff] %v1347
      %1412 = vst [vmem:[#allocation2 + $0x58] sm:$0xff] %v1348
      %1413 = vst [vmem:[#allocation2 + $0x60] sm:$0xff] %v1349
      %1414 = vst [vmem:[#allocation2 + $0x68] sm:$0xff] %v1350
      %1415 = vst [vmem:[#allocation2 + $0x70] sm:$0xff] %v1351
      %1416 = vst [vmem:[#allocation2 + $0x78] sm:$0xff] %v1352
      %1417 = vst [vmem:[#allocation2 + $0x80] sm:$0xff] %v1353
      %1418 = vst [vmem:[#allocation2 + $0x88] sm:$0xff] %v1354
      %1419 = vst [vmem:[#allocation2 + $0x90] sm:$0xff] %v1355
      %1420 = vst [vmem:[#allocation2 + $0x98] sm:$0xff] %v1356
      %1421 = vst [vmem:[#allocation2 + $0xa0] sm:$0xff] %v1357
      %1422 = vst [vmem:[#allocation2 + $0xa8] sm:$0xff] %v1358
      %1423 = vst [vmem:[#allocation2 + $0xb0] sm:$0xff] %v1359
      %1424 = vst [vmem:[#allocation2 + $0xb8] sm:$0xff] %v1360
      %1425 = vst [vmem:[#allocation2 + $0xc0] sm:$0xff] %v1361
      %1426 = vst [vmem:[#allocation2 + $0xc8] sm:$0xff] %v1362
      %1427 = vst [vmem:[#allocation2 + $0xd0] sm:$0xff] %v1363
      %1428 = vst [vmem:[#allocation2 + $0xd8] sm:$0xff] %v1364
      %1429 = vst [vmem:[#allocation2 + $0xe0] sm:$0xff] %v1365
      %1430 = vst [vmem:[#allocation2 + $0xe8] sm:$0xff] %v1366
      %1431 = vst [vmem:[#allocation2 + $0xf0] sm:$0xff] %v1367
      %1432 = vst [vmem:[#allocation2 + $0xf8] sm:$0xff] %v1368
      %1433 = vst [vmem:[#allocation2 + $0x100] sm:$0xff] %v1369
      %1434 = vst [vmem:[#allocation2 + $0x108] sm:$0xff] %v1370
      %1435 = vst [vmem:[#allocation2 + $0x110] sm:$0xff] %v1371
      %1436 = vst [vmem:[#allocation2 + $0x118] sm:$0xff] %v1372
      %1437 = vst [vmem:[#allocation2 + $0x120] sm:$0xff] %v1373
      %1438 = vst [vmem:[#allocation2 + $0x128] sm:$0xff] %v1374
      %1439 = vst [vmem:[#allocation2 + $0x130] sm:$0xff] %v1375
      %1440 = vst [vmem:[#allocation2 + $0x138] sm:$0xff] %v1376
      %1441 = vst [vmem:[#allocation2 + $0x140] sm:$0xff] %v1377
      %1442 = vst [vmem:[#allocation2 + $0x148] sm:$0xff] %v1378
      %1443 = vst [vmem:[#allocation2 + $0x150] sm:$0xff] %v1379
      %1444 = vst [vmem:[#allocation2 + $0x158] sm:$0xff] %v1380
      %1445 = vst [vmem:[#allocation2 + $0x160] sm:$0xff] %v1381
      %1446 = vst [vmem:[#allocation2 + $0x168] sm:$0xff] %v1382
      %1447 = vst [vmem:[#allocation2 + $0x170] sm:$0xff] %v1383
      %1448 = vst [vmem:[#allocation2 + $0x178] sm:$0xff] %v1384
      %1449 = vst [vmem:[#allocation2 + $0x180] sm:$0xff] %v1385
      %1450 = vst [vmem:[#allocation2 + $0x188] sm:$0xff] %v1386
      %1451 = vst [vmem:[#allocation2 + $0x190] sm:$0xff] %v1387
      %1452 = vst [vmem:[#allocation2 + $0x198] sm:$0xff] %v1388
      %1453 = vst [vmem:[#allocation2 + $0x1a0] sm:$0xff] %v1389
      %1454 = vst [vmem:[#allocation2 + $0x1a8] sm:$0xff] %v1390
      %1455 = vst [vmem:[#allocation2 + $0x1b0] sm:$0xff] %v1391
      %1456 = vst [vmem:[#allocation2 + $0x1b8] sm:$0xff] %v1392
      %1457 = vst [vmem:[#allocation2 + $0x1c0] sm:$0xff] %v1393
      %1458 = vst [vmem:[#allocation2 + $0x1c8] sm:$0xff] %v1394
      %1459 = vst [vmem:[#allocation2 + $0x1d0] sm:$0xff] %v1395
      %1460 = vst [vmem:[#allocation2 + $0x1d8] sm:$0xff] %v1396
      %1461 = vst [vmem:[#allocation2 + $0x1e0] sm:$0xff] %v1397
      %1462 = vst [vmem:[#allocation2 + $0x1e8] sm:$0xff] %v1398
      %1463 = vst [vmem:[#allocation2 + $0x1f0] sm:$0xff] %v1399
      %1464 = vst [vmem:[#allocation2 + $0x1f8] sm:$0xff] %v1400
      %v1465 = vld [vmem:[#allocation3] sm:$0xff]
      %v1466 = vld [vmem:[#allocation3 + $0x8] sm:$0xff]
      %v1467 = vld [vmem:[#allocation3 + $0x10] sm:$0xff]
      %v1468 = vld [vmem:[#allocation3 + $0x18] sm:$0xff]
      %v1469 = vld [vmem:[#allocation3 + $0x20] sm:$0xff]
      %v1470 = vld [vmem:[#allocation3 + $0x28] sm:$0xff]
      %v1471 = vld [vmem:[#allocation3 + $0x30] sm:$0xff]
      %v1472 = vld [vmem:[#allocation3 + $0x38] sm:$0xff]
      %v1473 = vld [vmem:[#allocation3 + $0x40] sm:$0xff]
      %v1474 = vld [vmem:[#allocation3 + $0x48] sm:$0xff]
      %v1475 = vld [vmem:[#allocation3 + $0x50] sm:$0xff]
      %v1476 = vld [vmem:[#allocation3 + $0x58] sm:$0xff]
      %v1477 = vld [vmem:[#allocation3 + $0x60] sm:$0xff]
      %v1478 = vld [vmem:[#allocation3 + $0x68] sm:$0xff]
      %v1479 = vld [vmem:[#allocation3 + $0x70] sm:$0xff]
      %v1480 = vld [vmem:[#allocation3 + $0x78] sm:$0xff]
      %v1481 = vld [vmem:[#allocation3 + $0x80] sm:$0xff]
      %v1482 = vld [vmem:[#allocation3 + $0x88] sm:$0xff]
      %v1483 = vld [vmem:[#allocation3 + $0x90] sm:$0xff]
      %v1484 = vld [vmem:[#allocation3 + $0x98] sm:$0xff]
      %v1485 = vld [vmem:[#allocation3 + $0xa0] sm:$0xff]
      %v1486 = vld [vmem:[#allocation3 + $0xa8] sm:$0xff]
      %v1487 = vld [vmem:[#allocation3 + $0xb0] sm:$0xff]
      %v1488 = vld [vmem:[#allocation3 + $0xb8] sm:$0xff]
      %v1489 = vld [vmem:[#allocation3 + $0xc0] sm:$0xff]
      %v1490 = vld [vmem:[#allocation3 + $0xc8] sm:$0xff]
      %v1491 = vld [vmem:[#allocation3 + $0xd0] sm:$0xff]
      %v1492 = vld [vmem:[#allocation3 + $0xd8] sm:$0xff]
      %v1493 = vld [vmem:[#allocation3 + $0xe0] sm:$0xff]
      %v1494 = vld [vmem:[#allocation3 + $0xe8] sm:$0xff]
      %v1495 = vld [vmem:[#allocation3 + $0xf0] sm:$0xff]
      %v1496 = vld [vmem:[#allocation3 + $0xf8] sm:$0xff]
      %v1497 = vld [vmem:[#allocation3 + $0x100] sm:$0xff]
      %v1498 = vld [vmem:[#allocation3 + $0x108] sm:$0xff]
      %v1499 = vld [vmem:[#allocation3 + $0x110] sm:$0xff]
      %v1500 = vld [vmem:[#allocation3 + $0x118] sm:$0xff]
      %v1501 = vld [vmem:[#allocation3 + $0x120] sm:$0xff]
      %v1502 = vld [vmem:[#allocation3 + $0x128] sm:$0xff]
      %v1503 = vld [vmem:[#allocation3 + $0x130] sm:$0xff]
      %v1504 = vld [vmem:[#allocation3 + $0x138] sm:$0xff]
      %v1505 = vld [vmem:[#allocation3 + $0x140] sm:$0xff]
      %v1506 = vld [vmem:[#allocation3 + $0x148] sm:$0xff]
      %v1507 = vld [vmem:[#allocation3 + $0x150] sm:$0xff]
      %v1508 = vld [vmem:[#allocation3 + $0x158] sm:$0xff]
      %v1509 = vld [vmem:[#allocation3 + $0x160] sm:$0xff]
      %v1510 = vld [vmem:[#allocation3 + $0x168] sm:$0xff]
      %v1511 = vld [vmem:[#allocation3 + $0x170] sm:$0xff]
      %v1512 = vld [vmem:[#allocation3 + $0x178] sm:$0xff]
      %v1513 = vld [vmem:[#allocation3 + $0x180] sm:$0xff]
      %v1514 = vld [vmem:[#allocation3 + $0x188] sm:$0xff]
      %v1515 = vld [vmem:[#allocation3 + $0x190] sm:$0xff]
      %v1516 = vld [vmem:[#allocation3 + $0x198] sm:$0xff]
      %v1517 = vld [vmem:[#allocation3 + $0x1a0] sm:$0xff]
      %v1518 = vld [vmem:[#allocation3 + $0x1a8] sm:$0xff]
      %v1519 = vld [vmem:[#allocation3 + $0x1b0] sm:$0xff]
      %v1520 = vld [vmem:[#allocation3 + $0x1b8] sm:$0xff]
      %v1521 = vld [vmem:[#allocation3 + $0x1c0] sm:$0xff]
      %v1522 = vld [vmem:[#allocation3 + $0x1c8] sm:$0xff]
      %v1523 = vld [vmem:[#allocation3 + $0x1d0] sm:$0xff]
      %v1524 = vld [vmem:[#allocation3 + $0x1d8] sm:$0xff]
      %v1525 = vld [vmem:[#allocation3 + $0x1e0] sm:$0xff]
      %v1526 = vld [vmem:[#allocation3 + $0x1e8] sm:$0xff]
      %v1527 = vld [vmem:[#allocation3 + $0x1f0] sm:$0xff]
      %v1528 = vld [vmem:[#allocation3 + $0x1f8] sm:$0xff]
      %v1529 = vmul.bf16 %v664, %v664
      %v1530 = vmul.bf16 %v665, %v665
      %v1531 = vmul.bf16 %v666, %v666
      %v1532 = vmul.bf16 %v667, %v667
      %v1533 = vmul.bf16 %v668, %v668
      %v1534 = vmul.bf16 %v669, %v669
      %v1535 = vmul.bf16 %v670, %v670
      %v1536 = vmul.bf16 %v671, %v671
      %v1537 = vmul.bf16 %v672, %v672
      %v1538 = vmul.bf16 %v673, %v673
      %v1539 = vmul.bf16 %v674, %v674
      %v1540 = vmul.bf16 %v675, %v675
      %v1541 = vmul.bf16 %v676, %v676
      %v1542 = vmul.bf16 %v677, %v677
      %v1543 = vmul.bf16 %v678, %v678
      %v1544 = vmul.bf16 %v679, %v679
      %v1545 = vmul.bf16 %v680, %v680
      %v1546 = vmul.bf16 %v681, %v681
      %v1547 = vmul.bf16 %v682, %v682
      %v1548 = vmul.bf16 %v683, %v683
      %v1549 = vmul.bf16 %v684, %v684
      %v1550 = vmul.bf16 %v685, %v685
      %v1551 = vmul.bf16 %v686, %v686
      %v1552 = vmul.bf16 %v687, %v687
      %v1553 = vmul.bf16 %v688, %v688
      %v1554 = vmul.bf16 %v689, %v689
      %v1555 = vmul.bf16 %v690, %v690
      %v1556 = vmul.bf16 %v691, %v691
      %v1557 = vmul.bf16 %v692, %v692
      %v1558 = vmul.bf16 %v693, %v693
      %v1559 = vmul.bf16 %v694, %v694
      %v1560 = vmul.bf16 %v695, %v695
      %v1561 = vmul.bf16 %v696, %v696
      %v1562 = vmul.bf16 %v697, %v697
      %v1563 = vmul.bf16 %v698, %v698
      %v1564 = vmul.bf16 %v699, %v699
      %v1565 = vmul.bf16 %v700, %v700
      %v1566 = vmul.bf16 %v701, %v701
      %v1567 = vmul.bf16 %v702, %v702
      %v1568 = vmul.bf16 %v703, %v703
      %v1569 = vmul.bf16 %v704, %v704
      %v1570 = vmul.bf16 %v705, %v705
      %v1571 = vmul.bf16 %v706, %v706
      %v1572 = vmul.bf16 %v707, %v707
      %v1573 = vmul.bf16 %v708, %v708
      %v1574 = vmul.bf16 %v709, %v709
      %v1575 = vmul.bf16 %v710, %v710
      %v1576 = vmul.bf16 %v711, %v711
      %v1577 = vmul.bf16 %v712, %v712
      %v1578 = vmul.bf16 %v713, %v713
      %v1579 = vmul.bf16 %v714, %v714
      %v1580 = vmul.bf16 %v715, %v715
      %v1581 = vmul.bf16 %v716, %v716
      %v1582 = vmul.bf16 %v717, %v717
      %v1583 = vmul.bf16 %v718, %v718
      %v1584 = vmul.bf16 %v719, %v719
      %v1585 = vmul.bf16 %v720, %v720
      %v1586 = vmul.bf16 %v721, %v721
      %v1587 = vmul.bf16 %v722, %v722
      %v1588 = vmul.bf16 %v723, %v723
      %v1589 = vmul.bf16 %v724, %v724
      %v1590 = vmul.bf16 %v725, %v725
      %v1591 = vmul.bf16 %v726, %v726
      %v1592 = vmul.bf16 %v727, %v727
      %v1593 = vld [vmem:[%s477] sm:$0xf]
      %v1594 = vld [vmem:[%s477 + $0x4] sm:$0xf]
      %v1595 = vld [vmem:[%s477 + $0x8] sm:$0xf]
      %v1596 = vld [vmem:[%s477 + $0xc] sm:$0xf]
      %v1597 = vld [vmem:[%s477 + $0x10] sm:$0xf]
      %v1598 = vld [vmem:[%s477 + $0x14] sm:$0xf]
      %v1599 = vld [vmem:[%s477 + $0x18] sm:$0xf]
      %v1600 = vld [vmem:[%s477 + $0x1c] sm:$0xf]
      %v1601 = vld [vmem:[%s477 + $0x20] sm:$0xf]
      %v1602 = vld [vmem:[%s477 + $0x24] sm:$0xf]
      %v1603 = vld [vmem:[%s477 + $0x28] sm:$0xf]
      %v1604 = vld [vmem:[%s477 + $0x2c] sm:$0xf]
      %v1605 = vld [vmem:[%s477 + $0x30] sm:$0xf]
      %v1606 = vld [vmem:[%s477 + $0x34] sm:$0xf]
      %v1607 = vld [vmem:[%s477 + $0x38] sm:$0xf]
      %v1608 = vld [vmem:[%s477 + $0x3c] sm:$0xf]
      %v1673 = vunpack.c.l.b16 %v1529
      %v1674 = vunpack.c.l.b16 %v1530
      %v1675 = vunpack.c.l.b16 %v1531
      %v1676 = vunpack.c.l.b16 %v1532
      %v1677 = vunpack.c.l.b16 %v1533
      %v1678 = vunpack.c.l.b16 %v1534
      %v1679 = vunpack.c.l.b16 %v1535
      %v1680 = vunpack.c.l.b16 %v1536
      %v1681 = vunpack.c.l.b16 %v1537
      %v1682 = vunpack.c.l.b16 %v1538
      %v1683 = vunpack.c.l.b16 %v1539
      %v1684 = vunpack.c.l.b16 %v1540
      %v1685 = vunpack.c.l.b16 %v1541
      %v1686 = vunpack.c.l.b16 %v1542
      %v1687 = vunpack.c.l.b16 %v1543
      %v1688 = vunpack.c.l.b16 %v1544
      %v1689 = vunpack.c.l.b16 %v1545
      %v1690 = vunpack.c.l.b16 %v1546
      %v1691 = vunpack.c.l.b16 %v1547
      %v1692 = vunpack.c.l.b16 %v1548
      %v1693 = vunpack.c.l.b16 %v1549
      %v1694 = vunpack.c.l.b16 %v1550
      %v1695 = vunpack.c.l.b16 %v1551
      %v1696 = vunpack.c.l.b16 %v1552
      %v1697 = vunpack.c.l.b16 %v1553
      %v1698 = vunpack.c.l.b16 %v1554
      %v1699 = vunpack.c.l.b16 %v1555
      %v1700 = vunpack.c.l.b16 %v1556
      %v1701 = vunpack.c.l.b16 %v1557
      %v1702 = vunpack.c.l.b16 %v1558
      %v1703 = vunpack.c.l.b16 %v1559
      %v1704 = vunpack.c.l.b16 %v1560
      %v1705 = vunpack.c.l.b16 %v1561
      %v1706 = vunpack.c.l.b16 %v1562
      %v1707 = vunpack.c.l.b16 %v1563
      %v1708 = vunpack.c.l.b16 %v1564
      %v1709 = vunpack.c.l.b16 %v1565
      %v1710 = vunpack.c.l.b16 %v1566
      %v1711 = vunpack.c.l.b16 %v1567
      %v1712 = vunpack.c.l.b16 %v1568
      %v1713 = vunpack.c.l.b16 %v1569
      %v1714 = vunpack.c.l.b16 %v1570
      %v1715 = vunpack.c.l.b16 %v1571
      %v1716 = vunpack.c.l.b16 %v1572
      %v1717 = vunpack.c.l.b16 %v1573
      %v1718 = vunpack.c.l.b16 %v1574
      %v1719 = vunpack.c.l.b16 %v1575
      %v1720 = vunpack.c.l.b16 %v1576
      %v1721 = vunpack.c.l.b16 %v1577
      %v1722 = vunpack.c.l.b16 %v1578
      %v1723 = vunpack.c.l.b16 %v1579
      %v1724 = vunpack.c.l.b16 %v1580
      %v1725 = vunpack.c.l.b16 %v1581
      %v1726 = vunpack.c.l.b16 %v1582
      %v1727 = vunpack.c.l.b16 %v1583
      %v1728 = vunpack.c.l.b16 %v1584
      %v1729 = vunpack.c.l.b16 %v1585
      %v1730 = vunpack.c.l.b16 %v1586
      %v1731 = vunpack.c.l.b16 %v1587
      %v1732 = vunpack.c.l.b16 %v1588
      %v1733 = vunpack.c.l.b16 %v1589
      %v1734 = vunpack.c.l.b16 %v1590
      %v1735 = vunpack.c.l.b16 %v1591
      %v1736 = vunpack.c.l.b16 %v1592
      %v1737 = vpack.c.b16 %v1674, %v1673
      %v1738 = vpack.c.b16 %v1676, %v1675
      %v1739 = vpack.c.b16 %v1678, %v1677
      %v1740 = vpack.c.b16 %v1680, %v1679
      %v1741 = vpack.c.b16 %v1682, %v1681
      %v1742 = vpack.c.b16 %v1684, %v1683
      %v1743 = vpack.c.b16 %v1686, %v1685
      %v1744 = vpack.c.b16 %v1688, %v1687
      %v1745 = vpack.c.b16 %v1690, %v1689
      %v1746 = vpack.c.b16 %v1692, %v1691
      %v1747 = vpack.c.b16 %v1694, %v1693
      %v1748 = vpack.c.b16 %v1696, %v1695
      %v1749 = vpack.c.b16 %v1698, %v1697
      %v1750 = vpack.c.b16 %v1700, %v1699
      %v1751 = vpack.c.b16 %v1702, %v1701
      %v1752 = vpack.c.b16 %v1704, %v1703
      %v1753 = vpack.c.b16 %v1706, %v1705
      %v1754 = vpack.c.b16 %v1708, %v1707
      %v1755 = vpack.c.b16 %v1710, %v1709
      %v1756 = vpack.c.b16 %v1712, %v1711
      %v1757 = vpack.c.b16 %v1714, %v1713
      %v1758 = vpack.c.b16 %v1716, %v1715
      %v1759 = vpack.c.b16 %v1718, %v1717
      %v1760 = vpack.c.b16 %v1720, %v1719
      %v1761 = vpack.c.b16 %v1722, %v1721
      %v1762 = vpack.c.b16 %v1724, %v1723
      %v1763 = vpack.c.b16 %v1726, %v1725
      %v1764 = vpack.c.b16 %v1728, %v1727
      %v1765 = vpack.c.b16 %v1730, %v1729
      %v1766 = vpack.c.b16 %v1732, %v1731
      %v1767 = vpack.c.b16 %v1734, %v1733
      %v1768 = vpack.c.b16 %v1736, %v1735
      %v1817 = vunpack.c.l.b16 %v1593
      %v1818 = vunpack.c.l.b16 %v1594
      %v1819 = vunpack.c.l.b16 %v1595
      %v1820 = vunpack.c.l.b16 %v1596
      %v1821 = vunpack.c.l.b16 %v1597
      %v1822 = vunpack.c.l.b16 %v1598
      %v1823 = vunpack.c.l.b16 %v1599
      %v1824 = vunpack.c.l.b16 %v1600
      %v1825 = vunpack.c.l.b16 %v1601
      %v1826 = vunpack.c.l.b16 %v1602
      %v1827 = vunpack.c.l.b16 %v1603
      %v1828 = vunpack.c.l.b16 %v1604
      %v1829 = vunpack.c.l.b16 %v1605
      %v1830 = vunpack.c.l.b16 %v1606
      %v1831 = vunpack.c.l.b16 %v1607
      %v1832 = vunpack.c.l.b16 %v1608
      %v1833 = vpack.c.b16 %v1818, %v1817
      %v1834 = vpack.c.b16 %v1820, %v1819
      %v1835 = vpack.c.b16 %v1822, %v1821
      %v1836 = vpack.c.b16 %v1824, %v1823
      %v1837 = vpack.c.b16 %v1826, %v1825
      %v1838 = vpack.c.b16 %v1828, %v1827
      %v1839 = vpack.c.b16 %v1830, %v1829
      %v1840 = vpack.c.b16 %v1832, %v1831
      %1849 = vmatprep.subr.bf16.mxu0 0
      %1850 = vmatpush1.bf16.msra.mxu0 %v1833
      %1851 = vmatprep.subr.bf16.mxu0 0
      %1852 = vmatpush1.bf16.msra.mxu0 %v1834
      %1853 = vmatprep.subr.bf16.mxu0 0
      %1854 = vmatpush1.bf16.msra.mxu0 %v1835
      %1855 = vmatprep.subr.bf16.mxu0 0
      %1856 = vmatpush1.bf16.msra.mxu0 %v1836
      %1857 = vmatprep.subr.bf16.mxu0 0
      %1858 = vmatpush1.bf16.msra.mxu0 %v1837
      %1859 = vmatprep.subr.bf16.mxu0 0
      %1860 = vmatpush1.bf16.msra.mxu0 %v1838
      %1861 = vmatprep.subr.bf16.mxu0 0
      %1862 = vmatpush1.bf16.msra.mxu0 %v1839
      %1863 = vmatprep.subr.bf16.mxu0 0
      %1864 = vmatpush1.bf16.msra.mxu0 %v1840
      %1865 = vmatprep.subr.bf16.mxu0 0
      %1866 = vmatpush1.bf16.msra.mxu0 0
      %1867 = vmatprep.subr.bf16.mxu0 0
      %1868 = vmatpush1.bf16.msra.mxu0 0
      %1869 = vmatprep.subr.bf16.mxu0 0
      %1870 = vmatpush1.bf16.msra.mxu0 0
      %1871 = vmatprep.subr.bf16.mxu0 0
      %1872 = vmatpush1.bf16.msra.mxu0 0
      %1873 = vmatprep.subr.bf16.mxu0 0
      %1874 = vmatpush1.bf16.msra.mxu0 0
      %1875 = vmatprep.subr.bf16.mxu0 0
      %1876 = vmatpush1.bf16.msra.mxu0 0
      %1877 = vmatprep.subr.bf16.mxu0 0
      %1878 = vmatpush1.bf16.msra.mxu0 0
      %1879 = vmatprep.subr.bf16.mxu0 0
      %1880 = vmatpush1.bf16.msra.mxu0 0
      %1881 = vmatprep.mubr.bf16.mxu0 0
      %1882 = vmatmul.mubr.bf16.gmra.mrb[0].mxu0 %v1737
      %v1883 = vpop.f32.mrb[0].mxu0
      %v1884 = vadd.f32 0.0, %v1883
      %v1885 = vpop.f32.mrb[0].mxu0
      %v1886 = vpop.f32.mrb[0].mxu0
      %v1887 = vadd.f32 0.0, %v1886
      %v1888 = vpop.f32.mrb[0].mxu0
      %1889 = vmatprep.mubr.bf16.mxu0 0
      %1890 = vmatmul.mubr.bf16.gmra.mrb[0].mxu0 %v1738
      %v1891 = vpop.f32.mrb[0].mxu0
      %v1892 = vadd.f32 0.0, %v1891
      %v1893 = vpop.f32.mrb[0].mxu0
      %v1894 = vpop.f32.mrb[0].mxu0
      %v1895 = vadd.f32 0.0, %v1894
      %v1896 = vpop.f32.mrb[0].mxu0
      %1897 = vmatprep.mubr.bf16.mxu0 0
      %1898 = vmatmul.mubr.bf16.gmra.mrb[0].mxu0 %v1739
      %v1899 = vpop.f32.mrb[0].mxu0
      %v1900 = vadd.f32 0.0, %v1899
      %v1901 = vpop.f32.mrb[0].mxu0
      %v1902 = vpop.f32.mrb[0].mxu0
      %v1903 = vadd.f32 0.0, %v1902
      %v1904 = vpop.f32.mrb[0].mxu0
      %1905 = vmatprep.mubr.bf16.mxu0 0
      %1906 = vmatmul.mubr.bf16.gmra.mrb[0].mxu0 %v1740
      %v1907 = vpop.f32.mrb[0].mxu0
      %v1908 = vadd.f32 0.0, %v1907
      %v1909 = vpop.f32.mrb[0].mxu0
      %v1910 = vpop.f32.mrb[0].mxu0
      %v1911 = vadd.f32 0.0, %v1910
      %v1912 = vpop.f32.mrb[0].mxu0
      %1913 = vmatprep.mubr.bf16.mxu0 0
      %1914 = vmatmul.mubr.bf16.gmra.mrb[0].mxu0 %v1741
      %v1915 = vpop.f32.mrb[0].mxu0
      %v1916 = vadd.f32 0.0, %v1915
      %v1917 = vpop.f32.mrb[0].mxu0
      %v1918 = vpop.f32.mrb[0].mxu0
      %v1919 = vadd.f32 0.0, %v1918
      %v1920 = vpop.f32.mrb[0].mxu0
      %1921 = vmatprep.mubr.bf16.mxu0 0
      %1922 = vmatmul.mubr.bf16.gmra.mrb[0].mxu0 %v1742
      %v1923 = vpop.f32.mrb[0].mxu0
      %v1924 = vadd.f32 0.0, %v1923
      %v1925 = vpop.f32.mrb[0].mxu0
      %v1926 = vpop.f32.mrb[0].mxu0
      %v1927 = vadd.f32 0.0, %v1926
      %v1928 = vpop.f32.mrb[0].mxu0
      %1929 = vmatprep.mubr.bf16.mxu0 0
      %1930 = vmatmul.mubr.bf16.gmra.mrb[0].mxu0 %v1743
      %v1931 = vpop.f32.mrb[0].mxu0
      %v1932 = vadd.f32 0.0, %v1931
      %v1933 = vpop.f32.mrb[0].mxu0
      %v1934 = vpop.f32.mrb[0].mxu0
      %v1935 = vadd.f32 0.0, %v1934
      %v1936 = vpop.f32.mrb[0].mxu0
      %1937 = vmatprep.mubr.bf16.mxu0 0
      %1938 = vmatmul.mubr.bf16.gmra.mrb[0].mxu0 %v1744
      %v1939 = vpop.f32.mrb[0].mxu0
      %v1940 = vadd.f32 0.0, %v1939
      %v1941 = vpop.f32.mrb[0].mxu0
      %v1942 = vpop.f32.mrb[0].mxu0
      %v1943 = vadd.f32 0.0, %v1942
      %v1944 = vpop.f32.mrb[0].mxu0
      %1945 = vmatprep.mubr.bf16.mxu0 0
      %1946 = vmatmul.mubr.bf16.gmra.mrb[0].mxu0 %v1745
      %v1947 = vpop.f32.mrb[0].mxu0
      %v1948 = vadd.f32 0.0, %v1947
      %v1949 = vpop.f32.mrb[0].mxu0
      %v1950 = vpop.f32.mrb[0].mxu0
      %v1951 = vadd.f32 0.0, %v1950
      %v1952 = vpop.f32.mrb[0].mxu0
      %1953 = vmatprep.mubr.bf16.mxu0 0
      %1954 = vmatmul.mubr.bf16.gmra.mrb[0].mxu0 %v1746
      %v1955 = vpop.f32.mrb[0].mxu0
      %v1956 = vadd.f32 0.0, %v1955
      %v1957 = vpop.f32.mrb[0].mxu0
      %v1958 = vpop.f32.mrb[0].mxu0
      %v1959 = vadd.f32 0.0, %v1958
      %v1960 = vpop.f32.mrb[0].mxu0
      %1961 = vmatprep.mubr.bf16.mxu0 0
      %1962 = vmatmul.mubr.bf16.gmra.mrb[0].mxu0 %v1747
      %v1963 = vpop.f32.mrb[0].mxu0
      %v1964 = vadd.f32 0.0, %v1963
      %v1965 = vpop.f32.mrb[0].mxu0
      %v1966 = vpop.f32.mrb[0].mxu0
      %v1967 = vadd.f32 0.0, %v1966
      %v1968 = vpop.f32.mrb[0].mxu0
      %1969 = vmatprep.mubr.bf16.mxu0 0
      %1970 = vmatmul.mubr.bf16.gmra.mrb[0].mxu0 %v1748
      %v1971 = vpop.f32.mrb[0].mxu0
      %v1972 = vadd.f32 0.0, %v1971
      %v1973 = vpop.f32.mrb[0].mxu0
      %v1974 = vpop.f32.mrb[0].mxu0
      %v1975 = vadd.f32 0.0, %v1974
      %v1976 = vpop.f32.mrb[0].mxu0
      %1977 = vmatprep.mubr.bf16.mxu0 0
      %1978 = vmatmul.mubr.bf16.gmra.mrb[0].mxu0 %v1749
      %v1979 = vpop.f32.mrb[0].mxu0
      %v1980 = vadd.f32 0.0, %v1979
      %v1981 = vpop.f32.mrb[0].mxu0
      %v1982 = vpop.f32.mrb[0].mxu0
      %v1983 = vadd.f32 0.0, %v1982
      %v1984 = vpop.f32.mrb[0].mxu0
      %1985 = vmatprep.mubr.bf16.mxu0 0
      %1986 = vmatmul.mubr.bf16.gmra.mrb[0].mxu0 %v1750
      %v1987 = vpop.f32.mrb[0].mxu0
      %v1988 = vadd.f32 0.0, %v1987
      %v1989 = vpop.f32.mrb[0].mxu0
      %v1990 = vpop.f32.mrb[0].mxu0
      %v1991 = vadd.f32 0.0, %v1990
      %v1992 = vpop.f32.mrb[0].mxu0
      %1993 = vmatprep.mubr.bf16.mxu0 0
      %1994 = vmatmul.mubr.bf16.gmra.mrb[0].mxu0 %v1751
      %v1995 = vpop.f32.mrb[0].mxu0
      %v1996 = vadd.f32 0.0, %v1995
      %v1997 = vpop.f32.mrb[0].mxu0
      %v1998 = vpop.f32.mrb[0].mxu0
      %v1999 = vadd.f32 0.0, %v1998
      %v2000 = vpop.f32.mrb[0].mxu0
      %2001 = vmatprep.mubr.bf16.mxu0 0
      %2002 = vmatmul.mubr.bf16.gmra.mrb[0].mxu0 %v1752
      %v2003 = vpop.f32.mrb[0].mxu0
      %v2004 = vadd.f32 0.0, %v2003
      %v2005 = vpop.f32.mrb[0].mxu0
      %v2006 = vpop.f32.mrb[0].mxu0
      %v2007 = vadd.f32 0.0, %v2006
      %v2008 = vpop.f32.mrb[0].mxu0
      %2009 = vmatprep.mubr.bf16.mxu0 0
      %2010 = vmatmul.mubr.bf16.gmra.mrb[0].mxu0 %v1753
      %v2011 = vpop.f32.mrb[0].mxu0
      %v2012 = vadd.f32 0.0, %v2011
      %v2013 = vpop.f32.mrb[0].mxu0
      %v2014 = vpop.f32.mrb[0].mxu0
      %v2015 = vadd.f32 0.0, %v2014
      %v2016 = vpop.f32.mrb[0].mxu0
      %2017 = vmatprep.mubr.bf16.mxu0 0
      %2018 = vmatmul.mubr.bf16.gmra.mrb[0].mxu0 %v1754
      %v2019 = vpop.f32.mrb[0].mxu0
      %v2020 = vadd.f32 0.0, %v2019
      %v2021 = vpop.f32.mrb[0].mxu0
      %v2022 = vpop.f32.mrb[0].mxu0
      %v2023 = vadd.f32 0.0, %v2022
      %v2024 = vpop.f32.mrb[0].mxu0
      %2025 = vmatprep.mubr.bf16.mxu0 0
      %2026 = vmatmul.mubr.bf16.gmra.mrb[0].mxu0 %v1755
      %v2027 = vpop.f32.mrb[0].mxu0
      %v2028 = vadd.f32 0.0, %v2027
      %v2029 = vpop.f32.mrb[0].mxu0
      %v2030 = vpop.f32.mrb[0].mxu0
      %v2031 = vadd.f32 0.0, %v2030
      %v2032 = vpop.f32.mrb[0].mxu0
      %2033 = vmatprep.mubr.bf16.mxu0 0
      %2034 = vmatmul.mubr.bf16.gmra.mrb[0].mxu0 %v1756
      %v2035 = vpop.f32.mrb[0].mxu0
      %v2036 = vadd.f32 0.0, %v2035
      %v2037 = vpop.f32.mrb[0].mxu0
      %v2038 = vpop.f32.mrb[0].mxu0
      %v2039 = vadd.f32 0.0, %v2038
      %v2040 = vpop.f32.mrb[0].mxu0
      %2041 = vmatprep.mubr.bf16.mxu0 0
      %2042 = vmatmul.mubr.bf16.gmra.mrb[0].mxu0 %v1757
      %v2043 = vpop.f32.mrb[0].mxu0
      %v2044 = vadd.f32 0.0, %v2043
      %v2045 = vpop.f32.mrb[0].mxu0
      %v2046 = vpop.f32.mrb[0].mxu0
      %v2047 = vadd.f32 0.0, %v2046
      %v2048 = vpop.f32.mrb[0].mxu0
      %2049 = vmatprep.mubr.bf16.mxu0 0
      %2050 = vmatmul.mubr.bf16.gmra.mrb[0].mxu0 %v1758
      %v2051 = vpop.f32.mrb[0].mxu0
      %v2052 = vadd.f32 0.0, %v2051
      %v2053 = vpop.f32.mrb[0].mxu0
      %v2054 = vpop.f32.mrb[0].mxu0
      %v2055 = vadd.f32 0.0, %v2054
      %v2056 = vpop.f32.mrb[0].mxu0
      %2057 = vmatprep.mubr.bf16.mxu0 0
      %2058 = vmatmul.mubr.bf16.gmra.mrb[0].mxu0 %v1759
      %v2059 = vpop.f32.mrb[0].mxu0
      %v2060 = vadd.f32 0.0, %v2059
      %v2061 = vpop.f32.mrb[0].mxu0
      %v2062 = vpop.f32.mrb[0].mxu0
      %v2063 = vadd.f32 0.0, %v2062
      %v2064 = vpop.f32.mrb[0].mxu0
      %2065 = vmatprep.mubr.bf16.mxu0 0
      %2066 = vmatmul.mubr.bf16.gmra.mrb[0].mxu0 %v1760
      %v2067 = vpop.f32.mrb[0].mxu0
      %v2068 = vadd.f32 0.0, %v2067
      %v2069 = vpop.f32.mrb[0].mxu0
      %v2070 = vpop.f32.mrb[0].mxu0
      %v2071 = vadd.f32 0.0, %v2070
      %v2072 = vpop.f32.mrb[0].mxu0
      %2073 = vmatprep.mubr.bf16.mxu0 0
      %2074 = vmatmul.mubr.bf16.gmra.mrb[0].mxu0 %v1761
      %v2075 = vpop.f32.mrb[0].mxu0
      %v2076 = vadd.f32 0.0, %v2075
      %v2077 = vpop.f32.mrb[0].mxu0
      %v2078 = vpop.f32.mrb[0].mxu0
      %v2079 = vadd.f32 0.0, %v2078
      %v2080 = vpop.f32.mrb[0].mxu0
      %2081 = vmatprep.mubr.bf16.mxu0 0
      %2082 = vmatmul.mubr.bf16.gmra.mrb[0].mxu0 %v1762
      %v2083 = vpop.f32.mrb[0].mxu0
      %v2084 = vadd.f32 0.0, %v2083
      %v2085 = vpop.f32.mrb[0].mxu0
      %v2086 = vpop.f32.mrb[0].mxu0
      %v2087 = vadd.f32 0.0, %v2086
      %v2088 = vpop.f32.mrb[0].mxu0
      %2089 = vmatprep.mubr.bf16.mxu0 0
      %2090 = vmatmul.mubr.bf16.gmra.mrb[0].mxu0 %v1763
      %v2091 = vpop.f32.mrb[0].mxu0
      %v2092 = vadd.f32 0.0, %v2091
      %v2093 = vpop.f32.mrb[0].mxu0
      %v2094 = vpop.f32.mrb[0].mxu0
      %v2095 = vadd.f32 0.0, %v2094
      %v2096 = vpop.f32.mrb[0].mxu0
      %2097 = vmatprep.mubr.bf16.mxu0 0
      %2098 = vmatmul.mubr.bf16.gmra.mrb[0].mxu0 %v1764
      %v2099 = vpop.f32.mrb[0].mxu0
      %v2100 = vadd.f32 0.0, %v2099
      %v2101 = vpop.f32.mrb[0].mxu0
      %v2102 = vpop.f32.mrb[0].mxu0
      %v2103 = vadd.f32 0.0, %v2102
      %v2104 = vpop.f32.mrb[0].mxu0
      %2105 = vmatprep.mubr.bf16.mxu0 0
      %2106 = vmatmul.mubr.bf16.gmra.mrb[0].mxu0 %v1765
      %v2107 = vpop.f32.mrb[0].mxu0
      %v2108 = vadd.f32 0.0, %v2107
      %v2109 = vpop.f32.mrb[0].mxu0
      %v2110 = vpop.f32.mrb[0].mxu0
      %v2111 = vadd.f32 0.0, %v2110
      %v2112 = vpop.f32.mrb[0].mxu0
      %2113 = vmatprep.mubr.bf16.mxu0 0
      %2114 = vmatmul.mubr.bf16.gmra.mrb[0].mxu0 %v1766
      %v2115 = vpop.f32.mrb[0].mxu0
      %v2116 = vadd.f32 0.0, %v2115
      %v2117 = vpop.f32.mrb[0].mxu0
      %v2118 = vpop.f32.mrb[0].mxu0
      %v2119 = vadd.f32 0.0, %v2118
      %v2120 = vpop.f32.mrb[0].mxu0
      %2121 = vmatprep.mubr.bf16.mxu0 0
      %2122 = vmatmul.mubr.bf16.gmra.mrb[0].mxu0 %v1767
      %v2123 = vpop.f32.mrb[0].mxu0
      %v2124 = vadd.f32 0.0, %v2123
      %v2125 = vpop.f32.mrb[0].mxu0
      %v2126 = vpop.f32.mrb[0].mxu0
      %v2127 = vadd.f32 0.0, %v2126
      %v2128 = vpop.f32.mrb[0].mxu0
      %2129 = vmatprep.mubr.bf16.mxu0 0
      %2130 = vmatmul.mubr.bf16.gmra.mrb[0].mxu0 %v1768
      %v2131 = vpop.f32.mrb[0].mxu0
      %v2132 = vadd.f32 0.0, %v2131
      %v2133 = vpop.f32.mrb[0].mxu0
      %v2134 = vpop.f32.mrb[0].mxu0
      %v2135 = vadd.f32 0.0, %v2134
      %v2136 = vpop.f32.mrb[0].mxu0
      %2137 = vdwg.mxu0
      %v2138 = vadd.f32 %v1465, %v1884
      %v2139 = vadd.f32 %v1466, %v1887
      %v2140 = vadd.f32 %v1467, %v1892
      %v2141 = vadd.f32 %v1468, %v1895
      %v2142 = vadd.f32 %v1469, %v1900
      %v2143 = vadd.f32 %v1470, %v1903
      %v2144 = vadd.f32 %v1471, %v1908
      %v2145 = vadd.f32 %v1472, %v1911
      %v2146 = vadd.f32 %v1473, %v1916
      %v2147 = vadd.f32 %v1474, %v1919
      %v2148 = vadd.f32 %v1475, %v1924
      %v2149 = vadd.f32 %v1476, %v1927
      %v2150 = vadd.f32 %v1477, %v1932
      %v2151 = vadd.f32 %v1478, %v1935
      %v2152 = vadd.f32 %v1479, %v1940
      %v2153 = vadd.f32 %v1480, %v1943
      %v2154 = vadd.f32 %v1481, %v1948
      %v2155 = vadd.f32 %v1482, %v1951
      %v2156 = vadd.f32 %v1483, %v1956
      %v2157 = vadd.f32 %v1484, %v1959
      %v2158 = vadd.f32 %v1485, %v1964
      %v2159 = vadd.f32 %v1486, %v1967
      %v2160 = vadd.f32 %v1487, %v1972
      %v2161 = vadd.f32 %v1488, %v1975
      %v2162 = vadd.f32 %v1489, %v1980
      %v2163 = vadd.f32 %v1490, %v1983
      %v2164 = vadd.f32 %v1491, %v1988
      %v2165 = vadd.f32 %v1492, %v1991
      %v2166 = vadd.f32 %v1493, %v1996
      %v2167 = vadd.f32 %v1494, %v1999
      %v2168 = vadd.f32 %v1495, %v2004
      %v2169 = vadd.f32 %v1496, %v2007
      %v2170 = vadd.f32 %v1497, %v2012
      %v2171 = vadd.f32 %v1498, %v2015
      %v2172 = vadd.f32 %v1499, %v2020
      %v2173 = vadd.f32 %v1500, %v2023
      %v2174 = vadd.f32 %v1501, %v2028
      %v2175 = vadd.f32 %v1502, %v2031
      %v2176 = vadd.f32 %v1503, %v2036
      %v2177 = vadd.f32 %v1504, %v2039
      %v2178 = vadd.f32 %v1505, %v2044
      %v2179 = vadd.f32 %v1506, %v2047
      %v2180 = vadd.f32 %v1507, %v2052
      %v2181 = vadd.f32 %v1508, %v2055
      %v2182 = vadd.f32 %v1509, %v2060
      %v2183 = vadd.f32 %v1510, %v2063
      %v2184 = vadd.f32 %v1511, %v2068
      %v2185 = vadd.f32 %v1512, %v2071
      %v2186 = vadd.f32 %v1513, %v2076
      %v2187 = vadd.f32 %v1514, %v2079
      %v2188 = vadd.f32 %v1515, %v2084
      %v2189 = vadd.f32 %v1516, %v2087
      %v2190 = vadd.f32 %v1517, %v2092
      %v2191 = vadd.f32 %v1518, %v2095
      %v2192 = vadd.f32 %v1519, %v2100
      %v2193 = vadd.f32 %v1520, %v2103
      %v2194 = vadd.f32 %v1521, %v2108
      %v2195 = vadd.f32 %v1522, %v2111
      %v2196 = vadd.f32 %v1523, %v2116
      %v2197 = vadd.f32 %v1524, %v2119
      %v2198 = vadd.f32 %v1525, %v2124
      %v2199 = vadd.f32 %v1526, %v2127
      %v2200 = vadd.f32 %v1527, %v2132
      %v2201 = vadd.f32 %v1528, %v2135
      %2202 = vst [vmem:[#allocation3] sm:$0xff] %v2138
      %2203 = vst [vmem:[#allocation3 + $0x8] sm:$0xff] %v2139
      %2204 = vst [vmem:[#allocation3 + $0x10] sm:$0xff] %v2140
      %2205 = vst [vmem:[#allocation3 + $0x18] sm:$0xff] %v2141
      %2206 = vst [vmem:[#allocation3 + $0x20] sm:$0xff] %v2142
      %2207 = vst [vmem:[#allocation3 + $0x28] sm:$0xff] %v2143
      %2208 = vst [vmem:[#allocation3 + $0x30] sm:$0xff] %v2144
      %2209 = vst [vmem:[#allocation3 + $0x38] sm:$0xff] %v2145
      %2210 = vst [vmem:[#allocation3 + $0x40] sm:$0xff] %v2146
      %2211 = vst [vmem:[#allocation3 + $0x48] sm:$0xff] %v2147
      %2212 = vst [vmem:[#allocation3 + $0x50] sm:$0xff] %v2148
      %2213 = vst [vmem:[#allocation3 + $0x58] sm:$0xff] %v2149
      %2214 = vst [vmem:[#allocation3 + $0x60] sm:$0xff] %v2150
      %2215 = vst [vmem:[#allocation3 + $0x68] sm:$0xff] %v2151
      %2216 = vst [vmem:[#allocation3 + $0x70] sm:$0xff] %v2152
      %2217 = vst [vmem:[#allocation3 + $0x78] sm:$0xff] %v2153
      %2218 = vst [vmem:[#allocation3 + $0x80] sm:$0xff] %v2154
      %2219 = vst [vmem:[#allocation3 + $0x88] sm:$0xff] %v2155
      %2220 = vst [vmem:[#allocation3 + $0x90] sm:$0xff] %v2156
      %2221 = vst [vmem:[#allocation3 + $0x98] sm:$0xff] %v2157
      %2222 = vst [vmem:[#allocation3 + $0xa0] sm:$0xff] %v2158
      %2223 = vst [vmem:[#allocation3 + $0xa8] sm:$0xff] %v2159
      %2224 = vst [vmem:[#allocation3 + $0xb0] sm:$0xff] %v2160
      %2225 = vst [vmem:[#allocation3 + $0xb8] sm:$0xff] %v2161
      %2226 = vst [vmem:[#allocation3 + $0xc0] sm:$0xff] %v2162
      %2227 = vst [vmem:[#allocation3 + $0xc8] sm:$0xff] %v2163
      %2228 = vst [vmem:[#allocation3 + $0xd0] sm:$0xff] %v2164
      %2229 = vst [vmem:[#allocation3 + $0xd8] sm:$0xff] %v2165
      %2230 = vst [vmem:[#allocation3 + $0xe0] sm:$0xff] %v2166
      %2231 = vst [vmem:[#allocation3 + $0xe8] sm:$0xff] %v2167
      %2232 = vst [vmem:[#allocation3 + $0xf0] sm:$0xff] %v2168
      %2233 = vst [vmem:[#allocation3 + $0xf8] sm:$0xff] %v2169
      %2234 = vst [vmem:[#allocation3 + $0x100] sm:$0xff] %v2170
      %2235 = vst [vmem:[#allocation3 + $0x108] sm:$0xff] %v2171
      %2236 = vst [vmem:[#allocation3 + $0x110] sm:$0xff] %v2172
      %2237 = vst [vmem:[#allocation3 + $0x118] sm:$0xff] %v2173
      %2238 = vst [vmem:[#allocation3 + $0x120] sm:$0xff] %v2174
      %2239 = vst [vmem:[#allocation3 + $0x128] sm:$0xff] %v2175
      %2240 = vst [vmem:[#allocation3 + $0x130] sm:$0xff] %v2176
      %2241 = vst [vmem:[#allocation3 + $0x138] sm:$0xff] %v2177
      %2242 = vst [vmem:[#allocation3 + $0x140] sm:$0xff] %v2178
      %2243 = vst [vmem:[#allocation3 + $0x148] sm:$0xff] %v2179
      %2244 = vst [vmem:[#allocation3 + $0x150] sm:$0xff] %v2180
      %2245 = vst [vmem:[#allocation3 + $0x158] sm:$0xff] %v2181
      %2246 = vst [vmem:[#allocation3 + $0x160] sm:$0xff] %v2182
      %2247 = vst [vmem:[#allocation3 + $0x168] sm:$0xff] %v2183
      %2248 = vst [vmem:[#allocation3 + $0x170] sm:$0xff] %v2184
      %2249 = vst [vmem:[#allocation3 + $0x178] sm:$0xff] %v2185
      %2250 = vst [vmem:[#allocation3 + $0x180] sm:$0xff] %v2186
      %2251 = vst [vmem:[#allocation3 + $0x188] sm:$0xff] %v2187
      %2252 = vst [vmem:[#allocation3 + $0x190] sm:$0xff] %v2188
      %2253 = vst [vmem:[#allocation3 + $0x198] sm:$0xff] %v2189
      %2254 = vst [vmem:[#allocation3 + $0x1a0] sm:$0xff] %v2190
      %2255 = vst [vmem:[#allocation3 + $0x1a8] sm:$0xff] %v2191
      %2256 = vst [vmem:[#allocation3 + $0x1b0] sm:$0xff] %v2192
      %2257 = vst [vmem:[#allocation3 + $0x1b8] sm:$0xff] %v2193
      %2258 = vst [vmem:[#allocation3 + $0x1c0] sm:$0xff] %v2194
      %2259 = vst [vmem:[#allocation3 + $0x1c8] sm:$0xff] %v2195
      %2260 = vst [vmem:[#allocation3 + $0x1d0] sm:$0xff] %v2196
      %2261 = vst [vmem:[#allocation3 + $0x1d8] sm:$0xff] %v2197
      %2262 = vst [vmem:[#allocation3 + $0x1e0] sm:$0xff] %v2198
      %2263 = vst [vmem:[#allocation3 + $0x1e8] sm:$0xff] %v2199
      %2264 = vst [vmem:[#allocation3 + $0x1f0] sm:$0xff] %v2200
      %2265 = vst [vmem:[#allocation3 + $0x1f8] sm:$0xff] %v2201
      // Predicated region
      $region53: #{_lambda_.1} parent=47 // pred_check
        %p2266 = pneg %p518
      $region54: #{_lambda_.1} parent=47 // pred_check_branch
        %2268 = sbr.rel (%p2266) target = $region56
      $region55: #{_lambda_.1} parent=47 // pred_region
        %v2269 = vld [vmem:[%s490] sm:$0x1]
        %v2270 = vld [vmem:[#allocation2] sm:$0xff]
        %v2271 = vld [vmem:[#allocation2 + $0x8] sm:$0xff]
        %v2272 = vld [vmem:[#allocation2 + $0x10] sm:$0xff]
        %v2273 = vld [vmem:[#allocation2 + $0x18] sm:$0xff]
        %v2274 = vld [vmem:[#allocation2 + $0x20] sm:$0xff]
        %v2275 = vld [vmem:[#allocation2 + $0x28] sm:$0xff]
        %v2276 = vld [vmem:[#allocation2 + $0x30] sm:$0xff]
        %v2277 = vld [vmem:[#allocation2 + $0x38] sm:$0xff]
        %v2278 = vld [vmem:[#allocation2 + $0x40] sm:$0xff]
        %v2279 = vld [vmem:[#allocation2 + $0x48] sm:$0xff]
        %v2280 = vld [vmem:[#allocation2 + $0x50] sm:$0xff]
        %v2281 = vld [vmem:[#allocation2 + $0x58] sm:$0xff]
        %v2282 = vld [vmem:[#allocation2 + $0x60] sm:$0xff]
        %v2283 = vld [vmem:[#allocation2 + $0x68] sm:$0xff]
        %v2284 = vld [vmem:[#allocation2 + $0x70] sm:$0xff]
        %v2285 = vld [vmem:[#allocation2 + $0x78] sm:$0xff]
        %v2286 = vld [vmem:[#allocation2 + $0x80] sm:$0xff]
        %v2287 = vld [vmem:[#allocation2 + $0x88] sm:$0xff]
        %v2288 = vld [vmem:[#allocation2 + $0x90] sm:$0xff]
        %v2289 = vld [vmem:[#allocation2 + $0x98] sm:$0xff]
        %v2290 = vld [vmem:[#allocation2 + $0xa0] sm:$0xff]
        %v2291 = vld [vmem:[#allocation2 + $0xa8] sm:$0xff]
        %v2292 = vld [vmem:[#allocation2 + $0xb0] sm:$0xff]
        %v2293 = vld [vmem:[#allocation2 + $0xb8] sm:$0xff]
        %v2294 = vld [vmem:[#allocation2 + $0xc0] sm:$0xff]
        %v2295 = vld [vmem:[#allocation2 + $0xc8] sm:$0xff]
        %v2296 = vld [vmem:[#allocation2 + $0xd0] sm:$0xff]
        %v2297 = vld [vmem:[#allocation2 + $0xd8] sm:$0xff]
        %v2298 = vld [vmem:[#allocation2 + $0xe0] sm:$0xff]
        %v2299 = vld [vmem:[#allocation2 + $0xe8] sm:$0xff]
        %v2300 = vld [vmem:[#allocation2 + $0xf0] sm:$0xff]
        %v2301 = vld [vmem:[#allocation2 + $0xf8] sm:$0xff]
        %v2302 = vld [vmem:[#allocation2 + $0x100] sm:$0xff]
        %v2303 = vld [vmem:[#allocation2 + $0x108] sm:$0xff]
        %v2304 = vld [vmem:[#allocation2 + $0x110] sm:$0xff]
        %v2305 = vld [vmem:[#allocation2 + $0x118] sm:$0xff]
        %v2306 = vld [vmem:[#allocation2 + $0x120] sm:$0xff]
        %v2307 = vld [vmem:[#allocation2 + $0x128] sm:$0xff]
        %v2308 = vld [vmem:[#allocation2 + $0x130] sm:$0xff]
        %v2309 = vld [vmem:[#allocation2 + $0x138] sm:$0xff]
        %v2310 = vld [vmem:[#allocation2 + $0x140] sm:$0xff]
        %v2311 = vld [vmem:[#allocation2 + $0x148] sm:$0xff]
        %v2312 = vld [vmem:[#allocation2 + $0x150] sm:$0xff]
        %v2313 = vld [vmem:[#allocation2 + $0x158] sm:$0xff]
        %v2314 = vld [vmem:[#allocation2 + $0x160] sm:$0xff]
        %v2315 = vld [vmem:[#allocation2 + $0x168] sm:$0xff]
        %v2316 = vld [vmem:[#allocation2 + $0x170] sm:$0xff]
        %v2317 = vld [vmem:[#allocation2 + $0x178] sm:$0xff]
        %v2318 = vld [vmem:[#allocation2 + $0x180] sm:$0xff]
        %v2319 = vld [vmem:[#allocation2 + $0x188] sm:$0xff]
        %v2320 = vld [vmem:[#allocation2 + $0x190] sm:$0xff]
        %v2321 = vld [vmem:[#allocation2 + $0x198] sm:$0xff]
        %v2322 = vld [vmem:[#allocation2 + $0x1a0] sm:$0xff]
        %v2323 = vld [vmem:[#allocation2 + $0x1a8] sm:$0xff]
        %v2324 = vld [vmem:[#allocation2 + $0x1b0] sm:$0xff]
        %v2325 = vld [vmem:[#allocation2 + $0x1b8] sm:$0xff]
        %v2326 = vld [vmem:[#allocation2 + $0x1c0] sm:$0xff]
        %v2327 = vld [vmem:[#allocation2 + $0x1c8] sm:$0xff]
        %v2328 = vld [vmem:[#allocation2 + $0x1d0] sm:$0xff]
        %v2329 = vld [vmem:[#allocation2 + $0x1d8] sm:$0xff]
        %v2330 = vld [vmem:[#allocation2 + $0x1e0] sm:$0xff]
        %v2331 = vld [vmem:[#allocation2 + $0x1e8] sm:$0xff]
        %v2332 = vld [vmem:[#allocation2 + $0x1f0] sm:$0xff]
        %v2333 = vld [vmem:[#allocation2 + $0x1f8] sm:$0xff]
        %v2335 = vlaneseq
        %v2336 = vshrl.u32 %v2335, 7
        %v2337 = vsub.s32 0, %v2336
        %v2338 = vrot.slane %v2269, %v2337
        %v2340 = vmul.f32 %v2270, %v2338
        %v2341 = vmul.f32 %v2271, %v2338
        %v2342 = vmul.f32 %v2272, %v2338
        %v2343 = vmul.f32 %v2273, %v2338
        %v2344 = vmul.f32 %v2274, %v2338
        %v2345 = vmul.f32 %v2275, %v2338
        %v2346 = vmul.f32 %v2276, %v2338
        %v2347 = vmul.f32 %v2277, %v2338
        %v2348 = vmul.f32 %v2278, %v2338
        %v2349 = vmul.f32 %v2279, %v2338
        %v2350 = vmul.f32 %v2280, %v2338
        %v2351 = vmul.f32 %v2281, %v2338
        %v2352 = vmul.f32 %v2282, %v2338
        %v2353 = vmul.f32 %v2283, %v2338
        %v2354 = vmul.f32 %v2284, %v2338
        %v2355 = vmul.f32 %v2285, %v2338
        %v2356 = vmul.f32 %v2286, %v2338
        %v2357 = vmul.f32 %v2287, %v2338
        %v2358 = vmul.f32 %v2288, %v2338
        %v2359 = vmul.f32 %v2289, %v2338
        %v2360 = vmul.f32 %v2290, %v2338
        %v2361 = vmul.f32 %v2291, %v2338
        %v2362 = vmul.f32 %v2292, %v2338
        %v2363 = vmul.f32 %v2293, %v2338
        %v2364 = vmul.f32 %v2294, %v2338
        %v2365 = vmul.f32 %v2295, %v2338
        %v2366 = vmul.f32 %v2296, %v2338
        %v2367 = vmul.f32 %v2297, %v2338
        %v2368 = vmul.f32 %v2298, %v2338
        %v2369 = vmul.f32 %v2299, %v2338
        %v2370 = vmul.f32 %v2300, %v2338
        %v2371 = vmul.f32 %v2301, %v2338
        %v2372 = vmul.f32 %v2302, %v2338
        %v2373 = vmul.f32 %v2303, %v2338
        %v2374 = vmul.f32 %v2304, %v2338
        %v2375 = vmul.f32 %v2305, %v2338
        %v2376 = vmul.f32 %v2306, %v2338
        %v2377 = vmul.f32 %v2307, %v2338
        %v2378 = vmul.f32 %v2308, %v2338
        %v2379 = vmul.f32 %v2309, %v2338
        %v2380 = vmul.f32 %v2310, %v2338
        %v2381 = vmul.f32 %v2311, %v2338
        %v2382 = vmul.f32 %v2312, %v2338
        %v2383 = vmul.f32 %v2313, %v2338
        %v2384 = vmul.f32 %v2314, %v2338
        %v2385 = vmul.f32 %v2315, %v2338
        %v2386 = vmul.f32 %v2316, %v2338
        %v2387 = vmul.f32 %v2317, %v2338
        %v2388 = vmul.f32 %v2318, %v2338
        %v2389 = vmul.f32 %v2319, %v2338
        %v2390 = vmul.f32 %v2320, %v2338
        %v2391 = vmul.f32 %v2321, %v2338
        %v2392 = vmul.f32 %v2322, %v2338
        %v2393 = vmul.f32 %v2323, %v2338
        %v2394 = vmul.f32 %v2324, %v2338
        %v2395 = vmul.f32 %v2325, %v2338
        %v2396 = vmul.f32 %v2326, %v2338
        %v2397 = vmul.f32 %v2327, %v2338
        %v2398 = vmul.f32 %v2328, %v2338
        %v2399 = vmul.f32 %v2329, %v2338
        %v2400 = vmul.f32 %v2330, %v2338
        %v2401 = vmul.f32 %v2331, %v2338
        %v2402 = vmul.f32 %v2332, %v2338
        %v2403 = vmul.f32 %v2333, %v2338
        %v2404 = vld [vmem:[#allocation3] sm:$0xff]
        %v2405 = vld [vmem:[#allocation3 + $0x8] sm:$0xff]
        %v2406 = vld [vmem:[#allocation3 + $0x10] sm:$0xff]
        %v2407 = vld [vmem:[#allocation3 + $0x18] sm:$0xff]
        %v2408 = vld [vmem:[#allocation3 + $0x20] sm:$0xff]
        %v2409 = vld [vmem:[#allocation3 + $0x28] sm:$0xff]
        %v2410 = vld [vmem:[#allocation3 + $0x30] sm:$0xff]
        %v2411 = vld [vmem:[#allocation3 + $0x38] sm:$0xff]
        %v2412 = vld [vmem:[#allocation3 + $0x40] sm:$0xff]
        %v2413 = vld [vmem:[#allocation3 + $0x48] sm:$0xff]
        %v2414 = vld [vmem:[#allocation3 + $0x50] sm:$0xff]
        %v2415 = vld [vmem:[#allocation3 + $0x58] sm:$0xff]
        %v2416 = vld [vmem:[#allocation3 + $0x60] sm:$0xff]
        %v2417 = vld [vmem:[#allocation3 + $0x68] sm:$0xff]
        %v2418 = vld [vmem:[#allocation3 + $0x70] sm:$0xff]
        %v2419 = vld [vmem:[#allocation3 + $0x78] sm:$0xff]
        %v2420 = vld [vmem:[#allocation3 + $0x80] sm:$0xff]
        %v2421 = vld [vmem:[#allocation3 + $0x88] sm:$0xff]
        %v2422 = vld [vmem:[#allocation3 + $0x90] sm:$0xff]
        %v2423 = vld [vmem:[#allocation3 + $0x98] sm:$0xff]
        %v2424 = vld [vmem:[#allocation3 + $0xa0] sm:$0xff]
        %v2425 = vld [vmem:[#allocation3 + $0xa8] sm:$0xff]
        %v2426 = vld [vmem:[#allocation3 + $0xb0] sm:$0xff]
        %v2427 = vld [vmem:[#allocation3 + $0xb8] sm:$0xff]
        %v2428 = vld [vmem:[#allocation3 + $0xc0] sm:$0xff]
        %v2429 = vld [vmem:[#allocation3 + $0xc8] sm:$0xff]
        %v2430 = vld [vmem:[#allocation3 + $0xd0] sm:$0xff]
        %v2431 = vld [vmem:[#allocation3 + $0xd8] sm:$0xff]
        %v2432 = vld [vmem:[#allocation3 + $0xe0] sm:$0xff]
        %v2433 = vld [vmem:[#allocation3 + $0xe8] sm:$0xff]
        %v2434 = vld [vmem:[#allocation3 + $0xf0] sm:$0xff]
        %v2435 = vld [vmem:[#allocation3 + $0xf8] sm:$0xff]
        %v2436 = vld [vmem:[#allocation3 + $0x100] sm:$0xff]
        %v2437 = vld [vmem:[#allocation3 + $0x108] sm:$0xff]
        %v2438 = vld [vmem:[#allocation3 + $0x110] sm:$0xff]
        %v2439 = vld [vmem:[#allocation3 + $0x118] sm:$0xff]
        %v2440 = vld [vmem:[#allocation3 + $0x120] sm:$0xff]
        %v2441 = vld [vmem:[#allocation3 + $0x128] sm:$0xff]
        %v2442 = vld [vmem:[#allocation3 + $0x130] sm:$0xff]
        %v2443 = vld [vmem:[#allocation3 + $0x138] sm:$0xff]
        %v2444 = vld [vmem:[#allocation3 + $0x140] sm:$0xff]
        %v2445 = vld [vmem:[#allocation3 + $0x148] sm:$0xff]
        %v2446 = vld [vmem:[#allocation3 + $0x150] sm:$0xff]
        %v2447 = vld [vmem:[#allocation3 + $0x158] sm:$0xff]
        %v2448 = vld [vmem:[#allocation3 + $0x160] sm:$0xff]
        %v2449 = vld [vmem:[#allocation3 + $0x168] sm:$0xff]
        %v2450 = vld [vmem:[#allocation3 + $0x170] sm:$0xff]
        %v2451 = vld [vmem:[#allocation3 + $0x178] sm:$0xff]
        %v2452 = vld [vmem:[#allocation3 + $0x180] sm:$0xff]
        %v2453 = vld [vmem:[#allocation3 + $0x188] sm:$0xff]
        %v2454 = vld [vmem:[#allocation3 + $0x190] sm:$0xff]
        %v2455 = vld [vmem:[#allocation3 + $0x198] sm:$0xff]
        %v2456 = vld [vmem:[#allocation3 + $0x1a0] sm:$0xff]
        %v2457 = vld [vmem:[#allocation3 + $0x1a8] sm:$0xff]
        %v2458 = vld [vmem:[#allocation3 + $0x1b0] sm:$0xff]
        %v2459 = vld [vmem:[#allocation3 + $0x1b8] sm:$0xff]
        %v2460 = vld [vmem:[#allocation3 + $0x1c0] sm:$0xff]
        %v2461 = vld [vmem:[#allocation3 + $0x1c8] sm:$0xff]
        %v2462 = vld [vmem:[#allocation3 + $0x1d0] sm:$0xff]
        %v2463 = vld [vmem:[#allocation3 + $0x1d8] sm:$0xff]
        %v2464 = vld [vmem:[#allocation3 + $0x1e0] sm:$0xff]
        %v2465 = vld [vmem:[#allocation3 + $0x1e8] sm:$0xff]
        %v2466 = vld [vmem:[#allocation3 + $0x1f0] sm:$0xff]
        %v2467 = vld [vmem:[#allocation3 + $0x1f8] sm:$0xff]
        %v2468 = vmul.f32 %v2269, %v2269
        %v2470 = vlaneseq
        %v2471 = vshrl.u32 %v2470, 7
        %v2472 = vsub.s32 0, %v2471
        %v2473 = vrot.slane %v2468, %v2472
        %v2475 = vmul.f32 %v2404, %v2473
        %v2476 = vmul.f32 %v2405, %v2473
        %v2477 = vmul.f32 %v2406, %v2473
        %v2478 = vmul.f32 %v2407, %v2473
        %v2479 = vmul.f32 %v2408, %v2473
        %v2480 = vmul.f32 %v2409, %v2473
        %v2481 = vmul.f32 %v2410, %v2473
        %v2482 = vmul.f32 %v2411, %v2473
        %v2483 = vmul.f32 %v2412, %v2473
        %v2484 = vmul.f32 %v2413, %v2473
        %v2485 = vmul.f32 %v2414, %v2473
        %v2486 = vmul.f32 %v2415, %v2473
        %v2487 = vmul.f32 %v2416, %v2473
        %v2488 = vmul.f32 %v2417, %v2473
        %v2489 = vmul.f32 %v2418, %v2473
        %v2490 = vmul.f32 %v2419, %v2473
        %v2491 = vmul.f32 %v2420, %v2473
        %v2492 = vmul.f32 %v2421, %v2473
        %v2493 = vmul.f32 %v2422, %v2473
        %v2494 = vmul.f32 %v2423, %v2473
        %v2495 = vmul.f32 %v2424, %v2473
        %v2496 = vmul.f32 %v2425, %v2473
        %v2497 = vmul.f32 %v2426, %v2473
        %v2498 = vmul.f32 %v2427, %v2473
        %v2499 = vmul.f32 %v2428, %v2473
        %v2500 = vmul.f32 %v2429, %v2473
        %v2501 = vmul.f32 %v2430, %v2473
        %v2502 = vmul.f32 %v2431, %v2473
        %v2503 = vmul.f32 %v2432, %v2473
        %v2504 = vmul.f32 %v2433, %v2473
        %v2505 = vmul.f32 %v2434, %v2473
        %v2506 = vmul.f32 %v2435, %v2473
        %v2507 = vmul.f32 %v2436, %v2473
        %v2508 = vmul.f32 %v2437, %v2473
        %v2509 = vmul.f32 %v2438, %v2473
        %v2510 = vmul.f32 %v2439, %v2473
        %v2511 = vmul.f32 %v2440, %v2473
        %v2512 = vmul.f32 %v2441, %v2473
        %v2513 = vmul.f32 %v2442, %v2473
        %v2514 = vmul.f32 %v2443, %v2473
        %v2515 = vmul.f32 %v2444, %v2473
        %v2516 = vmul.f32 %v2445, %v2473
        %v2517 = vmul.f32 %v2446, %v2473
        %v2518 = vmul.f32 %v2447, %v2473
        %v2519 = vmul.f32 %v2448, %v2473
        %v2520 = vmul.f32 %v2449, %v2473
        %v2521 = vmul.f32 %v2450, %v2473
        %v2522 = vmul.f32 %v2451, %v2473
        %v2523 = vmul.f32 %v2452, %v2473
        %v2524 = vmul.f32 %v2453, %v2473
        %v2525 = vmul.f32 %v2454, %v2473
        %v2526 = vmul.f32 %v2455, %v2473
        %v2527 = vmul.f32 %v2456, %v2473
        %v2528 = vmul.f32 %v2457, %v2473
        %v2529 = vmul.f32 %v2458, %v2473
        %v2530 = vmul.f32 %v2459, %v2473
        %v2531 = vmul.f32 %v2460, %v2473
        %v2532 = vmul.f32 %v2461, %v2473
        %v2533 = vmul.f32 %v2462, %v2473
        %v2534 = vmul.f32 %v2463, %v2473
        %v2535 = vmul.f32 %v2464, %v2473
        %v2536 = vmul.f32 %v2465, %v2473
        %v2537 = vmul.f32 %v2466, %v2473
        %v2538 = vmul.f32 %v2467, %v2473
        %v2539 = vld [vmem:[%s502] sm:$0xf]
        %v2540 = vld [vmem:[%s502 + $0x4] sm:$0xf]
        %v2541 = vld [vmem:[%s502 + $0x8] sm:$0xf]
        %v2542 = vld [vmem:[%s502 + $0xc] sm:$0xf]
        %v2543 = vld [vmem:[%s502 + $0x10] sm:$0xf]
        %v2544 = vld [vmem:[%s502 + $0x14] sm:$0xf]
        %v2545 = vld [vmem:[%s502 + $0x18] sm:$0xf]
        %v2546 = vld [vmem:[%s502 + $0x1c] sm:$0xf]
        %v2547 = vld [vmem:[%s502 + $0x20] sm:$0xf]
        %v2548 = vld [vmem:[%s502 + $0x24] sm:$0xf]
        %v2549 = vld [vmem:[%s502 + $0x28] sm:$0xf]
        %v2550 = vld [vmem:[%s502 + $0x2c] sm:$0xf]
        %v2551 = vld [vmem:[%s502 + $0x30] sm:$0xf]
        %v2552 = vld [vmem:[%s502 + $0x34] sm:$0xf]
        %v2553 = vld [vmem:[%s502 + $0x38] sm:$0xf]
        %v2554 = vld [vmem:[%s502 + $0x3c] sm:$0xf]
        %v2555 = vld [vmem:[%s502 + $0x40] sm:$0xf]
        %v2556 = vld [vmem:[%s502 + $0x44] sm:$0xf]
        %v2557 = vld [vmem:[%s502 + $0x48] sm:$0xf]
        %v2558 = vld [vmem:[%s502 + $0x4c] sm:$0xf]
        %v2559 = vld [vmem:[%s502 + $0x50] sm:$0xf]
        %v2560 = vld [vmem:[%s502 + $0x54] sm:$0xf]
        %v2561 = vld [vmem:[%s502 + $0x58] sm:$0xf]
        %v2562 = vld [vmem:[%s502 + $0x5c] sm:$0xf]
        %v2563 = vld [vmem:[%s502 + $0x60] sm:$0xf]
        %v2564 = vld [vmem:[%s502 + $0x64] sm:$0xf]
        %v2565 = vld [vmem:[%s502 + $0x68] sm:$0xf]
        %v2566 = vld [vmem:[%s502 + $0x6c] sm:$0xf]
        %v2567 = vld [vmem:[%s502 + $0x70] sm:$0xf]
        %v2568 = vld [vmem:[%s502 + $0x74] sm:$0xf]
        %v2569 = vld [vmem:[%s502 + $0x78] sm:$0xf]
        %v2570 = vld [vmem:[%s502 + $0x7c] sm:$0xf]
        %v2571 = vld [vmem:[%s502 + $0x80] sm:$0xf]
        %v2572 = vld [vmem:[%s502 + $0x84] sm:$0xf]
        %v2573 = vld [vmem:[%s502 + $0x88] sm:$0xf]
        %v2574 = vld [vmem:[%s502 + $0x8c] sm:$0xf]
        %v2575 = vld [vmem:[%s502 + $0x90] sm:$0xf]
        %v2576 = vld [vmem:[%s502 + $0x94] sm:$0xf]
        %v2577 = vld [vmem:[%s502 + $0x98] sm:$0xf]
        %v2578 = vld [vmem:[%s502 + $0x9c] sm:$0xf]
        %v2579 = vld [vmem:[%s502 + $0xa0] sm:$0xf]
        %v2580 = vld [vmem:[%s502 + $0xa4] sm:$0xf]
        %v2581 = vld [vmem:[%s502 + $0xa8] sm:$0xf]
        %v2582 = vld [vmem:[%s502 + $0xac] sm:$0xf]
        %v2583 = vld [vmem:[%s502 + $0xb0] sm:$0xf]
        %v2584 = vld [vmem:[%s502 + $0xb4] sm:$0xf]
        %v2585 = vld [vmem:[%s502 + $0xb8] sm:$0xf]
        %v2586 = vld [vmem:[%s502 + $0xbc] sm:$0xf]
        %v2587 = vld [vmem:[%s502 + $0xc0] sm:$0xf]
        %v2588 = vld [vmem:[%s502 + $0xc4] sm:$0xf]
        %v2589 = vld [vmem:[%s502 + $0xc8] sm:$0xf]
        %v2590 = vld [vmem:[%s502 + $0xcc] sm:$0xf]
        %v2591 = vld [vmem:[%s502 + $0xd0] sm:$0xf]
        %v2592 = vld [vmem:[%s502 + $0xd4] sm:$0xf]
        %v2593 = vld [vmem:[%s502 + $0xd8] sm:$0xf]
        %v2594 = vld [vmem:[%s502 + $0xdc] sm:$0xf]
        %v2595 = vld [vmem:[%s502 + $0xe0] sm:$0xf]
        %v2596 = vld [vmem:[%s502 + $0xe4] sm:$0xf]
        %v2597 = vld [vmem:[%s502 + $0xe8] sm:$0xf]
        %v2598 = vld [vmem:[%s502 + $0xec] sm:$0xf]
        %v2599 = vld [vmem:[%s502 + $0xf0] sm:$0xf]
        %v2600 = vld [vmem:[%s502 + $0xf4] sm:$0xf]
        %v2601 = vld [vmem:[%s502 + $0xf8] sm:$0xf]
        %v2602 = vld [vmem:[%s502 + $0xfc] sm:$0xf]
        %v2603 = vunpack.c.l.bf16 %v2539
        %v2604 = vunpack.c.l.bf16 %v2540
        %v2605 = vunpack.c.l.bf16 %v2541
        %v2606 = vunpack.c.l.bf16 %v2542
        %v2607 = vunpack.c.l.bf16 %v2543
        %v2608 = vunpack.c.l.bf16 %v2544
        %v2609 = vunpack.c.l.bf16 %v2545
        %v2610 = vunpack.c.l.bf16 %v2546
        %v2611 = vunpack.c.l.bf16 %v2547
        %v2612 = vunpack.c.l.bf16 %v2548
        %v2613 = vunpack.c.l.bf16 %v2549
        %v2614 = vunpack.c.l.bf16 %v2550
        %v2615 = vunpack.c.l.bf16 %v2551
        %v2616 = vunpack.c.l.bf16 %v2552
        %v2617 = vunpack.c.l.bf16 %v2553
        %v2618 = vunpack.c.l.bf16 %v2554
        %v2619 = vunpack.c.l.bf16 %v2555
        %v2620 = vunpack.c.l.bf16 %v2556
        %v2621 = vunpack.c.l.bf16 %v2557
        %v2622 = vunpack.c.l.bf16 %v2558
        %v2623 = vunpack.c.l.bf16 %v2559
        %v2624 = vunpack.c.l.bf16 %v2560
        %v2625 = vunpack.c.l.bf16 %v2561
        %v2626 = vunpack.c.l.bf16 %v2562
        %v2627 = vunpack.c.l.bf16 %v2563
        %v2628 = vunpack.c.l.bf16 %v2564
        %v2629 = vunpack.c.l.bf16 %v2565
        %v2630 = vunpack.c.l.bf16 %v2566
        %v2631 = vunpack.c.l.bf16 %v2567
        %v2632 = vunpack.c.l.bf16 %v2568
        %v2633 = vunpack.c.l.bf16 %v2569
        %v2634 = vunpack.c.l.bf16 %v2570
        %v2635 = vunpack.c.l.bf16 %v2571
        %v2636 = vunpack.c.l.bf16 %v2572
        %v2637 = vunpack.c.l.bf16 %v2573
        %v2638 = vunpack.c.l.bf16 %v2574
        %v2639 = vunpack.c.l.bf16 %v2575
        %v2640 = vunpack.c.l.bf16 %v2576
        %v2641 = vunpack.c.l.bf16 %v2577
        %v2642 = vunpack.c.l.bf16 %v2578
        %v2643 = vunpack.c.l.bf16 %v2579
        %v2644 = vunpack.c.l.bf16 %v2580
        %v2645 = vunpack.c.l.bf16 %v2581
        %v2646 = vunpack.c.l.bf16 %v2582
        %v2647 = vunpack.c.l.bf16 %v2583
        %v2648 = vunpack.c.l.bf16 %v2584
        %v2649 = vunpack.c.l.bf16 %v2585
        %v2650 = vunpack.c.l.bf16 %v2586
        %v2651 = vunpack.c.l.bf16 %v2587
        %v2652 = vunpack.c.l.bf16 %v2588
        %v2653 = vunpack.c.l.bf16 %v2589
        %v2654 = vunpack.c.l.bf16 %v2590
        %v2655 = vunpack.c.l.bf16 %v2591
        %v2656 = vunpack.c.l.bf16 %v2592
        %v2657 = vunpack.c.l.bf16 %v2593
        %v2658 = vunpack.c.l.bf16 %v2594
        %v2659 = vunpack.c.l.bf16 %v2595
        %v2660 = vunpack.c.l.bf16 %v2596
        %v2661 = vunpack.c.l.bf16 %v2597
        %v2662 = vunpack.c.l.bf16 %v2598
        %v2663 = vunpack.c.l.bf16 %v2599
        %v2664 = vunpack.c.l.bf16 %v2600
        %v2665 = vunpack.c.l.bf16 %v2601
        %v2666 = vunpack.c.l.bf16 %v2602
        %v2667 = vrsqrt.pop %v2475
        %v2668 = vmul.f32 %v2475, %v2667
        %vm2669 = vcmp.eq.f32.partialorder %v2475, inf
        %v2670 = vsel %vm2669, %v2475, %v2668
        %vm2671 = vcmp.eq.f32.partialorder %v2475, 0.0
        %v2672 = vand.u32 %v2475, 2147483648
        %v2673 = vsel %vm2671, %v2672, %v2670
        %v2674 = vrsqrt.pop %v2476
        %v2675 = vmul.f32 %v2476, %v2674
        %vm2676 = vcmp.eq.f32.partialorder %v2476, inf
        %v2677 = vsel %vm2676, %v2476, %v2675
        %vm2678 = vcmp.eq.f32.partialorder %v2476, 0.0
        %v2679 = vand.u32 %v2476, 2147483648
        %v2680 = vsel %vm2678, %v2679, %v2677
        %v2681 = vrsqrt.pop %v2477
        %v2682 = vmul.f32 %v2477, %v2681
        %vm2683 = vcmp.eq.f32.partialorder %v2477, inf
        %v2684 = vsel %vm2683, %v2477, %v2682
        %vm2685 = vcmp.eq.f32.partialorder %v2477, 0.0
        %v2686 = vand.u32 %v2477, 2147483648
        %v2687 = vsel %vm2685, %v2686, %v2684
        %v2688 = vrsqrt.pop %v2478
        %v2689 = vmul.f32 %v2478, %v2688
        %vm2690 = vcmp.eq.f32.partialorder %v2478, inf
        %v2691 = vsel %vm2690, %v2478, %v2689
        %vm2692 = vcmp.eq.f32.partialorder %v2478, 0.0
        %v2693 = vand.u32 %v2478, 2147483648
        %v2694 = vsel %vm2692, %v2693, %v2691
        %v2695 = vrsqrt.pop %v2479
        %v2696 = vmul.f32 %v2479, %v2695
        %vm2697 = vcmp.eq.f32.partialorder %v2479, inf
        %v2698 = vsel %vm2697, %v2479, %v2696
        %vm2699 = vcmp.eq.f32.partialorder %v2479, 0.0
        %v2700 = vand.u32 %v2479, 2147483648
        %v2701 = vsel %vm2699, %v2700, %v2698
        %v2702 = vrsqrt.pop %v2480
        %v2703 = vmul.f32 %v2480, %v2702
        %vm2704 = vcmp.eq.f32.partialorder %v2480, inf
        %v2705 = vsel %vm2704, %v2480, %v2703
        %vm2706 = vcmp.eq.f32.partialorder %v2480, 0.0
        %v2707 = vand.u32 %v2480, 2147483648
        %v2708 = vsel %vm2706, %v2707, %v2705
        %v2709 = vrsqrt.pop %v2481
        %v2710 = vmul.f32 %v2481, %v2709
        %vm2711 = vcmp.eq.f32.partialorder %v2481, inf
        %v2712 = vsel %vm2711, %v2481, %v2710
        %vm2713 = vcmp.eq.f32.partialorder %v2481, 0.0
        %v2714 = vand.u32 %v2481, 2147483648
        %v2715 = vsel %vm2713, %v2714, %v2712
        %v2716 = vrsqrt.pop %v2482
        %v2717 = vmul.f32 %v2482, %v2716
        %vm2718 = vcmp.eq.f32.partialorder %v2482, inf
        %v2719 = vsel %vm2718, %v2482, %v2717
        %vm2720 = vcmp.eq.f32.partialorder %v2482, 0.0
        %v2721 = vand.u32 %v2482, 2147483648
        %v2722 = vsel %vm2720, %v2721, %v2719
        %v2723 = vrsqrt.pop %v2483
        %v2724 = vmul.f32 %v2483, %v2723
        %vm2725 = vcmp.eq.f32.partialorder %v2483, inf
        %v2726 = vsel %vm2725, %v2483, %v2724
        %vm2727 = vcmp.eq.f32.partialorder %v2483, 0.0
        %v2728 = vand.u32 %v2483, 2147483648
        %v2729 = vsel %vm2727, %v2728, %v2726
        %v2730 = vrsqrt.pop %v2484
        %v2731 = vmul.f32 %v2484, %v2730
        %vm2732 = vcmp.eq.f32.partialorder %v2484, inf
        %v2733 = vsel %vm2732, %v2484, %v2731
        %vm2734 = vcmp.eq.f32.partialorder %v2484, 0.0
        %v2735 = vand.u32 %v2484, 2147483648
        %v2736 = vsel %vm2734, %v2735, %v2733
        %v2737 = vrsqrt.pop %v2485
        %v2738 = vmul.f32 %v2485, %v2737
        %vm2739 = vcmp.eq.f32.partialorder %v2485, inf
        %v2740 = vsel %vm2739, %v2485, %v2738
        %vm2741 = vcmp.eq.f32.partialorder %v2485, 0.0
        %v2742 = vand.u32 %v2485, 2147483648
        %v2743 = vsel %vm2741, %v2742, %v2740
        %v2744 = vrsqrt.pop %v2486
        %v2745 = vmul.f32 %v2486, %v2744
        %vm2746 = vcmp.eq.f32.partialorder %v2486, inf
        %v2747 = vsel %vm2746, %v2486, %v2745
        %vm2748 = vcmp.eq.f32.partialorder %v2486, 0.0
        %v2749 = vand.u32 %v2486, 2147483648
        %v2750 = vsel %vm2748, %v2749, %v2747
        %v2751 = vrsqrt.pop %v2487
        %v2752 = vmul.f32 %v2487, %v2751
        %vm2753 = vcmp.eq.f32.partialorder %v2487, inf
        %v2754 = vsel %vm2753, %v2487, %v2752
        %vm2755 = vcmp.eq.f32.partialorder %v2487, 0.0
        %v2756 = vand.u32 %v2487, 2147483648
        %v2757 = vsel %vm2755, %v2756, %v2754
        %v2758 = vrsqrt.pop %v2488
        %v2759 = vmul.f32 %v2488, %v2758
        %vm2760 = vcmp.eq.f32.partialorder %v2488, inf
        %v2761 = vsel %vm2760, %v2488, %v2759
        %vm2762 = vcmp.eq.f32.partialorder %v2488, 0.0
        %v2763 = vand.u32 %v2488, 2147483648
        %v2764 = vsel %vm2762, %v2763, %v2761
        %v2765 = vrsqrt.pop %v2489
        %v2766 = vmul.f32 %v2489, %v2765
        %vm2767 = vcmp.eq.f32.partialorder %v2489, inf
        %v2768 = vsel %vm2767, %v2489, %v2766
        %vm2769 = vcmp.eq.f32.partialorder %v2489, 0.0
        %v2770 = vand.u32 %v2489, 2147483648
        %v2771 = vsel %vm2769, %v2770, %v2768
        %v2772 = vrsqrt.pop %v2490
        %v2773 = vmul.f32 %v2490, %v2772
        %vm2774 = vcmp.eq.f32.partialorder %v2490, inf
        %v2775 = vsel %vm2774, %v2490, %v2773
        %vm2776 = vcmp.eq.f32.partialorder %v2490, 0.0
        %v2777 = vand.u32 %v2490, 2147483648
        %v2778 = vsel %vm2776, %v2777, %v2775
        %v2779 = vrsqrt.pop %v2491
        %v2780 = vmul.f32 %v2491, %v2779
        %vm2781 = vcmp.eq.f32.partialorder %v2491, inf
        %v2782 = vsel %vm2781, %v2491, %v2780
        %vm2783 = vcmp.eq.f32.partialorder %v2491, 0.0
        %v2784 = vand.u32 %v2491, 2147483648
        %v2785 = vsel %vm2783, %v2784, %v2782
        %v2786 = vrsqrt.pop %v2492
        %v2787 = vmul.f32 %v2492, %v2786
        %vm2788 = vcmp.eq.f32.partialorder %v2492, inf
        %v2789 = vsel %vm2788, %v2492, %v2787
        %vm2790 = vcmp.eq.f32.partialorder %v2492, 0.0
        %v2791 = vand.u32 %v2492, 2147483648
        %v2792 = vsel %vm2790, %v2791, %v2789
        %v2793 = vrsqrt.pop %v2493
        %v2794 = vmul.f32 %v2493, %v2793
        %vm2795 = vcmp.eq.f32.partialorder %v2493, inf
        %v2796 = vsel %vm2795, %v2493, %v2794
        %vm2797 = vcmp.eq.f32.partialorder %v2493, 0.0
        %v2798 = vand.u32 %v2493, 2147483648
        %v2799 = vsel %vm2797, %v2798, %v2796
        %v2800 = vrsqrt.pop %v2494
        %v2801 = vmul.f32 %v2494, %v2800
        %vm2802 = vcmp.eq.f32.partialorder %v2494, inf
        %v2803 = vsel %vm2802, %v2494, %v2801
        %vm2804 = vcmp.eq.f32.partialorder %v2494, 0.0
        %v2805 = vand.u32 %v2494, 2147483648
        %v2806 = vsel %vm2804, %v2805, %v2803
        %v2807 = vrsqrt.pop %v2495
        %v2808 = vmul.f32 %v2495, %v2807
        %vm2809 = vcmp.eq.f32.partialorder %v2495, inf
        %v2810 = vsel %vm2809, %v2495, %v2808
        %vm2811 = vcmp.eq.f32.partialorder %v2495, 0.0
        %v2812 = vand.u32 %v2495, 2147483648
        %v2813 = vsel %vm2811, %v2812, %v2810
        %v2814 = vrsqrt.pop %v2496
        %v2815 = vmul.f32 %v2496, %v2814
        %vm2816 = vcmp.eq.f32.partialorder %v2496, inf
        %v2817 = vsel %vm2816, %v2496, %v2815
        %vm2818 = vcmp.eq.f32.partialorder %v2496, 0.0
        %v2819 = vand.u32 %v2496, 2147483648
        %v2820 = vsel %vm2818, %v2819, %v2817
        %v2821 = vrsqrt.pop %v2497
        %v2822 = vmul.f32 %v2497, %v2821
        %vm2823 = vcmp.eq.f32.partialorder %v2497, inf
        %v2824 = vsel %vm2823, %v2497, %v2822
        %vm2825 = vcmp.eq.f32.partialorder %v2497, 0.0
        %v2826 = vand.u32 %v2497, 2147483648
        %v2827 = vsel %vm2825, %v2826, %v2824
        %v2828 = vrsqrt.pop %v2498
        %v2829 = vmul.f32 %v2498, %v2828
        %vm2830 = vcmp.eq.f32.partialorder %v2498, inf
        %v2831 = vsel %vm2830, %v2498, %v2829
        %vm2832 = vcmp.eq.f32.partialorder %v2498, 0.0
        %v2833 = vand.u32 %v2498, 2147483648
        %v2834 = vsel %vm2832, %v2833, %v2831
        %v2835 = vrsqrt.pop %v2499
        %v2836 = vmul.f32 %v2499, %v2835
        %vm2837 = vcmp.eq.f32.partialorder %v2499, inf
        %v2838 = vsel %vm2837, %v2499, %v2836
        %vm2839 = vcmp.eq.f32.partialorder %v2499, 0.0
        %v2840 = vand.u32 %v2499, 2147483648
        %v2841 = vsel %vm2839, %v2840, %v2838
        %v2842 = vrsqrt.pop %v2500
        %v2843 = vmul.f32 %v2500, %v2842
        %vm2844 = vcmp.eq.f32.partialorder %v2500, inf
        %v2845 = vsel %vm2844, %v2500, %v2843
        %vm2846 = vcmp.eq.f32.partialorder %v2500, 0.0
        %v2847 = vand.u32 %v2500, 2147483648
        %v2848 = vsel %vm2846, %v2847, %v2845
        %v2849 = vrsqrt.pop %v2501
        %v2850 = vmul.f32 %v2501, %v2849
        %vm2851 = vcmp.eq.f32.partialorder %v2501, inf
        %v2852 = vsel %vm2851, %v2501, %v2850
        %vm2853 = vcmp.eq.f32.partialorder %v2501, 0.0
        %v2854 = vand.u32 %v2501, 2147483648
        %v2855 = vsel %vm2853, %v2854, %v2852
        %v2856 = vrsqrt.pop %v2502
        %v2857 = vmul.f32 %v2502, %v2856
        %vm2858 = vcmp.eq.f32.partialorder %v2502, inf
        %v2859 = vsel %vm2858, %v2502, %v2857
        %vm2860 = vcmp.eq.f32.partialorder %v2502, 0.0
        %v2861 = vand.u32 %v2502, 2147483648
        %v2862 = vsel %vm2860, %v2861, %v2859
        %v2863 = vrsqrt.pop %v2503
        %v2864 = vmul.f32 %v2503, %v2863
        %vm2865 = vcmp.eq.f32.partialorder %v2503, inf
        %v2866 = vsel %vm2865, %v2503, %v2864
        %vm2867 = vcmp.eq.f32.partialorder %v2503, 0.0
        %v2868 = vand.u32 %v2503, 2147483648
        %v2869 = vsel %vm2867, %v2868, %v2866
        %v2870 = vrsqrt.pop %v2504
        %v2871 = vmul.f32 %v2504, %v2870
        %vm2872 = vcmp.eq.f32.partialorder %v2504, inf
        %v2873 = vsel %vm2872, %v2504, %v2871
        %vm2874 = vcmp.eq.f32.partialorder %v2504, 0.0
        %v2875 = vand.u32 %v2504, 2147483648
        %v2876 = vsel %vm2874, %v2875, %v2873
        %v2877 = vrsqrt.pop %v2505
        %v2878 = vmul.f32 %v2505, %v2877
        %vm2879 = vcmp.eq.f32.partialorder %v2505, inf
        %v2880 = vsel %vm2879, %v2505, %v2878
        %vm2881 = vcmp.eq.f32.partialorder %v2505, 0.0
        %v2882 = vand.u32 %v2505, 2147483648
        %v2883 = vsel %vm2881, %v2882, %v2880
        %v2884 = vrsqrt.pop %v2506
        %v2885 = vmul.f32 %v2506, %v2884
        %vm2886 = vcmp.eq.f32.partialorder %v2506, inf
        %v2887 = vsel %vm2886, %v2506, %v2885
        %vm2888 = vcmp.eq.f32.partialorder %v2506, 0.0
        %v2889 = vand.u32 %v2506, 2147483648
        %v2890 = vsel %vm2888, %v2889, %v2887
        %v2891 = vrsqrt.pop %v2507
        %v2892 = vmul.f32 %v2507, %v2891
        %vm2893 = vcmp.eq.f32.partialorder %v2507, inf
        %v2894 = vsel %vm2893, %v2507, %v2892
        %vm2895 = vcmp.eq.f32.partialorder %v2507, 0.0
        %v2896 = vand.u32 %v2507, 2147483648
        %v2897 = vsel %vm2895, %v2896, %v2894
        %v2898 = vrsqrt.pop %v2508
        %v2899 = vmul.f32 %v2508, %v2898
        %vm2900 = vcmp.eq.f32.partialorder %v2508, inf
        %v2901 = vsel %vm2900, %v2508, %v2899
        %vm2902 = vcmp.eq.f32.partialorder %v2508, 0.0
        %v2903 = vand.u32 %v2508, 2147483648
        %v2904 = vsel %vm2902, %v2903, %v2901
        %v2905 = vrsqrt.pop %v2509
        %v2906 = vmul.f32 %v2509, %v2905
        %vm2907 = vcmp.eq.f32.partialorder %v2509, inf
        %v2908 = vsel %vm2907, %v2509, %v2906
        %vm2909 = vcmp.eq.f32.partialorder %v2509, 0.0
        %v2910 = vand.u32 %v2509, 2147483648
        %v2911 = vsel %vm2909, %v2910, %v2908
        %v2912 = vrsqrt.pop %v2510
        %v2913 = vmul.f32 %v2510, %v2912
        %vm2914 = vcmp.eq.f32.partialorder %v2510, inf
        %v2915 = vsel %vm2914, %v2510, %v2913
        %vm2916 = vcmp.eq.f32.partialorder %v2510, 0.0
        %v2917 = vand.u32 %v2510, 2147483648
        %v2918 = vsel %vm2916, %v2917, %v2915
        %v2919 = vrsqrt.pop %v2511
        %v2920 = vmul.f32 %v2511, %v2919
        %vm2921 = vcmp.eq.f32.partialorder %v2511, inf
        %v2922 = vsel %vm2921, %v2511, %v2920
        %vm2923 = vcmp.eq.f32.partialorder %v2511, 0.0
        %v2924 = vand.u32 %v2511, 2147483648
        %v2925 = vsel %vm2923, %v2924, %v2922
        %v2926 = vrsqrt.pop %v2512
        %v2927 = vmul.f32 %v2512, %v2926
        %vm2928 = vcmp.eq.f32.partialorder %v2512, inf
        %v2929 = vsel %vm2928, %v2512, %v2927
        %vm2930 = vcmp.eq.f32.partialorder %v2512, 0.0
        %v2931 = vand.u32 %v2512, 2147483648
        %v2932 = vsel %vm2930, %v2931, %v2929
        %v2933 = vrsqrt.pop %v2513
        %v2934 = vmul.f32 %v2513, %v2933
        %vm2935 = vcmp.eq.f32.partialorder %v2513, inf
        %v2936 = vsel %vm2935, %v2513, %v2934
        %vm2937 = vcmp.eq.f32.partialorder %v2513, 0.0
        %v2938 = vand.u32 %v2513, 2147483648
        %v2939 = vsel %vm2937, %v2938, %v2936
        %v2940 = vrsqrt.pop %v2514
        %v2941 = vmul.f32 %v2514, %v2940
        %vm2942 = vcmp.eq.f32.partialorder %v2514, inf
        %v2943 = vsel %vm2942, %v2514, %v2941
        %vm2944 = vcmp.eq.f32.partialorder %v2514, 0.0
        %v2945 = vand.u32 %v2514, 2147483648
        %v2946 = vsel %vm2944, %v2945, %v2943
        %v2947 = vrsqrt.pop %v2515
        %v2948 = vmul.f32 %v2515, %v2947
        %vm2949 = vcmp.eq.f32.partialorder %v2515, inf
        %v2950 = vsel %vm2949, %v2515, %v2948
        %vm2951 = vcmp.eq.f32.partialorder %v2515, 0.0
        %v2952 = vand.u32 %v2515, 2147483648
        %v2953 = vsel %vm2951, %v2952, %v2950
        %v2954 = vrsqrt.pop %v2516
        %v2955 = vmul.f32 %v2516, %v2954
        %vm2956 = vcmp.eq.f32.partialorder %v2516, inf
        %v2957 = vsel %vm2956, %v2516, %v2955
        %vm2958 = vcmp.eq.f32.partialorder %v2516, 0.0
        %v2959 = vand.u32 %v2516, 2147483648
        %v2960 = vsel %vm2958, %v2959, %v2957
        %v2961 = vrsqrt.pop %v2517
        %v2962 = vmul.f32 %v2517, %v2961
        %vm2963 = vcmp.eq.f32.partialorder %v2517, inf
        %v2964 = vsel %vm2963, %v2517, %v2962
        %vm2965 = vcmp.eq.f32.partialorder %v2517, 0.0
        %v2966 = vand.u32 %v2517, 2147483648
        %v2967 = vsel %vm2965, %v2966, %v2964
        %v2968 = vrsqrt.pop %v2518
        %v2969 = vmul.f32 %v2518, %v2968
        %vm2970 = vcmp.eq.f32.partialorder %v2518, inf
        %v2971 = vsel %vm2970, %v2518, %v2969
        %vm2972 = vcmp.eq.f32.partialorder %v2518, 0.0
        %v2973 = vand.u32 %v2518, 2147483648
        %v2974 = vsel %vm2972, %v2973, %v2971
        %v2975 = vrsqrt.pop %v2519
        %v2976 = vmul.f32 %v2519, %v2975
        %vm2977 = vcmp.eq.f32.partialorder %v2519, inf
        %v2978 = vsel %vm2977, %v2519, %v2976
        %vm2979 = vcmp.eq.f32.partialorder %v2519, 0.0
        %v2980 = vand.u32 %v2519, 2147483648
        %v2981 = vsel %vm2979, %v2980, %v2978
        %v2982 = vrsqrt.pop %v2520
        %v2983 = vmul.f32 %v2520, %v2982
        %vm2984 = vcmp.eq.f32.partialorder %v2520, inf
        %v2985 = vsel %vm2984, %v2520, %v2983
        %vm2986 = vcmp.eq.f32.partialorder %v2520, 0.0
        %v2987 = vand.u32 %v2520, 2147483648
        %v2988 = vsel %vm2986, %v2987, %v2985
        %v2989 = vrsqrt.pop %v2521
        %v2990 = vmul.f32 %v2521, %v2989
        %vm2991 = vcmp.eq.f32.partialorder %v2521, inf
        %v2992 = vsel %vm2991, %v2521, %v2990
        %vm2993 = vcmp.eq.f32.partialorder %v2521, 0.0
        %v2994 = vand.u32 %v2521, 2147483648
        %v2995 = vsel %vm2993, %v2994, %v2992
        %v2996 = vrsqrt.pop %v2522
        %v2997 = vmul.f32 %v2522, %v2996
        %vm2998 = vcmp.eq.f32.partialorder %v2522, inf
        %v2999 = vsel %vm2998, %v2522, %v2997
        %vm3000 = vcmp.eq.f32.partialorder %v2522, 0.0
        %v3001 = vand.u32 %v2522, 2147483648
        %v3002 = vsel %vm3000, %v3001, %v2999
        %v3003 = vrsqrt.pop %v2523
        %v3004 = vmul.f32 %v2523, %v3003
        %vm3005 = vcmp.eq.f32.partialorder %v2523, inf
        %v3006 = vsel %vm3005, %v2523, %v3004
        %vm3007 = vcmp.eq.f32.partialorder %v2523, 0.0
        %v3008 = vand.u32 %v2523, 2147483648
        %v3009 = vsel %vm3007, %v3008, %v3006
        %v3010 = vrsqrt.pop %v2524
        %v3011 = vmul.f32 %v2524, %v3010
        %vm3012 = vcmp.eq.f32.partialorder %v2524, inf
        %v3013 = vsel %vm3012, %v2524, %v3011
        %vm3014 = vcmp.eq.f32.partialorder %v2524, 0.0
        %v3015 = vand.u32 %v2524, 2147483648
        %v3016 = vsel %vm3014, %v3015, %v3013
        %v3017 = vrsqrt.pop %v2525
        %v3018 = vmul.f32 %v2525, %v3017
        %vm3019 = vcmp.eq.f32.partialorder %v2525, inf
        %v3020 = vsel %vm3019, %v2525, %v3018
        %vm3021 = vcmp.eq.f32.partialorder %v2525, 0.0
        %v3022 = vand.u32 %v2525, 2147483648
        %v3023 = vsel %vm3021, %v3022, %v3020
        %v3024 = vrsqrt.pop %v2526
        %v3025 = vmul.f32 %v2526, %v3024
        %vm3026 = vcmp.eq.f32.partialorder %v2526, inf
        %v3027 = vsel %vm3026, %v2526, %v3025
        %vm3028 = vcmp.eq.f32.partialorder %v2526, 0.0
        %v3029 = vand.u32 %v2526, 2147483648
        %v3030 = vsel %vm3028, %v3029, %v3027
        %v3031 = vrsqrt.pop %v2527
        %v3032 = vmul.f32 %v2527, %v3031
        %vm3033 = vcmp.eq.f32.partialorder %v2527, inf
        %v3034 = vsel %vm3033, %v2527, %v3032
        %vm3035 = vcmp.eq.f32.partialorder %v2527, 0.0
        %v3036 = vand.u32 %v2527, 2147483648
        %v3037 = vsel %vm3035, %v3036, %v3034
        %v3038 = vrsqrt.pop %v2528
        %v3039 = vmul.f32 %v2528, %v3038
        %vm3040 = vcmp.eq.f32.partialorder %v2528, inf
        %v3041 = vsel %vm3040, %v2528, %v3039
        %vm3042 = vcmp.eq.f32.partialorder %v2528, 0.0
        %v3043 = vand.u32 %v2528, 2147483648
        %v3044 = vsel %vm3042, %v3043, %v3041
        %v3045 = vrsqrt.pop %v2529
        %v3046 = vmul.f32 %v2529, %v3045
        %vm3047 = vcmp.eq.f32.partialorder %v2529, inf
        %v3048 = vsel %vm3047, %v2529, %v3046
        %vm3049 = vcmp.eq.f32.partialorder %v2529, 0.0
        %v3050 = vand.u32 %v2529, 2147483648
        %v3051 = vsel %vm3049, %v3050, %v3048
        %v3052 = vrsqrt.pop %v2530
        %v3053 = vmul.f32 %v2530, %v3052
        %vm3054 = vcmp.eq.f32.partialorder %v2530, inf
        %v3055 = vsel %vm3054, %v2530, %v3053
        %vm3056 = vcmp.eq.f32.partialorder %v2530, 0.0
        %v3057 = vand.u32 %v2530, 2147483648
        %v3058 = vsel %vm3056, %v3057, %v3055
        %v3059 = vrsqrt.pop %v2531
        %v3060 = vmul.f32 %v2531, %v3059
        %vm3061 = vcmp.eq.f32.partialorder %v2531, inf
        %v3062 = vsel %vm3061, %v2531, %v3060
        %vm3063 = vcmp.eq.f32.partialorder %v2531, 0.0
        %v3064 = vand.u32 %v2531, 2147483648
        %v3065 = vsel %vm3063, %v3064, %v3062
        %v3066 = vrsqrt.pop %v2532
        %v3067 = vmul.f32 %v2532, %v3066
        %vm3068 = vcmp.eq.f32.partialorder %v2532, inf
        %v3069 = vsel %vm3068, %v2532, %v3067
        %vm3070 = vcmp.eq.f32.partialorder %v2532, 0.0
        %v3071 = vand.u32 %v2532, 2147483648
        %v3072 = vsel %vm3070, %v3071, %v3069
        %v3073 = vrsqrt.pop %v2533
        %v3074 = vmul.f32 %v2533, %v3073
        %vm3075 = vcmp.eq.f32.partialorder %v2533, inf
        %v3076 = vsel %vm3075, %v2533, %v3074
        %vm3077 = vcmp.eq.f32.partialorder %v2533, 0.0
        %v3078 = vand.u32 %v2533, 2147483648
        %v3079 = vsel %vm3077, %v3078, %v3076
        %v3080 = vrsqrt.pop %v2534
        %v3081 = vmul.f32 %v2534, %v3080
        %vm3082 = vcmp.eq.f32.partialorder %v2534, inf
        %v3083 = vsel %vm3082, %v2534, %v3081
        %vm3084 = vcmp.eq.f32.partialorder %v2534, 0.0
        %v3085 = vand.u32 %v2534, 2147483648
        %v3086 = vsel %vm3084, %v3085, %v3083
        %v3087 = vrsqrt.pop %v2535
        %v3088 = vmul.f32 %v2535, %v3087
        %vm3089 = vcmp.eq.f32.partialorder %v2535, inf
        %v3090 = vsel %vm3089, %v2535, %v3088
        %vm3091 = vcmp.eq.f32.partialorder %v2535, 0.0
        %v3092 = vand.u32 %v2535, 2147483648
        %v3093 = vsel %vm3091, %v3092, %v3090
        %v3094 = vrsqrt.pop %v2536
        %v3095 = vmul.f32 %v2536, %v3094
        %vm3096 = vcmp.eq.f32.partialorder %v2536, inf
        %v3097 = vsel %vm3096, %v2536, %v3095
        %vm3098 = vcmp.eq.f32.partialorder %v2536, 0.0
        %v3099 = vand.u32 %v2536, 2147483648
        %v3100 = vsel %vm3098, %v3099, %v3097
        %v3101 = vrsqrt.pop %v2537
        %v3102 = vmul.f32 %v2537, %v3101
        %vm3103 = vcmp.eq.f32.partialorder %v2537, inf
        %v3104 = vsel %vm3103, %v2537, %v3102
        %vm3105 = vcmp.eq.f32.partialorder %v2537, 0.0
        %v3106 = vand.u32 %v2537, 2147483648
        %v3107 = vsel %vm3105, %v3106, %v3104
        %v3108 = vrsqrt.pop %v2538
        %v3109 = vmul.f32 %v2538, %v3108
        %vm3110 = vcmp.eq.f32.partialorder %v2538, inf
        %v3111 = vsel %vm3110, %v2538, %v3109
        %vm3112 = vcmp.eq.f32.partialorder %v2538, 0.0
        %v3113 = vand.u32 %v2538, 2147483648
        %v3114 = vsel %vm3112, %v3113, %v3111
        %v3115 = vmul.f32 %v2603, %v2673
        %v3116 = vmul.f32 %v2604, %v2680
        %v3117 = vmul.f32 %v2605, %v2687
        %v3118 = vmul.f32 %v2606, %v2694
        %v3119 = vmul.f32 %v2607, %v2701
        %v3120 = vmul.f32 %v2608, %v2708
        %v3121 = vmul.f32 %v2609, %v2715
        %v3122 = vmul.f32 %v2610, %v2722
        %v3123 = vmul.f32 %v2611, %v2729
        %v3124 = vmul.f32 %v2612, %v2736
        %v3125 = vmul.f32 %v2613, %v2743
        %v3126 = vmul.f32 %v2614, %v2750
        %v3127 = vmul.f32 %v2615, %v2757
        %v3128 = vmul.f32 %v2616, %v2764
        %v3129 = vmul.f32 %v2617, %v2771
        %v3130 = vmul.f32 %v2618, %v2778
        %v3131 = vmul.f32 %v2619, %v2785
        %v3132 = vmul.f32 %v2620, %v2792
        %v3133 = vmul.f32 %v2621, %v2799
        %v3134 = vmul.f32 %v2622, %v2806
        %v3135 = vmul.f32 %v2623, %v2813
        %v3136 = vmul.f32 %v2624, %v2820
        %v3137 = vmul.f32 %v2625, %v2827
        %v3138 = vmul.f32 %v2626, %v2834
        %v3139 = vmul.f32 %v2627, %v2841
        %v3140 = vmul.f32 %v2628, %v2848
        %v3141 = vmul.f32 %v2629, %v2855
        %v3142 = vmul.f32 %v2630, %v2862
        %v3143 = vmul.f32 %v2631, %v2869
        %v3144 = vmul.f32 %v2632, %v2876
        %v3145 = vmul.f32 %v2633, %v2883
        %v3146 = vmul.f32 %v2634, %v2890
        %v3147 = vmul.f32 %v2635, %v2897
        %v3148 = vmul.f32 %v2636, %v2904
        %v3149 = vmul.f32 %v2637, %v2911
        %v3150 = vmul.f32 %v2638, %v2918
        %v3151 = vmul.f32 %v2639, %v2925
        %v3152 = vmul.f32 %v2640, %v2932
        %v3153 = vmul.f32 %v2641, %v2939
        %v3154 = vmul.f32 %v2642, %v2946
        %v3155 = vmul.f32 %v2643, %v2953
        %v3156 = vmul.f32 %v2644, %v2960
        %v3157 = vmul.f32 %v2645, %v2967
        %v3158 = vmul.f32 %v2646, %v2974
        %v3159 = vmul.f32 %v2647, %v2981
        %v3160 = vmul.f32 %v2648, %v2988
        %v3161 = vmul.f32 %v2649, %v2995
        %v3162 = vmul.f32 %v2650, %v3002
        %v3163 = vmul.f32 %v2651, %v3009
        %v3164 = vmul.f32 %v2652, %v3016
        %v3165 = vmul.f32 %v2653, %v3023
        %v3166 = vmul.f32 %v2654, %v3030
        %v3167 = vmul.f32 %v2655, %v3037
        %v3168 = vmul.f32 %v2656, %v3044
        %v3169 = vmul.f32 %v2657, %v3051
        %v3170 = vmul.f32 %v2658, %v3058
        %v3171 = vmul.f32 %v2659, %v3065
        %v3172 = vmul.f32 %v2660, %v3072
        %v3173 = vmul.f32 %v2661, %v3079
        %v3174 = vmul.f32 %v2662, %v3086
        %v3175 = vmul.f32 %v2663, %v3093
        %v3176 = vmul.f32 %v2664, %v3100
        %v3177 = vmul.f32 %v2665, %v3107
        %v3178 = vmul.f32 %v2666, %v3114
        %v3179 = vadd.f32 %v2340, %v3115
        %v3180 = vadd.f32 %v2341, %v3116
        %v3181 = vadd.f32 %v2342, %v3117
        %v3182 = vadd.f32 %v2343, %v3118
        %v3183 = vadd.f32 %v2344, %v3119
        %v3184 = vadd.f32 %v2345, %v3120
        %v3185 = vadd.f32 %v2346, %v3121
        %v3186 = vadd.f32 %v2347, %v3122
        %v3187 = vadd.f32 %v2348, %v3123
        %v3188 = vadd.f32 %v2349, %v3124
        %v3189 = vadd.f32 %v2350, %v3125
        %v3190 = vadd.f32 %v2351, %v3126
        %v3191 = vadd.f32 %v2352, %v3127
        %v3192 = vadd.f32 %v2353, %v3128
        %v3193 = vadd.f32 %v2354, %v3129
        %v3194 = vadd.f32 %v2355, %v3130
        %v3195 = vadd.f32 %v2356, %v3131
        %v3196 = vadd.f32 %v2357, %v3132
        %v3197 = vadd.f32 %v2358, %v3133
        %v3198 = vadd.f32 %v2359, %v3134
        %v3199 = vadd.f32 %v2360, %v3135
        %v3200 = vadd.f32 %v2361, %v3136
        %v3201 = vadd.f32 %v2362, %v3137
        %v3202 = vadd.f32 %v2363, %v3138
        %v3203 = vadd.f32 %v2364, %v3139
        %v3204 = vadd.f32 %v2365, %v3140
        %v3205 = vadd.f32 %v2366, %v3141
        %v3206 = vadd.f32 %v2367, %v3142
        %v3207 = vadd.f32 %v2368, %v3143
        %v3208 = vadd.f32 %v2369, %v3144
        %v3209 = vadd.f32 %v2370, %v3145
        %v3210 = vadd.f32 %v2371, %v3146
        %v3211 = vadd.f32 %v2372, %v3147
        %v3212 = vadd.f32 %v2373, %v3148
        %v3213 = vadd.f32 %v2374, %v3149
        %v3214 = vadd.f32 %v2375, %v3150
        %v3215 = vadd.f32 %v2376, %v3151
        %v3216 = vadd.f32 %v2377, %v3152
        %v3217 = vadd.f32 %v2378, %v3153
        %v3218 = vadd.f32 %v2379, %v3154
        %v3219 = vadd.f32 %v2380, %v3155
        %v3220 = vadd.f32 %v2381, %v3156
        %v3221 = vadd.f32 %v2382, %v3157
        %v3222 = vadd.f32 %v2383, %v3158
        %v3223 = vadd.f32 %v2384, %v3159
        %v3224 = vadd.f32 %v2385, %v3160
        %v3225 = vadd.f32 %v2386, %v3161
        %v3226 = vadd.f32 %v2387, %v3162
        %v3227 = vadd.f32 %v2388, %v3163
        %v3228 = vadd.f32 %v2389, %v3164
        %v3229 = vadd.f32 %v2390, %v3165
        %v3230 = vadd.f32 %v2391, %v3166
        %v3231 = vadd.f32 %v2392, %v3167
        %v3232 = vadd.f32 %v2393, %v3168
        %v3233 = vadd.f32 %v2394, %v3169
        %v3234 = vadd.f32 %v2395, %v3170
        %v3235 = vadd.f32 %v2396, %v3171
        %v3236 = vadd.f32 %v2397, %v3172
        %v3237 = vadd.f32 %v2398, %v3173
        %v3238 = vadd.f32 %v2399, %v3174
        %v3239 = vadd.f32 %v2400, %v3175
        %v3240 = vadd.f32 %v2401, %v3176
        %v3241 = vadd.f32 %v2402, %v3177
        %v3242 = vadd.f32 %v2403, %v3178
        %3243 = vst [vmem:[%s515] sm:$0xff] %v3179
        %3244 = vst [vmem:[%s515 + $0x8] sm:$0xff] %v3180
        %3245 = vst [vmem:[%s515 + $0x10] sm:$0xff] %v3181
        %3246 = vst [vmem:[%s515 + $0x18] sm:$0xff] %v3182
        %3247 = vst [vmem:[%s515 + $0x20] sm:$0xff] %v3183
        %3248 = vst [vmem:[%s515 + $0x28] sm:$0xff] %v3184
        %3249 = vst [vmem:[%s515 + $0x30] sm:$0xff] %v3185
        %3250 = vst [vmem:[%s515 + $0x38] sm:$0xff] %v3186
        %3251 = vst [vmem:[%s515 + $0x40] sm:$0xff] %v3187
        %3252 = vst [vmem:[%s515 + $0x48] sm:$0xff] %v3188
        %3253 = vst [vmem:[%s515 + $0x50] sm:$0xff] %v3189
        %3254 = vst [vmem:[%s515 + $0x58] sm:$0xff] %v3190
        %3255 = vst [vmem:[%s515 + $0x60] sm:$0xff] %v3191
        %3256 = vst [vmem:[%s515 + $0x68] sm:$0xff] %v3192
        %3257 = vst [vmem:[%s515 + $0x70] sm:$0xff] %v3193
        %3258 = vst [vmem:[%s515 + $0x78] sm:$0xff] %v3194
        %3259 = vst [vmem:[%s515 + $0x80] sm:$0xff] %v3195
        %3260 = vst [vmem:[%s515 + $0x88] sm:$0xff] %v3196
        %3261 = vst [vmem:[%s515 + $0x90] sm:$0xff] %v3197
        %3262 = vst [vmem:[%s515 + $0x98] sm:$0xff] %v3198
        %3263 = vst [vmem:[%s515 + $0xa0] sm:$0xff] %v3199
        %3264 = vst [vmem:[%s515 + $0xa8] sm:$0xff] %v3200
        %3265 = vst [vmem:[%s515 + $0xb0] sm:$0xff] %v3201
        %3266 = vst [vmem:[%s515 + $0xb8] sm:$0xff] %v3202
        %3267 = vst [vmem:[%s515 + $0xc0] sm:$0xff] %v3203
        %3268 = vst [vmem:[%s515 + $0xc8] sm:$0xff] %v3204
        %3269 = vst [vmem:[%s515 + $0xd0] sm:$0xff] %v3205
        %3270 = vst [vmem:[%s515 + $0xd8] sm:$0xff] %v3206
        %3271 = vst [vmem:[%s515 + $0xe0] sm:$0xff] %v3207
        %3272 = vst [vmem:[%s515 + $0xe8] sm:$0xff] %v3208
        %3273 = vst [vmem:[%s515 + $0xf0] sm:$0xff] %v3209
        %3274 = vst [vmem:[%s515 + $0xf8] sm:$0xff] %v3210
        %3275 = vst [vmem:[%s515 + $0x100] sm:$0xff] %v3211
        %3276 = vst [vmem:[%s515 + $0x108] sm:$0xff] %v3212
        %3277 = vst [vmem:[%s515 + $0x110] sm:$0xff] %v3213
        %3278 = vst [vmem:[%s515 + $0x118] sm:$0xff] %v3214
        %3279 = vst [vmem:[%s515 + $0x120] sm:$0xff] %v3215
        %3280 = vst [vmem:[%s515 + $0x128] sm:$0xff] %v3216
        %3281 = vst [vmem:[%s515 + $0x130] sm:$0xff] %v3217
        %3282 = vst [vmem:[%s515 + $0x138] sm:$0xff] %v3218
        %3283 = vst [vmem:[%s515 + $0x140] sm:$0xff] %v3219
        %3284 = vst [vmem:[%s515 + $0x148] sm:$0xff] %v3220
        %3285 = vst [vmem:[%s515 + $0x150] sm:$0xff] %v3221
        %3286 = vst [vmem:[%s515 + $0x158] sm:$0xff] %v3222
        %3287 = vst [vmem:[%s515 + $0x160] sm:$0xff] %v3223
        %3288 = vst [vmem:[%s515 + $0x168] sm:$0xff] %v3224
        %3289 = vst [vmem:[%s515 + $0x170] sm:$0xff] %v3225
        %3290 = vst [vmem:[%s515 + $0x178] sm:$0xff] %v3226
        %3291 = vst [vmem:[%s515 + $0x180] sm:$0xff] %v3227
        %3292 = vst [vmem:[%s515 + $0x188] sm:$0xff] %v3228
        %3293 = vst [vmem:[%s515 + $0x190] sm:$0xff] %v3229
        %3294 = vst [vmem:[%s515 + $0x198] sm:$0xff] %v3230
        %3295 = vst [vmem:[%s515 + $0x1a0] sm:$0xff] %v3231
        %3296 = vst [vmem:[%s515 + $0x1a8] sm:$0xff] %v3232
        %3297 = vst [vmem:[%s515 + $0x1b0] sm:$0xff] %v3233
        %3298 = vst [vmem:[%s515 + $0x1b8] sm:$0xff] %v3234
        %3299 = vst [vmem:[%s515 + $0x1c0] sm:$0xff] %v3235
        %3300 = vst [vmem:[%s515 + $0x1c8] sm:$0xff] %v3236
        %3301 = vst [vmem:[%s515 + $0x1d0] sm:$0xff] %v3237
        %3302 = vst [vmem:[%s515 + $0x1d8] sm:$0xff] %v3238
        %3303 = vst [vmem:[%s515 + $0x1e0] sm:$0xff] %v3239
        %3304 = vst [vmem:[%s515 + $0x1e8] sm:$0xff] %v3240
        %3305 = vst [vmem:[%s515 + $0x1f0] sm:$0xff] %v3241
        %3306 = vst [vmem:[%s515 + $0x1f8] sm:$0xff] %v3242
      $region56: #{_lambda_.1} parent=47 // pred_fallthru
        _
      %s3307 = smul.u32 64, %s25
      %p3308 = scmp.lt.s32.totalorder %s24, 1
      %s3309 = scalar_select %p3308, %s24, 1
      %p3310 = scmp.lt.s32.totalorder %s3307, 63
      %s3311 = scalar_select %p3310, %s3307, 63
      %p3312 = scmp.lt.s32.totalorder %s26, 0
      %s3313 = scalar_select %p3312, %s26, 0
      %s3314 = sadd.s32 %s3313, %s3311
      %s3315 = smul.addr %s3309, 64
      %s3316 = sadd.s32 %s3314, %s3315
      %s3317 = smul.addr %s3316, 8
      %s3318 = scalar_lea.vmem %s7, %s3317
      // Predicated region
      $region57: #{_lambda_.1} parent=47 // pred_check
        %p3319 = pneg %p262
      $region58: #{_lambda_.1} parent=47 // pred_check_branch
        %3321 = sbr.rel (%p3319) target = $region60
      $region59: #{_lambda_.1} parent=47 // pred_region
        %s3322 = smul.u32 64, %s25
      $region60: #{_lambda_.1} parent=47 // pred_fallthru
        _
    $region48: #{_lambda_.1} parent=5 // pred_fallthru
      _
    %p3323 = scmp.le.s32.totalorder 2, %s13
    // Predicated region
    $region61: #{_lambda_.1} parent=5 // pred_check
      %p3324 = pneg %p3323
    $region62: #{_lambda_.1} parent=5 // pred_check_branch
      %3326 = sbr.rel (%p3324) target = $region64
    $region63: #{_lambda_.1} parent=5 // pred_region
      %s3327 = ssub.s32 %s13, 2
      // Predicated region
      $region65: #{_lambda_.1} parent=63 // pred_check
        %p3328 = pneg %p268
      $region66: #{_lambda_.1} parent=63 // pred_check_branch
        %3330 = sbr.rel (%p3328) target = $region68
      $region67: #{_lambda_.1} parent=63 // pred_region
        %s3331 = smul.u32 64, %s29
        %p3332 = scmp.lt.s32.totalorder %s28, 1
        %s3333 = scalar_select %p3332, %s28, 1
        %p3334 = scmp.lt.s32.totalorder %s3331, 63
        %s3335 = scalar_select %p3334, %s3331, 63
        %p3336 = scmp.lt.s32.totalorder %s30, 0
        %s3337 = scalar_select %p3336, %s30, 0
        %s3338 = sadd.s32 %s3337, %s3335
        %s3339 = smul.addr %s3333, 64
        %s3340 = sadd.s32 %s3338, %s3339
        %s3341 = smul.addr %s3340, 8
        %s3342 = scalar_lea.vmem %s7, %s3341
      $region68: #{_lambda_.1} parent=63 // pred_fallthru
        _
    $region64: #{_lambda_.1} parent=5 // pred_fallthru
      _
  $region6: #{_lambda_.1} parent=0 // loop_footer
    %s17 = sadd.s32 1, %s13
  $region7: #{_lambda_.1} parent=0 // loop_footer_branch
    %12 = sbr.rel target = $region3
  $region8: #{_lambda_.1} parent=0 // loop_exit
    _

</llo_original>
